<compile_context>
chip_gen: v6e
topology: v6e:2x2x1
jax: 0.10.0
libtpu: 0.0.40
codegen_flags: <defaults>
</compile_context>

<pallas_src>
import jax
import jax.numpy as jnp
from jax.experimental import pallas as pl
from jax.experimental.pallas import tpu as pltpu

# ----- small shapes consistent with the module -----
BATCH = 8          # batch size
SEQ = 8            # seq_length (analog of the production value)
HID = 768          # encoder hidden size (hard-coded 768 in the module)
NUM_OUTPUTS = 16   # num_outputs
PAD0 = 8           # sublane-aligned row offset of real data in the conv pad scratch


# ----------------------------------------------------------------------------
# Fused Pallas kernel
# ----------------------------------------------------------------------------
def _fused_forward_kernel(x_ref,            # (B, SEQ*HID) f32
                          w3_ref, b3_ref,   # (SEQ*HID, SEQ) bf16, (1, SEQ) f32
                          cw_ref, cb_ref,   # (3, SEQ, SEQ) bf16,  (1, SEQ) f32
                          w6_ref, b6_ref,   # (SEQ, NUM_OUTPUTS) bf16, (1, NUM_OUTPUTS) f32
                          out_ref,          # (B, NUM_OUTPUTS) f32
                          pad_ref):         # VMEM scratch (PAD0+B+PAD0, SEQ) f32
    # l2: Dropout(0.3) -> identity at inference.
    # l3: Linear(SEQ*768 -> SEQ), bf16 MXU operands, f32 accumulate.
    x_bf = x_ref[...].astype(jnp.bfloat16)
    y1 = (jnp.dot(x_bf, w3_ref[...], preferred_element_type=jnp.float32)
          + b3_ref[...])                                        # (B, SEQ) f32

    # conv: Conv1d(SEQ, SEQ, kernel=3, padding='same') on y1^T (channels=SEQ,
    # length=batch).  Batch-major equivalent:
    #   conv[b,:] = bias + y1[b-1] @ W0^T + y1[b] @ W1^T + y1[b+1] @ W2^T
    # with zero rows at b=-1 and b=B -> three overlapping windows of a
    # zero-padded scratch (the write at PAD0 is sublane-aligned).
    pad_ref[...] = jnp.zeros_like(pad_ref)
    pad_ref[pl.ds(PAD0, BATCH), :] = y1
    left  = pad_ref[pl.ds(PAD0 - 1, BATCH), :].astype(jnp.bfloat16)
    mid   = pad_ref[pl.ds(PAD0,     BATCH), :].astype(jnp.bfloat16)
    right = pad_ref[pl.ds(PAD0 + 1, BATCH), :].astype(jnp.bfloat16)
    conv = (jnp.dot(left,  cw_ref[0], preferred_element_type=jnp.float32)
            + jnp.dot(mid,   cw_ref[1], preferred_element_type=jnp.float32)
            + jnp.dot(right, cw_ref[2], preferred_element_type=jnp.float32)
            + cb_ref[...])                                      # (B, SEQ) f32

    # l4: ReLU ; l5: Dropout -> identity ; l6: Linear(SEQ -> NUM_OUTPUTS).
    act = jnp.maximum(conv, 0.0).astype(jnp.bfloat16)
    out_ref[...] = (jnp.dot(act, w6_ref[...], preferred_element_type=jnp.float32)
                    + b6_ref[...])


# ----------------------------------------------------------------------------
# Wrapper
# ----------------------------------------------------------------------------
def base_model_forward(last_hidden_state, params, targets=None):
    """last_hidden_state: (B, SEQ, HID) f32 — stand-in for l1(...)['last_hidden_state']."""
    # TODO(synk): self.l1 (pretrained HF encoder) is not translatable to Pallas;
    # its output is taken as the input of this kernel.
    b = last_hidden_state.shape[0]
    x = last_hidden_state.reshape(b, SEQ * HID)      # contiguous reshape: free
    output = pl.pallas_call(
        _fused_forward_kernel,
        out_shape=jax.ShapeDtypeStruct((b, NUM_OUTPUTS), jnp.float32),
        scratch_shapes=[pltpu.VMEM((PAD0 + BATCH + PAD0, SEQ), jnp.float32)],
    )(x, params['w3'], params['b3'], params['conv_w'], params['conv_b'],
      params['w6'], params['b6'])
    loss = None
    if targets is not None:   # nn.MSELoss equivalent (not exercised in main)
        loss = jnp.mean((output.astype(jnp.float32)
                         - targets.astype(jnp.float32)) ** 2)
    return output, loss


# ----------------------------------------------------------------------------
# Deterministic synthetic parameters (shapes follow the module __init__;
# linear/conv weights stored pre-transposed for (batch, features) matmuls)
# ----------------------------------------------------------------------------
def init_params(key):
    ks = jax.random.split(key, 6)

    def uni(k, shape, fan_in):
        s = 1.0 / jnp.sqrt(jnp.float32(fan_in))
        return jax.random.uniform(k, shape, jnp.float32, -s, s)

    # l3: torch Linear(SEQ*768, SEQ)  -> weight stored (in, out), bf16 for the MXU
    w3 = uni(ks[0], (SEQ * HID, SEQ), SEQ * HID).astype(jnp.bfloat16)
    b3 = uni(ks[1], (1, SEQ), SEQ * HID)
    # conv: torch Conv1d(SEQ, SEQ, 3) weight (out, in, 3) -> stored (k, in, out)
    conv_w_torch = uni(ks[2], (SEQ, SEQ, 3), SEQ * 3)
    conv_w = jnp.transpose(conv_w_torch, (2, 1, 0)).astype(jnp.bfloat16)
    conv_b = uni(ks[3], (1, SEQ), SEQ * 3)
    # l6: torch Linear(SEQ, NUM_OUTPUTS) -> stored (in, out), bf16
    w6 = uni(ks[4], (SEQ, NUM_OUTPUTS), SEQ).astype(jnp.bfloat16)
    b6 = uni(ks[5], (1, NUM_OUTPUTS), SEQ)
    return dict(w3=w3, b3=b3, conv_w=conv_w, conv_b=conv_b, w6=w6, b6=b6)


# ----------------------------------------------------------------------------
# Pure-JAX reference (identical bf16 operand casts, f32 accumulation)
# ----------------------------------------------------------------------------
def reference_forward(last_hidden_state, params):
    b = last_hidden_state.shape[0]
    x_bf = last_hidden_state.reshape(b, SEQ * HID).astype(jnp.bfloat16)
    y1 = (jnp.dot(x_bf, params['w3'], preferred_element_type=jnp.float32)
          + params['b3'])
    y1b = y1.astype(jnp.bfloat16)
    zero = jnp.zeros((1, SEQ), jnp.bfloat16)
    left = jnp.concatenate([zero, y1b[:-1]], axis=0)
    right = jnp.concatenate([y1b[1:], zero], axis=0)
    conv = (jnp.dot(left,  params['conv_w'][0], preferred_element_type=jnp.float32)
            + jnp.dot(y1b,   params['conv_w'][1], preferred_element_type=jnp.float32)
            + jnp.dot(right, params['conv_w'][2], preferred_element_type=jnp.float32)
            + params['conv_b'])
    act = jnp.maximum(conv, 0.0).astype(jnp.bfloat16)
    return (jnp.dot(act, params['w6'], preferred_element_type=jnp.float32)
            + params['b6'])


if __name__ == "__main__":
    key = jax.random.PRNGKey(0)
    pkey, dkey = jax.random.split(key)
    params = init_params(pkey)
    # stand-in for output_1['last_hidden_state']:
    last_hidden_state = jax.random.normal(dkey, (BATCH, SEQ, HID), jnp.float32)

    output, loss = base_model_forward(last_hidden_state, params)
    jax.block_until_ready(output)

    assert output.shape == (BATCH, NUM_OUTPUTS)
    assert output.dtype == jnp.float32
    assert loss is None

    ref = reference_forward(last_hidden_state, params)
    max_err = float(jnp.max(jnp.abs(output - ref)))
    assert jnp.allclose(output, ref, atol=2e-3, rtol=2e-3), max_err

    print("KERNEL_OK")
</pallas_src>

<mosaic_0001>
module attributes {stable_mosaic.version = 11 : i64} {
  func.func @_fused_forward_kernel(%arg0: memref<8x6144xf32, #tpu.memory_space<vmem>>, %arg1: memref<6144x8xbf16, #tpu.memory_space<vmem>>, %arg2: memref<1x8xf32, #tpu.memory_space<vmem>>, %arg3: memref<3x8x8xbf16, #tpu.memory_space<vmem>>, %arg4: memref<1x8xf32, #tpu.memory_space<vmem>>, %arg5: memref<8x16xbf16, #tpu.memory_space<vmem>>, %arg6: memref<1x16xf32, #tpu.memory_space<vmem>>, %arg7: memref<8x16xf32, #tpu.memory_space<vmem>>, %arg8: memref<24x8xf32, #tpu.memory_space<vmem>>) attributes {dimension_semantics = [], scalar_prefetch = 0 : i64, scratch_operands = 1 : i64, tpu.core_type = #tpu.core_type<tc>} {
    %c0 = arith.constant 0 : index
    %c0_0 = arith.constant 0 : index
    %0 = vector.load %arg0[%c0, %c0_0] : memref<8x6144xf32, #tpu.memory_space<vmem>>, vector<8x6144xf32>
    %1 = arith.truncf %0 : vector<8x6144xf32> to vector<8x6144xbf16>
    %c0_1 = arith.constant 0 : index
    %c0_2 = arith.constant 0 : index
    %2 = vector.load %arg1[%c0_1, %c0_2] : memref<6144x8xbf16, #tpu.memory_space<vmem>>, vector<6144x8xbf16>
    %cst = arith.constant dense<0.000000e+00> : vector<8x8xf32>
    %3 = tpu.matmul %1, %2, %cst {dimension_numbers = #tpu.dot_dimension_numbers<[1], [0], [0], [1], [0, 0, 1, 1], [], []>} : vector<8x6144xbf16>, vector<6144x8xbf16>, vector<8x8xf32> -> vector<8x8xf32>
    %c0_3 = arith.constant 0 : index
    %c0_4 = arith.constant 0 : index
    %4 = vector.load %arg2[%c0_3, %c0_4] : memref<1x8xf32, #tpu.memory_space<vmem>>, vector<1x8xf32>
    %5 = vector.broadcast %4 : vector<1x8xf32> to vector<8x8xf32>
    %6 = arith.addf %3, %5 : vector<8x8xf32>
    %cst_5 = arith.constant 0.000000e+00 : f32
    %7 = vector.broadcast %cst_5 : f32 to vector<24x8xf32>
    %c0_6 = arith.constant 0 : index
    %c0_7 = arith.constant 0 : index
    %8 = vector.load %arg8[%c0_6, %c0_7] : memref<24x8xf32, #tpu.memory_space<vmem>>, vector<24x8xf32>
    tpu.vector_store %arg8[%c0_6, %c0_7], %7 {strides = array<i32>} : memref<24x8xf32, #tpu.memory_space<vmem>>, vector<24x8xf32>,
    %c8 = arith.constant 8 : index
    %c0_8 = arith.constant 0 : index
    %9 = vector.load %arg8[%c8, %c0_8] : memref<24x8xf32, #tpu.memory_space<vmem>>, vector<8x8xf32>
    tpu.vector_store %arg8[%c8, %c0_8], %6 {strides = array<i32>} : memref<24x8xf32, #tpu.memory_space<vmem>>, vector<8x8xf32>,
    %c7 = arith.constant 7 : index
    %c0_9 = arith.constant 0 : index
    %10 = vector.load %arg8[%c7, %c0_9] : memref<24x8xf32, #tpu.memory_space<vmem>>, vector<8x8xf32>
    %11 = arith.truncf %10 : vector<8x8xf32> to vector<8x8xbf16>
    %c8_10 = arith.constant 8 : index
    %c0_11 = arith.constant 0 : index
    %12 = vector.load %arg8[%c8_10, %c0_11] : memref<24x8xf32, #tpu.memory_space<vmem>>, vector<8x8xf32>
    %13 = arith.truncf %12 : vector<8x8xf32> to vector<8x8xbf16>
    %c9 = arith.constant 9 : index
    %c0_12 = arith.constant 0 : index
    %14 = vector.load %arg8[%c9, %c0_12] : memref<24x8xf32, #tpu.memory_space<vmem>>, vector<8x8xf32>
    %15 = arith.truncf %14 : vector<8x8xf32> to vector<8x8xbf16>
    %c0_13 = arith.constant 0 : index
    %c0_14 = arith.constant 0 : index
    %c0_15 = arith.constant 0 : index
    %16 = vector.load %arg3[%c0_13, %c0_14, %c0_15] : memref<3x8x8xbf16, #tpu.memory_space<vmem>>, vector<1x8x8xbf16>
    %17 = vector.shape_cast %16 : vector<1x8x8xbf16> to vector<8x8xbf16>
    %cst_16 = arith.constant dense<0.000000e+00> : vector<8x8xf32>
    %18 = tpu.matmul %11, %17, %cst_16 {dimension_numbers = #tpu.dot_dimension_numbers<[1], [0], [0], [1], [0, 0, 1, 1], [], []>} : vector<8x8xbf16>, vector<8x8xbf16>, vector<8x8xf32> -> vector<8x8xf32>
    %c1 = arith.constant 1 : index
    %c0_17 = arith.constant 0 : index
    %c0_18 = arith.constant 0 : index
    %19 = vector.load %arg3[%c1, %c0_17, %c0_18] : memref<3x8x8xbf16, #tpu.memory_space<vmem>>, vector<1x8x8xbf16>
    %20 = vector.shape_cast %19 : vector<1x8x8xbf16> to vector<8x8xbf16>
    %cst_19 = arith.constant dense<0.000000e+00> : vector<8x8xf32>
    %21 = tpu.matmul %13, %20, %cst_19 {dimension_numbers = #tpu.dot_dimension_numbers<[1], [0], [0], [1], [0, 0, 1, 1], [], []>} : vector<8x8xbf16>, vector<8x8xbf16>, vector<8x8xf32> -> vector<8x8xf32>
    %22 = arith.addf %18, %21 : vector<8x8xf32>
    %c2 = arith.constant 2 : index
    %c0_20 = arith.constant 0 : index
    %c0_21 = arith.constant 0 : index
    %23 = vector.load %arg3[%c2, %c0_20, %c0_21] : memref<3x8x8xbf16, #tpu.memory_space<vmem>>, vector<1x8x8xbf16>
    %24 = vector.shape_cast %23 : vector<1x8x8xbf16> to vector<8x8xbf16>
    %cst_22 = arith.constant dense<0.000000e+00> : vector<8x8xf32>
    %25 = tpu.matmul %15, %24, %cst_22 {dimension_numbers = #tpu.dot_dimension_numbers<[1], [0], [0], [1], [0, 0, 1, 1], [], []>} : vector<8x8xbf16>, vector<8x8xbf16>, vector<8x8xf32> -> vector<8x8xf32>
    %26 = arith.addf %22, %25 : vector<8x8xf32>
    %c0_23 = arith.constant 0 : index
    %c0_24 = arith.constant 0 : index
    %27 = vector.load %arg4[%c0_23, %c0_24] : memref<1x8xf32, #tpu.memory_space<vmem>>, vector<1x8xf32>
    %28 = vector.broadcast %27 : vector<1x8xf32> to vector<8x8xf32>
    %29 = arith.addf %26, %28 : vector<8x8xf32>
    %cst_25 = arith.constant 0.000000e+00 : f32
    %30 = vector.broadcast %cst_25 : f32 to vector<8x8xf32>
    %31 = arith.maximumf %29, %30 : vector<8x8xf32>
    %32 = arith.truncf %31 : vector<8x8xf32> to vector<8x8xbf16>
    %c0_26 = arith.constant 0 : index
    %c0_27 = arith.constant 0 : index
    %33 = vector.load %arg5[%c0_26, %c0_27] : memref<8x16xbf16, #tpu.memory_space<vmem>>, vector<8x16xbf16>
    %cst_28 = arith.constant dense<0.000000e+00> : vector<8x16xf32>
    %34 = tpu.matmul %32, %33, %cst_28 {dimension_numbers = #tpu.dot_dimension_numbers<[1], [0], [0], [1], [0, 0, 1, 1], [], []>} : vector<8x8xbf16>, vector<8x16xbf16>, vector<8x16xf32> -> vector<8x16xf32>
    %c0_29 = arith.constant 0 : index
    %c0_30 = arith.constant 0 : index
    %35 = vector.load %arg6[%c0_29, %c0_30] : memref<1x16xf32, #tpu.memory_space<vmem>>, vector<1x16xf32>
    %36 = vector.broadcast %35 : vector<1x16xf32> to vector<8x16xf32>
    %37 = arith.addf %34, %36 : vector<8x16xf32>
    %c0_31 = arith.constant 0 : index
    %c0_32 = arith.constant 0 : index
    %38 = vector.load %arg7[%c0_31, %c0_32] : memref<8x16xf32, #tpu.memory_space<vmem>>, vector<8x16xf32>
    tpu.vector_store %arg7[%c0_31, %c0_32], %37 {strides = array<i32>} : memref<8x16xf32, #tpu.memory_space<vmem>>, vector<8x16xf32>,
    return
  }
}

</mosaic_0001>

<llo_original>
// kernel: tpu_custom_call.1
$region0: #{tpu_custom_call.1}
  #allocation0 [shape = 'u32[]', space=smem, size = 0x4, offset = 0x4, fixed_abs, tag = 'smem constant byte address 0x4 - core index']
  #allocation1 [shape = 'u32[144,128]{1,0:T(1,128)}', space=vmem, size = 0x12000, scoped, tag = 'internal scratch']
  #allocation2 [shape = 'f32[24,8]{1,0:T(8,128)}', space=vmem, size = 0x3000, scoped, tag = 'scratch operand']
  %s0 = inlined_call_operand.vmem [shape: f32[8,6144], index: 0, kind: input, shape index: {}]
  %s1 = inlined_call_operand.vmem [shape: bf16[6144,8], index: 1, kind: input, shape index: {}]
  %s2 = inlined_call_operand.vmem [shape: f32[1,8], index: 2, kind: input, shape index: {}]
  %s3 = inlined_call_operand.vmem [shape: bf16[3,8,8], index: 3, kind: input, shape index: {}]
  %s4 = inlined_call_operand.vmem [shape: f32[1,8], index: 4, kind: input, shape index: {}]
  %s5 = inlined_call_operand.vmem [shape: bf16[8,16], index: 5, kind: input, shape index: {}]
  %s6 = inlined_call_operand.vmem [shape: f32[1,16], index: 6, kind: input, shape index: {}]
  %s7 = inlined_call_operand.hbm [shape: f32[8,16], index: 7, kind: output, shape index: {}]
  %s8 = sld [smem:[#allocation0]]
  $region38: #{tpu_custom_call.1} parent=0
    _
  %s10 = ssub.s32 1, %s8
  %s11 = scalar_select 0, %s10, %s8
  $region1: #{tpu_custom_call.1} parent=0
    #allocation3 [shape = 'u8[4096]{0}', space=vmem, size = 0x1000, scoped, tag = 'output window, operand 0, single buffered']
    #allocation4 [shape = 's32[1]{0}', space=sflag, size = 0x4, scoped, tag = 'scoped memory for tpu_custom_call.1']
    %12 = vsyncpa [#allocation4], 0
    // Predicated region
    $region2: #{tpu_custom_call.1} parent=1 // pred_check
      _
    $region3: #{tpu_custom_call.1} parent=1 // pred_check_branch
      %14 = sbr.rel (0) target = $region5
    $region4: #{tpu_custom_call.1} parent=1 // pred_region
      _
    $region5: #{tpu_custom_call.1} parent=1 // pred_fallthru
      _
    // Predicated region
    $region6: #{tpu_custom_call.1} parent=1 // pred_check
      _
    $region7: #{tpu_custom_call.1} parent=1 // pred_check_branch
      %16 = sbr.rel (0) target = $region9
    $region8: #{tpu_custom_call.1} parent=1 // pred_region
      _
    $region9: #{tpu_custom_call.1} parent=1 // pred_fallthru
      _
    // Predicated region
    $region10: #{tpu_custom_call.1} parent=1 // pred_check
      _
    $region11: #{tpu_custom_call.1} parent=1 // pred_check_branch
      %18 = sbr.rel (0) target = $region13
    $region12: #{tpu_custom_call.1} parent=1 // pred_region
      _
    $region13: #{tpu_custom_call.1} parent=1 // pred_fallthru
      _
    // Predicated region
    $region14: #{tpu_custom_call.1} parent=1 // pred_check
      _
    $region15: #{tpu_custom_call.1} parent=1 // pred_check_branch
      %20 = sbr.rel (0) target = $region17
    $region16: #{tpu_custom_call.1} parent=1 // pred_region
      _
    $region17: #{tpu_custom_call.1} parent=1 // pred_fallthru
      _
    // Predicated region
    $region18: #{tpu_custom_call.1} parent=1 // pred_check
      _
    $region19: #{tpu_custom_call.1} parent=1 // pred_check_branch
      %22 = sbr.rel (0) target = $region21
    $region20: #{tpu_custom_call.1} parent=1 // pred_region
      _
    $region21: #{tpu_custom_call.1} parent=1 // pred_fallthru
      _
    // Predicated region
    $region22: #{tpu_custom_call.1} parent=1 // pred_check
      _
    $region23: #{tpu_custom_call.1} parent=1 // pred_check_branch
      %24 = sbr.rel (0) target = $region25
    $region24: #{tpu_custom_call.1} parent=1 // pred_region
      _
    $region25: #{tpu_custom_call.1} parent=1 // pred_fallthru
      _
    // Predicated region
    $region26: #{tpu_custom_call.1} parent=1 // pred_check
      _
    $region27: #{tpu_custom_call.1} parent=1 // pred_check_branch
      %26 = sbr.rel (0) target = $region29
    $region28: #{tpu_custom_call.1} parent=1 // pred_region
      _
    $region29: #{tpu_custom_call.1} parent=1 // pred_fallthru
      _
    %v28 = vld [vmem:[%s0] sm:$0xff]
    %v29 = vld [vmem:[%s0 + $0x8] sm:$0xff]
    %v30 = vld [vmem:[%s0 + $0x10] sm:$0xff]
    %v31 = vld [vmem:[%s0 + $0x18] sm:$0xff]
    %v32 = vld [vmem:[%s0 + $0x20] sm:$0xff]
    %v33 = vld [vmem:[%s0 + $0x28] sm:$0xff]
    %v34 = vld [vmem:[%s0 + $0x30] sm:$0xff]
    %v35 = vld [vmem:[%s0 + $0x38] sm:$0xff]
    %v36 = vld [vmem:[%s0 + $0x40] sm:$0xff]
    %v37 = vld [vmem:[%s0 + $0x48] sm:$0xff]
    %v38 = vld [vmem:[%s0 + $0x50] sm:$0xff]
    %v39 = vld [vmem:[%s0 + $0x58] sm:$0xff]
    %v40 = vld [vmem:[%s0 + $0x60] sm:$0xff]
    %v41 = vld [vmem:[%s0 + $0x68] sm:$0xff]
    %v42 = vld [vmem:[%s0 + $0x70] sm:$0xff]
    %v43 = vld [vmem:[%s0 + $0x78] sm:$0xff]
    %v44 = vld [vmem:[%s0 + $0x80] sm:$0xff]
    %v45 = vld [vmem:[%s0 + $0x88] sm:$0xff]
    %v46 = vld [vmem:[%s0 + $0x90] sm:$0xff]
    %v47 = vld [vmem:[%s0 + $0x98] sm:$0xff]
    %v48 = vld [vmem:[%s0 + $0xa0] sm:$0xff]
    %v49 = vld [vmem:[%s0 + $0xa8] sm:$0xff]
    %v50 = vld [vmem:[%s0 + $0xb0] sm:$0xff]
    %v51 = vld [vmem:[%s0 + $0xb8] sm:$0xff]
    %v52 = vld [vmem:[%s0 + $0xc0] sm:$0xff]
    %v53 = vld [vmem:[%s0 + $0xc8] sm:$0xff]
    %v54 = vld [vmem:[%s0 + $0xd0] sm:$0xff]
    %v55 = vld [vmem:[%s0 + $0xd8] sm:$0xff]
    %v56 = vld [vmem:[%s0 + $0xe0] sm:$0xff]
    %v57 = vld [vmem:[%s0 + $0xe8] sm:$0xff]
    %v58 = vld [vmem:[%s0 + $0xf0] sm:$0xff]
    %v59 = vld [vmem:[%s0 + $0xf8] sm:$0xff]
    %v60 = vld [vmem:[%s0 + $0x100] sm:$0xff]
    %v61 = vld [vmem:[%s0 + $0x108] sm:$0xff]
    %v62 = vld [vmem:[%s0 + $0x110] sm:$0xff]
    %v63 = vld [vmem:[%s0 + $0x118] sm:$0xff]
    %v64 = vld [vmem:[%s0 + $0x120] sm:$0xff]
    %v65 = vld [vmem:[%s0 + $0x128] sm:$0xff]
    %v66 = vld [vmem:[%s0 + $0x130] sm:$0xff]
    %v67 = vld [vmem:[%s0 + $0x138] sm:$0xff]
    %v68 = vld [vmem:[%s0 + $0x140] sm:$0xff]
    %v69 = vld [vmem:[%s0 + $0x148] sm:$0xff]
    %v70 = vld [vmem:[%s0 + $0x150] sm:$0xff]
    %v71 = vld [vmem:[%s0 + $0x158] sm:$0xff]
    %v72 = vld [vmem:[%s0 + $0x160] sm:$0xff]
    %v73 = vld [vmem:[%s0 + $0x168] sm:$0xff]
    %v74 = vld [vmem:[%s0 + $0x170] sm:$0xff]
    %v75 = vld [vmem:[%s0 + $0x178] sm:$0xff]
    %v76 = vpack.c.bf16 %v28, %v28
    %v77 = vpack.c.bf16 %v29, %v29
    %v78 = vpack.c.bf16 %v30, %v30
    %v79 = vpack.c.bf16 %v31, %v31
    %v80 = vpack.c.bf16 %v32, %v32
    %v81 = vpack.c.bf16 %v33, %v33
    %v82 = vpack.c.bf16 %v34, %v34
    %v83 = vpack.c.bf16 %v35, %v35
    %v84 = vpack.c.bf16 %v36, %v36
    %v85 = vpack.c.bf16 %v37, %v37
    %v86 = vpack.c.bf16 %v38, %v38
    %v87 = vpack.c.bf16 %v39, %v39
    %v88 = vpack.c.bf16 %v40, %v40
    %v89 = vpack.c.bf16 %v41, %v41
    %v90 = vpack.c.bf16 %v42, %v42
    %v91 = vpack.c.bf16 %v43, %v43
    %v92 = vpack.c.bf16 %v44, %v44
    %v93 = vpack.c.bf16 %v45, %v45
    %v94 = vpack.c.bf16 %v46, %v46
    %v95 = vpack.c.bf16 %v47, %v47
    %v96 = vpack.c.bf16 %v48, %v48
    %v97 = vpack.c.bf16 %v49, %v49
    %v98 = vpack.c.bf16 %v50, %v50
    %v99 = vpack.c.bf16 %v51, %v51
    %v100 = vpack.c.bf16 %v52, %v52
    %v101 = vpack.c.bf16 %v53, %v53
    %v102 = vpack.c.bf16 %v54, %v54
    %v103 = vpack.c.bf16 %v55, %v55
    %v104 = vpack.c.bf16 %v56, %v56
    %v105 = vpack.c.bf16 %v57, %v57
    %v106 = vpack.c.bf16 %v58, %v58
    %v107 = vpack.c.bf16 %v59, %v59
    %v108 = vpack.c.bf16 %v60, %v60
    %v109 = vpack.c.bf16 %v61, %v61
    %v110 = vpack.c.bf16 %v62, %v62
    %v111 = vpack.c.bf16 %v63, %v63
    %v112 = vpack.c.bf16 %v64, %v64
    %v113 = vpack.c.bf16 %v65, %v65
    %v114 = vpack.c.bf16 %v66, %v66
    %v115 = vpack.c.bf16 %v67, %v67
    %v116 = vpack.c.bf16 %v68, %v68
    %v117 = vpack.c.bf16 %v69, %v69
    %v118 = vpack.c.bf16 %v70, %v70
    %v119 = vpack.c.bf16 %v71, %v71
    %v120 = vpack.c.bf16 %v72, %v72
    %v121 = vpack.c.bf16 %v73, %v73
    %v122 = vpack.c.bf16 %v74, %v74
    %v123 = vpack.c.bf16 %v75, %v75
    %v124 = vld [vmem:[%s1] sm:$0xf]
    %v125 = vld [vmem:[%s1 + $0x4] sm:$0xf]
    %v126 = vld [vmem:[%s1 + $0x8] sm:$0xf]
    %v127 = vld [vmem:[%s1 + $0xc] sm:$0xf]
    %v128 = vld [vmem:[%s1 + $0x10] sm:$0xf]
    %v129 = vld [vmem:[%s1 + $0x14] sm:$0xf]
    %v130 = vld [vmem:[%s1 + $0x18] sm:$0xf]
    %v131 = vld [vmem:[%s1 + $0x1c] sm:$0xf]
    %v132 = vld [vmem:[%s1 + $0x20] sm:$0xf]
    %v133 = vld [vmem:[%s1 + $0x24] sm:$0xf]
    %v134 = vld [vmem:[%s1 + $0x28] sm:$0xf]
    %v135 = vld [vmem:[%s1 + $0x2c] sm:$0xf]
    %v136 = vld [vmem:[%s1 + $0x30] sm:$0xf]
    %v137 = vld [vmem:[%s1 + $0x34] sm:$0xf]
    %v138 = vld [vmem:[%s1 + $0x38] sm:$0xf]
    %v139 = vld [vmem:[%s1 + $0x3c] sm:$0xf]
    %v140 = vld [vmem:[%s1 + $0x40] sm:$0xf]
    %v141 = vld [vmem:[%s1 + $0x44] sm:$0xf]
    %v142 = vld [vmem:[%s1 + $0x48] sm:$0xf]
    %v143 = vld [vmem:[%s1 + $0x4c] sm:$0xf]
    %v144 = vld [vmem:[%s1 + $0x50] sm:$0xf]
    %v145 = vld [vmem:[%s1 + $0x54] sm:$0xf]
    %v146 = vld [vmem:[%s1 + $0x58] sm:$0xf]
    %v147 = vld [vmem:[%s1 + $0x5c] sm:$0xf]
    %v148 = vld [vmem:[%s1 + $0x60] sm:$0xf]
    %v149 = vld [vmem:[%s1 + $0x64] sm:$0xf]
    %v150 = vld [vmem:[%s1 + $0x68] sm:$0xf]
    %v151 = vld [vmem:[%s1 + $0x6c] sm:$0xf]
    %v152 = vld [vmem:[%s1 + $0x70] sm:$0xf]
    %v153 = vld [vmem:[%s1 + $0x74] sm:$0xf]
    %v154 = vld [vmem:[%s1 + $0x78] sm:$0xf]
    %v155 = vld [vmem:[%s1 + $0x7c] sm:$0xf]
    %v156 = vld [vmem:[%s1 + $0x80] sm:$0xf]
    %v157 = vld [vmem:[%s1 + $0x84] sm:$0xf]
    %v158 = vld [vmem:[%s1 + $0x88] sm:$0xf]
    %v159 = vld [vmem:[%s1 + $0x8c] sm:$0xf]
    %v160 = vld [vmem:[%s1 + $0x90] sm:$0xf]
    %v161 = vld [vmem:[%s1 + $0x94] sm:$0xf]
    %v162 = vld [vmem:[%s1 + $0x98] sm:$0xf]
    %v163 = vld [vmem:[%s1 + $0x9c] sm:$0xf]
    %v164 = vld [vmem:[%s1 + $0xa0] sm:$0xf]
    %v165 = vld [vmem:[%s1 + $0xa4] sm:$0xf]
    %v166 = vld [vmem:[%s1 + $0xa8] sm:$0xf]
    %v167 = vld [vmem:[%s1 + $0xac] sm:$0xf]
    %v168 = vld [vmem:[%s1 + $0xb0] sm:$0xf]
    %v169 = vld [vmem:[%s1 + $0xb4] sm:$0xf]
    %v170 = vld [vmem:[%s1 + $0xb8] sm:$0xf]
    %v171 = vld [vmem:[%s1 + $0xbc] sm:$0xf]
    %v172 = vld [vmem:[%s1 + $0xc0] sm:$0xf]
    %v173 = vld [vmem:[%s1 + $0xc4] sm:$0xf]
    %v174 = vld [vmem:[%s1 + $0xc8] sm:$0xf]
    %v175 = vld [vmem:[%s1 + $0xcc] sm:$0xf]
    %v176 = vld [vmem:[%s1 + $0xd0] sm:$0xf]
    %v177 = vld [vmem:[%s1 + $0xd4] sm:$0xf]
    %v178 = vld [vmem:[%s1 + $0xd8] sm:$0xf]
    %v179 = vld [vmem:[%s1 + $0xdc] sm:$0xf]
    %v180 = vld [vmem:[%s1 + $0xe0] sm:$0xf]
    %v181 = vld [vmem:[%s1 + $0xe4] sm:$0xf]
    %v182 = vld [vmem:[%s1 + $0xe8] sm:$0xf]
    %v183 = vld [vmem:[%s1 + $0xec] sm:$0xf]
    %v184 = vld [vmem:[%s1 + $0xf0] sm:$0xf]
    %v185 = vld [vmem:[%s1 + $0xf4] sm:$0xf]
    %v186 = vld [vmem:[%s1 + $0xf8] sm:$0xf]
    %v187 = vld [vmem:[%s1 + $0xfc] sm:$0xf]
    %v188 = vld [vmem:[%s1 + $0x100] sm:$0xf]
    %v189 = vld [vmem:[%s1 + $0x104] sm:$0xf]
    %v190 = vld [vmem:[%s1 + $0x108] sm:$0xf]
    %v191 = vld [vmem:[%s1 + $0x10c] sm:$0xf]
    %v192 = vld [vmem:[%s1 + $0x110] sm:$0xf]
    %v193 = vld [vmem:[%s1 + $0x114] sm:$0xf]
    %v194 = vld [vmem:[%s1 + $0x118] sm:$0xf]
    %v195 = vld [vmem:[%s1 + $0x11c] sm:$0xf]
    %v196 = vld [vmem:[%s1 + $0x120] sm:$0xf]
    %v197 = vld [vmem:[%s1 + $0x124] sm:$0xf]
    %v198 = vld [vmem:[%s1 + $0x128] sm:$0xf]
    %v199 = vld [vmem:[%s1 + $0x12c] sm:$0xf]
    %v200 = vld [vmem:[%s1 + $0x130] sm:$0xf]
    %v201 = vld [vmem:[%s1 + $0x134] sm:$0xf]
    %v202 = vld [vmem:[%s1 + $0x138] sm:$0xf]
    %v203 = vld [vmem:[%s1 + $0x13c] sm:$0xf]
    %v204 = vld [vmem:[%s1 + $0x140] sm:$0xf]
    %v205 = vld [vmem:[%s1 + $0x144] sm:$0xf]
    %v206 = vld [vmem:[%s1 + $0x148] sm:$0xf]
    %v207 = vld [vmem:[%s1 + $0x14c] sm:$0xf]
    %v208 = vld [vmem:[%s1 + $0x150] sm:$0xf]
    %v209 = vld [vmem:[%s1 + $0x154] sm:$0xf]
    %v210 = vld [vmem:[%s1 + $0x158] sm:$0xf]
    %v211 = vld [vmem:[%s1 + $0x15c] sm:$0xf]
    %v212 = vld [vmem:[%s1 + $0x160] sm:$0xf]
    %v213 = vld [vmem:[%s1 + $0x164] sm:$0xf]
    %v214 = vld [vmem:[%s1 + $0x168] sm:$0xf]
    %v215 = vld [vmem:[%s1 + $0x16c] sm:$0xf]
    %v216 = vld [vmem:[%s1 + $0x170] sm:$0xf]
    %v217 = vld [vmem:[%s1 + $0x174] sm:$0xf]
    %v218 = vld [vmem:[%s1 + $0x178] sm:$0xf]
    %v219 = vld [vmem:[%s1 + $0x17c] sm:$0xf]
    %v220 = vld [vmem:[%s1 + $0x180] sm:$0xf]
    %v221 = vld [vmem:[%s1 + $0x184] sm:$0xf]
    %v222 = vld [vmem:[%s1 + $0x188] sm:$0xf]
    %v223 = vld [vmem:[%s1 + $0x18c] sm:$0xf]
    %v224 = vld [vmem:[%s1 + $0x190] sm:$0xf]
    %v225 = vld [vmem:[%s1 + $0x194] sm:$0xf]
    %v226 = vld [vmem:[%s1 + $0x198] sm:$0xf]
    %v227 = vld [vmem:[%s1 + $0x19c] sm:$0xf]
    %v228 = vld [vmem:[%s1 + $0x1a0] sm:$0xf]
    %v229 = vld [vmem:[%s1 + $0x1a4] sm:$0xf]
    %v230 = vld [vmem:[%s1 + $0x1a8] sm:$0xf]
    %v231 = vld [vmem:[%s1 + $0x1ac] sm:$0xf]
    %v232 = vld [vmem:[%s1 + $0x1b0] sm:$0xf]
    %v233 = vld [vmem:[%s1 + $0x1b4] sm:$0xf]
    %v234 = vld [vmem:[%s1 + $0x1b8] sm:$0xf]
    %v235 = vld [vmem:[%s1 + $0x1bc] sm:$0xf]
    %v236 = vld [vmem:[%s1 + $0x1c0] sm:$0xf]
    %v237 = vld [vmem:[%s1 + $0x1c4] sm:$0xf]
    %v238 = vld [vmem:[%s1 + $0x1c8] sm:$0xf]
    %v239 = vld [vmem:[%s1 + $0x1cc] sm:$0xf]
    %v240 = vld [vmem:[%s1 + $0x1d0] sm:$0xf]
    %v241 = vld [vmem:[%s1 + $0x1d4] sm:$0xf]
    %v242 = vld [vmem:[%s1 + $0x1d8] sm:$0xf]
    %v243 = vld [vmem:[%s1 + $0x1dc] sm:$0xf]
    %v244 = vld [vmem:[%s1 + $0x1e0] sm:$0xf]
    %v245 = vld [vmem:[%s1 + $0x1e4] sm:$0xf]
    %v246 = vld [vmem:[%s1 + $0x1e8] sm:$0xf]
    %v247 = vld [vmem:[%s1 + $0x1ec] sm:$0xf]
    %v248 = vld [vmem:[%s1 + $0x1f0] sm:$0xf]
    %v249 = vld [vmem:[%s1 + $0x1f4] sm:$0xf]
    %v250 = vld [vmem:[%s1 + $0x1f8] sm:$0xf]
    %v251 = vld [vmem:[%s1 + $0x1fc] sm:$0xf]
    %v252 = vld [vmem:[%s1 + $0x200] sm:$0xf]
    %v253 = vld [vmem:[%s1 + $0x204] sm:$0xf]
    %v254 = vld [vmem:[%s1 + $0x208] sm:$0xf]
    %v255 = vld [vmem:[%s1 + $0x20c] sm:$0xf]
    %v256 = vld [vmem:[%s1 + $0x210] sm:$0xf]
    %v257 = vld [vmem:[%s1 + $0x214] sm:$0xf]
    %v258 = vld [vmem:[%s1 + $0x218] sm:$0xf]
    %v259 = vld [vmem:[%s1 + $0x21c] sm:$0xf]
    %v260 = vld [vmem:[%s1 + $0x220] sm:$0xf]
    %v261 = vld [vmem:[%s1 + $0x224] sm:$0xf]
    %v262 = vld [vmem:[%s1 + $0x228] sm:$0xf]
    %v263 = vld [vmem:[%s1 + $0x22c] sm:$0xf]
    %v264 = vld [vmem:[%s1 + $0x230] sm:$0xf]
    %v265 = vld [vmem:[%s1 + $0x234] sm:$0xf]
    %v266 = vld [vmem:[%s1 + $0x238] sm:$0xf]
    %v267 = vld [vmem:[%s1 + $0x23c] sm:$0xf]
    %v268 = vld [vmem:[%s1 + $0x240] sm:$0xf]
    %v269 = vld [vmem:[%s1 + $0x244] sm:$0xf]
    %v270 = vld [vmem:[%s1 + $0x248] sm:$0xf]
    %v271 = vld [vmem:[%s1 + $0x24c] sm:$0xf]
    %v272 = vld [vmem:[%s1 + $0x250] sm:$0xf]
    %v273 = vld [vmem:[%s1 + $0x254] sm:$0xf]
    %v274 = vld [vmem:[%s1 + $0x258] sm:$0xf]
    %v275 = vld [vmem:[%s1 + $0x25c] sm:$0xf]
    %v276 = vld [vmem:[%s1 + $0x260] sm:$0xf]
    %v277 = vld [vmem:[%s1 + $0x264] sm:$0xf]
    %v278 = vld [vmem:[%s1 + $0x268] sm:$0xf]
    %v279 = vld [vmem:[%s1 + $0x26c] sm:$0xf]
    %v280 = vld [vmem:[%s1 + $0x270] sm:$0xf]
    %v281 = vld [vmem:[%s1 + $0x274] sm:$0xf]
    %v282 = vld [vmem:[%s1 + $0x278] sm:$0xf]
    %v283 = vld [vmem:[%s1 + $0x27c] sm:$0xf]
    %v284 = vld [vmem:[%s1 + $0x280] sm:$0xf]
    %v285 = vld [vmem:[%s1 + $0x284] sm:$0xf]
    %v286 = vld [vmem:[%s1 + $0x288] sm:$0xf]
    %v287 = vld [vmem:[%s1 + $0x28c] sm:$0xf]
    %v288 = vld [vmem:[%s1 + $0x290] sm:$0xf]
    %v289 = vld [vmem:[%s1 + $0x294] sm:$0xf]
    %v290 = vld [vmem:[%s1 + $0x298] sm:$0xf]
    %v291 = vld [vmem:[%s1 + $0x29c] sm:$0xf]
    %v292 = vld [vmem:[%s1 + $0x2a0] sm:$0xf]
    %v293 = vld [vmem:[%s1 + $0x2a4] sm:$0xf]
    %v294 = vld [vmem:[%s1 + $0x2a8] sm:$0xf]
    %v295 = vld [vmem:[%s1 + $0x2ac] sm:$0xf]
    %v296 = vld [vmem:[%s1 + $0x2b0] sm:$0xf]
    %v297 = vld [vmem:[%s1 + $0x2b4] sm:$0xf]
    %v298 = vld [vmem:[%s1 + $0x2b8] sm:$0xf]
    %v299 = vld [vmem:[%s1 + $0x2bc] sm:$0xf]
    %v300 = vld [vmem:[%s1 + $0x2c0] sm:$0xf]
    %v301 = vld [vmem:[%s1 + $0x2c4] sm:$0xf]
    %v302 = vld [vmem:[%s1 + $0x2c8] sm:$0xf]
    %v303 = vld [vmem:[%s1 + $0x2cc] sm:$0xf]
    %v304 = vld [vmem:[%s1 + $0x2d0] sm:$0xf]
    %v305 = vld [vmem:[%s1 + $0x2d4] sm:$0xf]
    %v306 = vld [vmem:[%s1 + $0x2d8] sm:$0xf]
    %v307 = vld [vmem:[%s1 + $0x2dc] sm:$0xf]
    %v308 = vld [vmem:[%s1 + $0x2e0] sm:$0xf]
    %v309 = vld [vmem:[%s1 + $0x2e4] sm:$0xf]
    %v310 = vld [vmem:[%s1 + $0x2e8] sm:$0xf]
    %v311 = vld [vmem:[%s1 + $0x2ec] sm:$0xf]
    %v312 = vld [vmem:[%s1 + $0x2f0] sm:$0xf]
    %v313 = vld [vmem:[%s1 + $0x2f4] sm:$0xf]
    %v314 = vld [vmem:[%s1 + $0x2f8] sm:$0xf]
    %v315 = vld [vmem:[%s1 + $0x2fc] sm:$0xf]
    %v316 = vld [vmem:[%s1 + $0x300] sm:$0xf]
    %v317 = vld [vmem:[%s1 + $0x304] sm:$0xf]
    %v318 = vld [vmem:[%s1 + $0x308] sm:$0xf]
    %v319 = vld [vmem:[%s1 + $0x30c] sm:$0xf]
    %v320 = vld [vmem:[%s1 + $0x310] sm:$0xf]
    %v321 = vld [vmem:[%s1 + $0x314] sm:$0xf]
    %v322 = vld [vmem:[%s1 + $0x318] sm:$0xf]
    %v323 = vld [vmem:[%s1 + $0x31c] sm:$0xf]
    %v324 = vld [vmem:[%s1 + $0x320] sm:$0xf]
    %v325 = vld [vmem:[%s1 + $0x324] sm:$0xf]
    %v326 = vld [vmem:[%s1 + $0x328] sm:$0xf]
    %v327 = vld [vmem:[%s1 + $0x32c] sm:$0xf]
    %v328 = vld [vmem:[%s1 + $0x330] sm:$0xf]
    %v329 = vld [vmem:[%s1 + $0x334] sm:$0xf]
    %v330 = vld [vmem:[%s1 + $0x338] sm:$0xf]
    %v331 = vld [vmem:[%s1 + $0x33c] sm:$0xf]
    %v332 = vld [vmem:[%s1 + $0x340] sm:$0xf]
    %v333 = vld [vmem:[%s1 + $0x344] sm:$0xf]
    %v334 = vld [vmem:[%s1 + $0x348] sm:$0xf]
    %v335 = vld [vmem:[%s1 + $0x34c] sm:$0xf]
    %v336 = vld [vmem:[%s1 + $0x350] sm:$0xf]
    %v337 = vld [vmem:[%s1 + $0x354] sm:$0xf]
    %v338 = vld [vmem:[%s1 + $0x358] sm:$0xf]
    %v339 = vld [vmem:[%s1 + $0x35c] sm:$0xf]
    %v340 = vld [vmem:[%s1 + $0x360] sm:$0xf]
    %v341 = vld [vmem:[%s1 + $0x364] sm:$0xf]
    %v342 = vld [vmem:[%s1 + $0x368] sm:$0xf]
    %v343 = vld [vmem:[%s1 + $0x36c] sm:$0xf]
    %v344 = vld [vmem:[%s1 + $0x370] sm:$0xf]
    %v345 = vld [vmem:[%s1 + $0x374] sm:$0xf]
    %v346 = vld [vmem:[%s1 + $0x378] sm:$0xf]
    %v347 = vld [vmem:[%s1 + $0x37c] sm:$0xf]
    %v348 = vld [vmem:[%s1 + $0x380] sm:$0xf]
    %v349 = vld [vmem:[%s1 + $0x384] sm:$0xf]
    %v350 = vld [vmem:[%s1 + $0x388] sm:$0xf]
    %v351 = vld [vmem:[%s1 + $0x38c] sm:$0xf]
    %v352 = vld [vmem:[%s1 + $0x390] sm:$0xf]
    %v353 = vld [vmem:[%s1 + $0x394] sm:$0xf]
    %v354 = vld [vmem:[%s1 + $0x398] sm:$0xf]
    %v355 = vld [vmem:[%s1 + $0x39c] sm:$0xf]
    %v356 = vld [vmem:[%s1 + $0x3a0] sm:$0xf]
    %v357 = vld [vmem:[%s1 + $0x3a4] sm:$0xf]
    %v358 = vld [vmem:[%s1 + $0x3a8] sm:$0xf]
    %v359 = vld [vmem:[%s1 + $0x3ac] sm:$0xf]
    %v360 = vld [vmem:[%s1 + $0x3b0] sm:$0xf]
    %v361 = vld [vmem:[%s1 + $0x3b4] sm:$0xf]
    %v362 = vld [vmem:[%s1 + $0x3b8] sm:$0xf]
    %v363 = vld [vmem:[%s1 + $0x3bc] sm:$0xf]
    %v364 = vld [vmem:[%s1 + $0x3c0] sm:$0xf]
    %v365 = vld [vmem:[%s1 + $0x3c4] sm:$0xf]
    %v366 = vld [vmem:[%s1 + $0x3c8] sm:$0xf]
    %v367 = vld [vmem:[%s1 + $0x3cc] sm:$0xf]
    %v368 = vld [vmem:[%s1 + $0x3d0] sm:$0xf]
    %v369 = vld [vmem:[%s1 + $0x3d4] sm:$0xf]
    %v370 = vld [vmem:[%s1 + $0x3d8] sm:$0xf]
    %v371 = vld [vmem:[%s1 + $0x3dc] sm:$0xf]
    %v372 = vld [vmem:[%s1 + $0x3e0] sm:$0xf]
    %v373 = vld [vmem:[%s1 + $0x3e4] sm:$0xf]
    %v374 = vld [vmem:[%s1 + $0x3e8] sm:$0xf]
    %v375 = vld [vmem:[%s1 + $0x3ec] sm:$0xf]
    %v376 = vld [vmem:[%s1 + $0x3f0] sm:$0xf]
    %v377 = vld [vmem:[%s1 + $0x3f4] sm:$0xf]
    %v378 = vld [vmem:[%s1 + $0x3f8] sm:$0xf]
    %v379 = vld [vmem:[%s1 + $0x3fc] sm:$0xf]
    %v380 = vld [vmem:[%s1 + $0x400] sm:$0xf]
    %v381 = vld [vmem:[%s1 + $0x404] sm:$0xf]
    %v382 = vld [vmem:[%s1 + $0x408] sm:$0xf]
    %v383 = vld [vmem:[%s1 + $0x40c] sm:$0xf]
    %v384 = vld [vmem:[%s1 + $0x410] sm:$0xf]
    %v385 = vld [vmem:[%s1 + $0x414] sm:$0xf]
    %v386 = vld [vmem:[%s1 + $0x418] sm:$0xf]
    %v387 = vld [vmem:[%s1 + $0x41c] sm:$0xf]
    %v388 = vld [vmem:[%s1 + $0x420] sm:$0xf]
    %v389 = vld [vmem:[%s1 + $0x424] sm:$0xf]
    %v390 = vld [vmem:[%s1 + $0x428] sm:$0xf]
    %v391 = vld [vmem:[%s1 + $0x42c] sm:$0xf]
    %v392 = vld [vmem:[%s1 + $0x430] sm:$0xf]
    %v393 = vld [vmem:[%s1 + $0x434] sm:$0xf]
    %v394 = vld [vmem:[%s1 + $0x438] sm:$0xf]
    %v395 = vld [vmem:[%s1 + $0x43c] sm:$0xf]
    %v396 = vld [vmem:[%s1 + $0x440] sm:$0xf]
    %v397 = vld [vmem:[%s1 + $0x444] sm:$0xf]
    %v398 = vld [vmem:[%s1 + $0x448] sm:$0xf]
    %v399 = vld [vmem:[%s1 + $0x44c] sm:$0xf]
    %v400 = vld [vmem:[%s1 + $0x450] sm:$0xf]
    %v401 = vld [vmem:[%s1 + $0x454] sm:$0xf]
    %v402 = vld [vmem:[%s1 + $0x458] sm:$0xf]
    %v403 = vld [vmem:[%s1 + $0x45c] sm:$0xf]
    %v404 = vld [vmem:[%s1 + $0x460] sm:$0xf]
    %v405 = vld [vmem:[%s1 + $0x464] sm:$0xf]
    %v406 = vld [vmem:[%s1 + $0x468] sm:$0xf]
    %v407 = vld [vmem:[%s1 + $0x46c] sm:$0xf]
    %v408 = vld [vmem:[%s1 + $0x470] sm:$0xf]
    %v409 = vld [vmem:[%s1 + $0x474] sm:$0xf]
    %v410 = vld [vmem:[%s1 + $0x478] sm:$0xf]
    %v411 = vld [vmem:[%s1 + $0x47c] sm:$0xf]
    %v412 = vld [vmem:[%s1 + $0x480] sm:$0xf]
    %v413 = vld [vmem:[%s1 + $0x484] sm:$0xf]
    %v414 = vld [vmem:[%s1 + $0x488] sm:$0xf]
    %v415 = vld [vmem:[%s1 + $0x48c] sm:$0xf]
    %v416 = vld [vmem:[%s1 + $0x490] sm:$0xf]
    %v417 = vld [vmem:[%s1 + $0x494] sm:$0xf]
    %v418 = vld [vmem:[%s1 + $0x498] sm:$0xf]
    %v419 = vld [vmem:[%s1 + $0x49c] sm:$0xf]
    %v420 = vld [vmem:[%s1 + $0x4a0] sm:$0xf]
    %v421 = vld [vmem:[%s1 + $0x4a4] sm:$0xf]
    %v422 = vld [vmem:[%s1 + $0x4a8] sm:$0xf]
    %v423 = vld [vmem:[%s1 + $0x4ac] sm:$0xf]
    %v424 = vld [vmem:[%s1 + $0x4b0] sm:$0xf]
    %v425 = vld [vmem:[%s1 + $0x4b4] sm:$0xf]
    %v426 = vld [vmem:[%s1 + $0x4b8] sm:$0xf]
    %v427 = vld [vmem:[%s1 + $0x4bc] sm:$0xf]
    %v428 = vld [vmem:[%s1 + $0x4c0] sm:$0xf]
    %v429 = vld [vmem:[%s1 + $0x4c4] sm:$0xf]
    %v430 = vld [vmem:[%s1 + $0x4c8] sm:$0xf]
    %v431 = vld [vmem:[%s1 + $0x4cc] sm:$0xf]
    %v432 = vld [vmem:[%s1 + $0x4d0] sm:$0xf]
    %v433 = vld [vmem:[%s1 + $0x4d4] sm:$0xf]
    %v434 = vld [vmem:[%s1 + $0x4d8] sm:$0xf]
    %v435 = vld [vmem:[%s1 + $0x4dc] sm:$0xf]
    %v436 = vld [vmem:[%s1 + $0x4e0] sm:$0xf]
    %v437 = vld [vmem:[%s1 + $0x4e4] sm:$0xf]
    %v438 = vld [vmem:[%s1 + $0x4e8] sm:$0xf]
    %v439 = vld [vmem:[%s1 + $0x4ec] sm:$0xf]
    %v440 = vld [vmem:[%s1 + $0x4f0] sm:$0xf]
    %v441 = vld [vmem:[%s1 + $0x4f4] sm:$0xf]
    %v442 = vld [vmem:[%s1 + $0x4f8] sm:$0xf]
    %v443 = vld [vmem:[%s1 + $0x4fc] sm:$0xf]
    %v444 = vld [vmem:[%s1 + $0x500] sm:$0xf]
    %v445 = vld [vmem:[%s1 + $0x504] sm:$0xf]
    %v446 = vld [vmem:[%s1 + $0x508] sm:$0xf]
    %v447 = vld [vmem:[%s1 + $0x50c] sm:$0xf]
    %v448 = vld [vmem:[%s1 + $0x510] sm:$0xf]
    %v449 = vld [vmem:[%s1 + $0x514] sm:$0xf]
    %v450 = vld [vmem:[%s1 + $0x518] sm:$0xf]
    %v451 = vld [vmem:[%s1 + $0x51c] sm:$0xf]
    %v452 = vld [vmem:[%s1 + $0x520] sm:$0xf]
    %v453 = vld [vmem:[%s1 + $0x524] sm:$0xf]
    %v454 = vld [vmem:[%s1 + $0x528] sm:$0xf]
    %v455 = vld [vmem:[%s1 + $0x52c] sm:$0xf]
    %v456 = vld [vmem:[%s1 + $0x530] sm:$0xf]
    %v457 = vld [vmem:[%s1 + $0x534] sm:$0xf]
    %v458 = vld [vmem:[%s1 + $0x538] sm:$0xf]
    %v459 = vld [vmem:[%s1 + $0x53c] sm:$0xf]
    %v460 = vld [vmem:[%s1 + $0x540] sm:$0xf]
    %v461 = vld [vmem:[%s1 + $0x544] sm:$0xf]
    %v462 = vld [vmem:[%s1 + $0x548] sm:$0xf]
    %v463 = vld [vmem:[%s1 + $0x54c] sm:$0xf]
    %v464 = vld [vmem:[%s1 + $0x550] sm:$0xf]
    %v465 = vld [vmem:[%s1 + $0x554] sm:$0xf]
    %v466 = vld [vmem:[%s1 + $0x558] sm:$0xf]
    %v467 = vld [vmem:[%s1 + $0x55c] sm:$0xf]
    %v468 = vld [vmem:[%s1 + $0x560] sm:$0xf]
    %v469 = vld [vmem:[%s1 + $0x564] sm:$0xf]
    %v470 = vld [vmem:[%s1 + $0x568] sm:$0xf]
    %v471 = vld [vmem:[%s1 + $0x56c] sm:$0xf]
    %v472 = vld [vmem:[%s1 + $0x570] sm:$0xf]
    %v473 = vld [vmem:[%s1 + $0x574] sm:$0xf]
    %v474 = vld [vmem:[%s1 + $0x578] sm:$0xf]
    %v475 = vld [vmem:[%s1 + $0x57c] sm:$0xf]
    %v476 = vld [vmem:[%s1 + $0x580] sm:$0xf]
    %v477 = vld [vmem:[%s1 + $0x584] sm:$0xf]
    %v478 = vld [vmem:[%s1 + $0x588] sm:$0xf]
    %v479 = vld [vmem:[%s1 + $0x58c] sm:$0xf]
    %v480 = vld [vmem:[%s1 + $0x590] sm:$0xf]
    %v481 = vld [vmem:[%s1 + $0x594] sm:$0xf]
    %v482 = vld [vmem:[%s1 + $0x598] sm:$0xf]
    %v483 = vld [vmem:[%s1 + $0x59c] sm:$0xf]
    %v484 = vld [vmem:[%s1 + $0x5a0] sm:$0xf]
    %v485 = vld [vmem:[%s1 + $0x5a4] sm:$0xf]
    %v486 = vld [vmem:[%s1 + $0x5a8] sm:$0xf]
    %v487 = vld [vmem:[%s1 + $0x5ac] sm:$0xf]
    %v488 = vld [vmem:[%s1 + $0x5b0] sm:$0xf]
    %v489 = vld [vmem:[%s1 + $0x5b4] sm:$0xf]
    %v490 = vld [vmem:[%s1 + $0x5b8] sm:$0xf]
    %v491 = vld [vmem:[%s1 + $0x5bc] sm:$0xf]
    %v492 = vld [vmem:[%s1 + $0x5c0] sm:$0xf]
    %v493 = vld [vmem:[%s1 + $0x5c4] sm:$0xf]
    %v494 = vld [vmem:[%s1 + $0x5c8] sm:$0xf]
    %v495 = vld [vmem:[%s1 + $0x5cc] sm:$0xf]
    %v496 = vld [vmem:[%s1 + $0x5d0] sm:$0xf]
    %v497 = vld [vmem:[%s1 + $0x5d4] sm:$0xf]
    %v498 = vld [vmem:[%s1 + $0x5d8] sm:$0xf]
    %v499 = vld [vmem:[%s1 + $0x5dc] sm:$0xf]
    %v500 = vld [vmem:[%s1 + $0x5e0] sm:$0xf]
    %v501 = vld [vmem:[%s1 + $0x5e4] sm:$0xf]
    %v502 = vld [vmem:[%s1 + $0x5e8] sm:$0xf]
    %v503 = vld [vmem:[%s1 + $0x5ec] sm:$0xf]
    %v504 = vld [vmem:[%s1 + $0x5f0] sm:$0xf]
    %v505 = vld [vmem:[%s1 + $0x5f4] sm:$0xf]
    %v506 = vld [vmem:[%s1 + $0x5f8] sm:$0xf]
    %v507 = vld [vmem:[%s1 + $0x5fc] sm:$0xf]
    %v508 = vld [vmem:[%s1 + $0x600] sm:$0xf]
    %v509 = vld [vmem:[%s1 + $0x604] sm:$0xf]
    %v510 = vld [vmem:[%s1 + $0x608] sm:$0xf]
    %v511 = vld [vmem:[%s1 + $0x60c] sm:$0xf]
    %v512 = vld [vmem:[%s1 + $0x610] sm:$0xf]
    %v513 = vld [vmem:[%s1 + $0x614] sm:$0xf]
    %v514 = vld [vmem:[%s1 + $0x618] sm:$0xf]
    %v515 = vld [vmem:[%s1 + $0x61c] sm:$0xf]
    %v516 = vld [vmem:[%s1 + $0x620] sm:$0xf]
    %v517 = vld [vmem:[%s1 + $0x624] sm:$0xf]
    %v518 = vld [vmem:[%s1 + $0x628] sm:$0xf]
    %v519 = vld [vmem:[%s1 + $0x62c] sm:$0xf]
    %v520 = vld [vmem:[%s1 + $0x630] sm:$0xf]
    %v521 = vld [vmem:[%s1 + $0x634] sm:$0xf]
    %v522 = vld [vmem:[%s1 + $0x638] sm:$0xf]
    %v523 = vld [vmem:[%s1 + $0x63c] sm:$0xf]
    %v524 = vld [vmem:[%s1 + $0x640] sm:$0xf]
    %v525 = vld [vmem:[%s1 + $0x644] sm:$0xf]
    %v526 = vld [vmem:[%s1 + $0x648] sm:$0xf]
    %v527 = vld [vmem:[%s1 + $0x64c] sm:$0xf]
    %v528 = vld [vmem:[%s1 + $0x650] sm:$0xf]
    %v529 = vld [vmem:[%s1 + $0x654] sm:$0xf]
    %v530 = vld [vmem:[%s1 + $0x658] sm:$0xf]
    %v531 = vld [vmem:[%s1 + $0x65c] sm:$0xf]
    %v532 = vld [vmem:[%s1 + $0x660] sm:$0xf]
    %v533 = vld [vmem:[%s1 + $0x664] sm:$0xf]
    %v534 = vld [vmem:[%s1 + $0x668] sm:$0xf]
    %v535 = vld [vmem:[%s1 + $0x66c] sm:$0xf]
    %v536 = vld [vmem:[%s1 + $0x670] sm:$0xf]
    %v537 = vld [vmem:[%s1 + $0x674] sm:$0xf]
    %v538 = vld [vmem:[%s1 + $0x678] sm:$0xf]
    %v539 = vld [vmem:[%s1 + $0x67c] sm:$0xf]
    %v540 = vld [vmem:[%s1 + $0x680] sm:$0xf]
    %v541 = vld [vmem:[%s1 + $0x684] sm:$0xf]
    %v542 = vld [vmem:[%s1 + $0x688] sm:$0xf]
    %v543 = vld [vmem:[%s1 + $0x68c] sm:$0xf]
    %v544 = vld [vmem:[%s1 + $0x690] sm:$0xf]
    %v545 = vld [vmem:[%s1 + $0x694] sm:$0xf]
    %v546 = vld [vmem:[%s1 + $0x698] sm:$0xf]
    %v547 = vld [vmem:[%s1 + $0x69c] sm:$0xf]
    %v548 = vld [vmem:[%s1 + $0x6a0] sm:$0xf]
    %v549 = vld [vmem:[%s1 + $0x6a4] sm:$0xf]
    %v550 = vld [vmem:[%s1 + $0x6a8] sm:$0xf]
    %v551 = vld [vmem:[%s1 + $0x6ac] sm:$0xf]
    %v552 = vld [vmem:[%s1 + $0x6b0] sm:$0xf]
    %v553 = vld [vmem:[%s1 + $0x6b4] sm:$0xf]
    %v554 = vld [vmem:[%s1 + $0x6b8] sm:$0xf]
    %v555 = vld [vmem:[%s1 + $0x6bc] sm:$0xf]
    %v556 = vld [vmem:[%s1 + $0x6c0] sm:$0xf]
    %v557 = vld [vmem:[%s1 + $0x6c4] sm:$0xf]
    %v558 = vld [vmem:[%s1 + $0x6c8] sm:$0xf]
    %v559 = vld [vmem:[%s1 + $0x6cc] sm:$0xf]
    %v560 = vld [vmem:[%s1 + $0x6d0] sm:$0xf]
    %v561 = vld [vmem:[%s1 + $0x6d4] sm:$0xf]
    %v562 = vld [vmem:[%s1 + $0x6d8] sm:$0xf]
    %v563 = vld [vmem:[%s1 + $0x6dc] sm:$0xf]
    %v564 = vld [vmem:[%s1 + $0x6e0] sm:$0xf]
    %v565 = vld [vmem:[%s1 + $0x6e4] sm:$0xf]
    %v566 = vld [vmem:[%s1 + $0x6e8] sm:$0xf]
    %v567 = vld [vmem:[%s1 + $0x6ec] sm:$0xf]
    %v568 = vld [vmem:[%s1 + $0x6f0] sm:$0xf]
    %v569 = vld [vmem:[%s1 + $0x6f4] sm:$0xf]
    %v570 = vld [vmem:[%s1 + $0x6f8] sm:$0xf]
    %v571 = vld [vmem:[%s1 + $0x6fc] sm:$0xf]
    %v572 = vld [vmem:[%s1 + $0x700] sm:$0xf]
    %v573 = vld [vmem:[%s1 + $0x704] sm:$0xf]
    %v574 = vld [vmem:[%s1 + $0x708] sm:$0xf]
    %v575 = vld [vmem:[%s1 + $0x70c] sm:$0xf]
    %v576 = vld [vmem:[%s1 + $0x710] sm:$0xf]
    %v577 = vld [vmem:[%s1 + $0x714] sm:$0xf]
    %v578 = vld [vmem:[%s1 + $0x718] sm:$0xf]
    %v579 = vld [vmem:[%s1 + $0x71c] sm:$0xf]
    %v580 = vld [vmem:[%s1 + $0x720] sm:$0xf]
    %v581 = vld [vmem:[%s1 + $0x724] sm:$0xf]
    %v582 = vld [vmem:[%s1 + $0x728] sm:$0xf]
    %v583 = vld [vmem:[%s1 + $0x72c] sm:$0xf]
    %v584 = vld [vmem:[%s1 + $0x730] sm:$0xf]
    %v585 = vld [vmem:[%s1 + $0x734] sm:$0xf]
    %v586 = vld [vmem:[%s1 + $0x738] sm:$0xf]
    %v587 = vld [vmem:[%s1 + $0x73c] sm:$0xf]
    %v588 = vld [vmem:[%s1 + $0x740] sm:$0xf]
    %v589 = vld [vmem:[%s1 + $0x744] sm:$0xf]
    %v590 = vld [vmem:[%s1 + $0x748] sm:$0xf]
    %v591 = vld [vmem:[%s1 + $0x74c] sm:$0xf]
    %v592 = vld [vmem:[%s1 + $0x750] sm:$0xf]
    %v593 = vld [vmem:[%s1 + $0x754] sm:$0xf]
    %v594 = vld [vmem:[%s1 + $0x758] sm:$0xf]
    %v595 = vld [vmem:[%s1 + $0x75c] sm:$0xf]
    %v596 = vld [vmem:[%s1 + $0x760] sm:$0xf]
    %v597 = vld [vmem:[%s1 + $0x764] sm:$0xf]
    %v598 = vld [vmem:[%s1 + $0x768] sm:$0xf]
    %v599 = vld [vmem:[%s1 + $0x76c] sm:$0xf]
    %v600 = vld [vmem:[%s1 + $0x770] sm:$0xf]
    %v601 = vld [vmem:[%s1 + $0x774] sm:$0xf]
    %v602 = vld [vmem:[%s1 + $0x778] sm:$0xf]
    %v603 = vld [vmem:[%s1 + $0x77c] sm:$0xf]
    %v604 = vld [vmem:[%s1 + $0x780] sm:$0xf]
    %v605 = vld [vmem:[%s1 + $0x784] sm:$0xf]
    %v606 = vld [vmem:[%s1 + $0x788] sm:$0xf]
    %v607 = vld [vmem:[%s1 + $0x78c] sm:$0xf]
    %v608 = vld [vmem:[%s1 + $0x790] sm:$0xf]
    %v609 = vld [vmem:[%s1 + $0x794] sm:$0xf]
    %v610 = vld [vmem:[%s1 + $0x798] sm:$0xf]
    %v611 = vld [vmem:[%s1 + $0x79c] sm:$0xf]
    %v612 = vld [vmem:[%s1 + $0x7a0] sm:$0xf]
    %v613 = vld [vmem:[%s1 + $0x7a4] sm:$0xf]
    %v614 = vld [vmem:[%s1 + $0x7a8] sm:$0xf]
    %v615 = vld [vmem:[%s1 + $0x7ac] sm:$0xf]
    %v616 = vld [vmem:[%s1 + $0x7b0] sm:$0xf]
    %v617 = vld [vmem:[%s1 + $0x7b4] sm:$0xf]
    %v618 = vld [vmem:[%s1 + $0x7b8] sm:$0xf]
    %v619 = vld [vmem:[%s1 + $0x7bc] sm:$0xf]
    %v620 = vld [vmem:[%s1 + $0x7c0] sm:$0xf]
    %v621 = vld [vmem:[%s1 + $0x7c4] sm:$0xf]
    %v622 = vld [vmem:[%s1 + $0x7c8] sm:$0xf]
    %v623 = vld [vmem:[%s1 + $0x7cc] sm:$0xf]
    %v624 = vld [vmem:[%s1 + $0x7d0] sm:$0xf]
    %v625 = vld [vmem:[%s1 + $0x7d4] sm:$0xf]
    %v626 = vld [vmem:[%s1 + $0x7d8] sm:$0xf]
    %v627 = vld [vmem:[%s1 + $0x7dc] sm:$0xf]
    %v628 = vld [vmem:[%s1 + $0x7e0] sm:$0xf]
    %v629 = vld [vmem:[%s1 + $0x7e4] sm:$0xf]
    %v630 = vld [vmem:[%s1 + $0x7e8] sm:$0xf]
    %v631 = vld [vmem:[%s1 + $0x7ec] sm:$0xf]
    %v632 = vld [vmem:[%s1 + $0x7f0] sm:$0xf]
    %v633 = vld [vmem:[%s1 + $0x7f4] sm:$0xf]
    %v634 = vld [vmem:[%s1 + $0x7f8] sm:$0xf]
    %v635 = vld [vmem:[%s1 + $0x7fc] sm:$0xf]
    %v636 = vld [vmem:[%s1 + $0x800] sm:$0xf]
    %v637 = vld [vmem:[%s1 + $0x804] sm:$0xf]
    %v638 = vld [vmem:[%s1 + $0x808] sm:$0xf]
    %v639 = vld [vmem:[%s1 + $0x80c] sm:$0xf]
    %v640 = vld [vmem:[%s1 + $0x810] sm:$0xf]
    %v641 = vld [vmem:[%s1 + $0x814] sm:$0xf]
    %v642 = vld [vmem:[%s1 + $0x818] sm:$0xf]
    %v643 = vld [vmem:[%s1 + $0x81c] sm:$0xf]
    %v644 = vld [vmem:[%s1 + $0x820] sm:$0xf]
    %v645 = vld [vmem:[%s1 + $0x824] sm:$0xf]
    %v646 = vld [vmem:[%s1 + $0x828] sm:$0xf]
    %v647 = vld [vmem:[%s1 + $0x82c] sm:$0xf]
    %v648 = vld [vmem:[%s1 + $0x830] sm:$0xf]
    %v649 = vld [vmem:[%s1 + $0x834] sm:$0xf]
    %v650 = vld [vmem:[%s1 + $0x838] sm:$0xf]
    %v651 = vld [vmem:[%s1 + $0x83c] sm:$0xf]
    %v652 = vld [vmem:[%s1 + $0x840] sm:$0xf]
    %v653 = vld [vmem:[%s1 + $0x844] sm:$0xf]
    %v654 = vld [vmem:[%s1 + $0x848] sm:$0xf]
    %v655 = vld [vmem:[%s1 + $0x84c] sm:$0xf]
    %v656 = vld [vmem:[%s1 + $0x850] sm:$0xf]
    %v657 = vld [vmem:[%s1 + $0x854] sm:$0xf]
    %v658 = vld [vmem:[%s1 + $0x858] sm:$0xf]
    %v659 = vld [vmem:[%s1 + $0x85c] sm:$0xf]
    %v660 = vld [vmem:[%s1 + $0x860] sm:$0xf]
    %v661 = vld [vmem:[%s1 + $0x864] sm:$0xf]
    %v662 = vld [vmem:[%s1 + $0x868] sm:$0xf]
    %v663 = vld [vmem:[%s1 + $0x86c] sm:$0xf]
    %v664 = vld [vmem:[%s1 + $0x870] sm:$0xf]
    %v665 = vld [vmem:[%s1 + $0x874] sm:$0xf]
    %v666 = vld [vmem:[%s1 + $0x878] sm:$0xf]
    %v667 = vld [vmem:[%s1 + $0x87c] sm:$0xf]
    %v668 = vld [vmem:[%s1 + $0x880] sm:$0xf]
    %v669 = vld [vmem:[%s1 + $0x884] sm:$0xf]
    %v670 = vld [vmem:[%s1 + $0x888] sm:$0xf]
    %v671 = vld [vmem:[%s1 + $0x88c] sm:$0xf]
    %v672 = vld [vmem:[%s1 + $0x890] sm:$0xf]
    %v673 = vld [vmem:[%s1 + $0x894] sm:$0xf]
    %v674 = vld [vmem:[%s1 + $0x898] sm:$0xf]
    %v675 = vld [vmem:[%s1 + $0x89c] sm:$0xf]
    %v676 = vld [vmem:[%s1 + $0x8a0] sm:$0xf]
    %v677 = vld [vmem:[%s1 + $0x8a4] sm:$0xf]
    %v678 = vld [vmem:[%s1 + $0x8a8] sm:$0xf]
    %v679 = vld [vmem:[%s1 + $0x8ac] sm:$0xf]
    %v680 = vld [vmem:[%s1 + $0x8b0] sm:$0xf]
    %v681 = vld [vmem:[%s1 + $0x8b4] sm:$0xf]
    %v682 = vld [vmem:[%s1 + $0x8b8] sm:$0xf]
    %v683 = vld [vmem:[%s1 + $0x8bc] sm:$0xf]
    %v684 = vld [vmem:[%s1 + $0x8c0] sm:$0xf]
    %v685 = vld [vmem:[%s1 + $0x8c4] sm:$0xf]
    %v686 = vld [vmem:[%s1 + $0x8c8] sm:$0xf]
    %v687 = vld [vmem:[%s1 + $0x8cc] sm:$0xf]
    %v688 = vld [vmem:[%s1 + $0x8d0] sm:$0xf]
    %v689 = vld [vmem:[%s1 + $0x8d4] sm:$0xf]
    %v690 = vld [vmem:[%s1 + $0x8d8] sm:$0xf]
    %v691 = vld [vmem:[%s1 + $0x8dc] sm:$0xf]
    %v692 = vld [vmem:[%s1 + $0x8e0] sm:$0xf]
    %v693 = vld [vmem:[%s1 + $0x8e4] sm:$0xf]
    %v694 = vld [vmem:[%s1 + $0x8e8] sm:$0xf]
    %v695 = vld [vmem:[%s1 + $0x8ec] sm:$0xf]
    %v696 = vld [vmem:[%s1 + $0x8f0] sm:$0xf]
    %v697 = vld [vmem:[%s1 + $0x8f4] sm:$0xf]
    %v698 = vld [vmem:[%s1 + $0x8f8] sm:$0xf]
    %v699 = vld [vmem:[%s1 + $0x8fc] sm:$0xf]
    %v700 = vld [vmem:[%s1 + $0x900] sm:$0xf]
    %v701 = vld [vmem:[%s1 + $0x904] sm:$0xf]
    %v702 = vld [vmem:[%s1 + $0x908] sm:$0xf]
    %v703 = vld [vmem:[%s1 + $0x90c] sm:$0xf]
    %v704 = vld [vmem:[%s1 + $0x910] sm:$0xf]
    %v705 = vld [vmem:[%s1 + $0x914] sm:$0xf]
    %v706 = vld [vmem:[%s1 + $0x918] sm:$0xf]
    %v707 = vld [vmem:[%s1 + $0x91c] sm:$0xf]
    %v708 = vld [vmem:[%s1 + $0x920] sm:$0xf]
    %v709 = vld [vmem:[%s1 + $0x924] sm:$0xf]
    %v710 = vld [vmem:[%s1 + $0x928] sm:$0xf]
    %v711 = vld [vmem:[%s1 + $0x92c] sm:$0xf]
    %v712 = vld [vmem:[%s1 + $0x930] sm:$0xf]
    %v713 = vld [vmem:[%s1 + $0x934] sm:$0xf]
    %v714 = vld [vmem:[%s1 + $0x938] sm:$0xf]
    %v715 = vld [vmem:[%s1 + $0x93c] sm:$0xf]
    %v716 = vld [vmem:[%s1 + $0x940] sm:$0xf]
    %v717 = vld [vmem:[%s1 + $0x944] sm:$0xf]
    %v718 = vld [vmem:[%s1 + $0x948] sm:$0xf]
    %v719 = vld [vmem:[%s1 + $0x94c] sm:$0xf]
    %v720 = vld [vmem:[%s1 + $0x950] sm:$0xf]
    %v721 = vld [vmem:[%s1 + $0x954] sm:$0xf]
    %v722 = vld [vmem:[%s1 + $0x958] sm:$0xf]
    %v723 = vld [vmem:[%s1 + $0x95c] sm:$0xf]
    %v724 = vld [vmem:[%s1 + $0x960] sm:$0xf]
    %v725 = vld [vmem:[%s1 + $0x964] sm:$0xf]
    %v726 = vld [vmem:[%s1 + $0x968] sm:$0xf]
    %v727 = vld [vmem:[%s1 + $0x96c] sm:$0xf]
    %v728 = vld [vmem:[%s1 + $0x970] sm:$0xf]
    %v729 = vld [vmem:[%s1 + $0x974] sm:$0xf]
    %v730 = vld [vmem:[%s1 + $0x978] sm:$0xf]
    %v731 = vld [vmem:[%s1 + $0x97c] sm:$0xf]
    %v732 = vld [vmem:[%s1 + $0x980] sm:$0xf]
    %v733 = vld [vmem:[%s1 + $0x984] sm:$0xf]
    %v734 = vld [vmem:[%s1 + $0x988] sm:$0xf]
    %v735 = vld [vmem:[%s1 + $0x98c] sm:$0xf]
    %v736 = vld [vmem:[%s1 + $0x990] sm:$0xf]
    %v737 = vld [vmem:[%s1 + $0x994] sm:$0xf]
    %v738 = vld [vmem:[%s1 + $0x998] sm:$0xf]
    %v739 = vld [vmem:[%s1 + $0x99c] sm:$0xf]
    %v740 = vld [vmem:[%s1 + $0x9a0] sm:$0xf]
    %v741 = vld [vmem:[%s1 + $0x9a4] sm:$0xf]
    %v742 = vld [vmem:[%s1 + $0x9a8] sm:$0xf]
    %v743 = vld [vmem:[%s1 + $0x9ac] sm:$0xf]
    %v744 = vld [vmem:[%s1 + $0x9b0] sm:$0xf]
    %v745 = vld [vmem:[%s1 + $0x9b4] sm:$0xf]
    %v746 = vld [vmem:[%s1 + $0x9b8] sm:$0xf]
    %v747 = vld [vmem:[%s1 + $0x9bc] sm:$0xf]
    %v748 = vld [vmem:[%s1 + $0x9c0] sm:$0xf]
    %v749 = vld [vmem:[%s1 + $0x9c4] sm:$0xf]
    %v750 = vld [vmem:[%s1 + $0x9c8] sm:$0xf]
    %v751 = vld [vmem:[%s1 + $0x9cc] sm:$0xf]
    %v752 = vld [vmem:[%s1 + $0x9d0] sm:$0xf]
    %v753 = vld [vmem:[%s1 + $0x9d4] sm:$0xf]
    %v754 = vld [vmem:[%s1 + $0x9d8] sm:$0xf]
    %v755 = vld [vmem:[%s1 + $0x9dc] sm:$0xf]
    %v756 = vld [vmem:[%s1 + $0x9e0] sm:$0xf]
    %v757 = vld [vmem:[%s1 + $0x9e4] sm:$0xf]
    %v758 = vld [vmem:[%s1 + $0x9e8] sm:$0xf]
    %v759 = vld [vmem:[%s1 + $0x9ec] sm:$0xf]
    %v760 = vld [vmem:[%s1 + $0x9f0] sm:$0xf]
    %v761 = vld [vmem:[%s1 + $0x9f4] sm:$0xf]
    %v762 = vld [vmem:[%s1 + $0x9f8] sm:$0xf]
    %v763 = vld [vmem:[%s1 + $0x9fc] sm:$0xf]
    %v764 = vld [vmem:[%s1 + $0xa00] sm:$0xf]
    %v765 = vld [vmem:[%s1 + $0xa04] sm:$0xf]
    %v766 = vld [vmem:[%s1 + $0xa08] sm:$0xf]
    %v767 = vld [vmem:[%s1 + $0xa0c] sm:$0xf]
    %v768 = vld [vmem:[%s1 + $0xa10] sm:$0xf]
    %v769 = vld [vmem:[%s1 + $0xa14] sm:$0xf]
    %v770 = vld [vmem:[%s1 + $0xa18] sm:$0xf]
    %v771 = vld [vmem:[%s1 + $0xa1c] sm:$0xf]
    %v772 = vld [vmem:[%s1 + $0xa20] sm:$0xf]
    %v773 = vld [vmem:[%s1 + $0xa24] sm:$0xf]
    %v774 = vld [vmem:[%s1 + $0xa28] sm:$0xf]
    %v775 = vld [vmem:[%s1 + $0xa2c] sm:$0xf]
    %v776 = vld [vmem:[%s1 + $0xa30] sm:$0xf]
    %v777 = vld [vmem:[%s1 + $0xa34] sm:$0xf]
    %v778 = vld [vmem:[%s1 + $0xa38] sm:$0xf]
    %v779 = vld [vmem:[%s1 + $0xa3c] sm:$0xf]
    %v780 = vld [vmem:[%s1 + $0xa40] sm:$0xf]
    %v781 = vld [vmem:[%s1 + $0xa44] sm:$0xf]
    %v782 = vld [vmem:[%s1 + $0xa48] sm:$0xf]
    %v783 = vld [vmem:[%s1 + $0xa4c] sm:$0xf]
    %v784 = vld [vmem:[%s1 + $0xa50] sm:$0xf]
    %v785 = vld [vmem:[%s1 + $0xa54] sm:$0xf]
    %v786 = vld [vmem:[%s1 + $0xa58] sm:$0xf]
    %v787 = vld [vmem:[%s1 + $0xa5c] sm:$0xf]
    %v788 = vld [vmem:[%s1 + $0xa60] sm:$0xf]
    %v789 = vld [vmem:[%s1 + $0xa64] sm:$0xf]
    %v790 = vld [vmem:[%s1 + $0xa68] sm:$0xf]
    %v791 = vld [vmem:[%s1 + $0xa6c] sm:$0xf]
    %v792 = vld [vmem:[%s1 + $0xa70] sm:$0xf]
    %v793 = vld [vmem:[%s1 + $0xa74] sm:$0xf]
    %v794 = vld [vmem:[%s1 + $0xa78] sm:$0xf]
    %v795 = vld [vmem:[%s1 + $0xa7c] sm:$0xf]
    %v796 = vld [vmem:[%s1 + $0xa80] sm:$0xf]
    %v797 = vld [vmem:[%s1 + $0xa84] sm:$0xf]
    %v798 = vld [vmem:[%s1 + $0xa88] sm:$0xf]
    %v799 = vld [vmem:[%s1 + $0xa8c] sm:$0xf]
    %v800 = vld [vmem:[%s1 + $0xa90] sm:$0xf]
    %v801 = vld [vmem:[%s1 + $0xa94] sm:$0xf]
    %v802 = vld [vmem:[%s1 + $0xa98] sm:$0xf]
    %v803 = vld [vmem:[%s1 + $0xa9c] sm:$0xf]
    %v804 = vld [vmem:[%s1 + $0xaa0] sm:$0xf]
    %v805 = vld [vmem:[%s1 + $0xaa4] sm:$0xf]
    %v806 = vld [vmem:[%s1 + $0xaa8] sm:$0xf]
    %v807 = vld [vmem:[%s1 + $0xaac] sm:$0xf]
    %v808 = vld [vmem:[%s1 + $0xab0] sm:$0xf]
    %v809 = vld [vmem:[%s1 + $0xab4] sm:$0xf]
    %v810 = vld [vmem:[%s1 + $0xab8] sm:$0xf]
    %v811 = vld [vmem:[%s1 + $0xabc] sm:$0xf]
    %v812 = vld [vmem:[%s1 + $0xac0] sm:$0xf]
    %v813 = vld [vmem:[%s1 + $0xac4] sm:$0xf]
    %v814 = vld [vmem:[%s1 + $0xac8] sm:$0xf]
    %v815 = vld [vmem:[%s1 + $0xacc] sm:$0xf]
    %v816 = vld [vmem:[%s1 + $0xad0] sm:$0xf]
    %v817 = vld [vmem:[%s1 + $0xad4] sm:$0xf]
    %v818 = vld [vmem:[%s1 + $0xad8] sm:$0xf]
    %v819 = vld [vmem:[%s1 + $0xadc] sm:$0xf]
    %v820 = vld [vmem:[%s1 + $0xae0] sm:$0xf]
    %v821 = vld [vmem:[%s1 + $0xae4] sm:$0xf]
    %v822 = vld [vmem:[%s1 + $0xae8] sm:$0xf]
    %v823 = vld [vmem:[%s1 + $0xaec] sm:$0xf]
    %v824 = vld [vmem:[%s1 + $0xaf0] sm:$0xf]
    %v825 = vld [vmem:[%s1 + $0xaf4] sm:$0xf]
    %v826 = vld [vmem:[%s1 + $0xaf8] sm:$0xf]
    %v827 = vld [vmem:[%s1 + $0xafc] sm:$0xf]
    %v828 = vld [vmem:[%s1 + $0xb00] sm:$0xf]
    %v829 = vld [vmem:[%s1 + $0xb04] sm:$0xf]
    %v830 = vld [vmem:[%s1 + $0xb08] sm:$0xf]
    %v831 = vld [vmem:[%s1 + $0xb0c] sm:$0xf]
    %v832 = vld [vmem:[%s1 + $0xb10] sm:$0xf]
    %v833 = vld [vmem:[%s1 + $0xb14] sm:$0xf]
    %v834 = vld [vmem:[%s1 + $0xb18] sm:$0xf]
    %v835 = vld [vmem:[%s1 + $0xb1c] sm:$0xf]
    %v836 = vld [vmem:[%s1 + $0xb20] sm:$0xf]
    %v837 = vld [vmem:[%s1 + $0xb24] sm:$0xf]
    %v838 = vld [vmem:[%s1 + $0xb28] sm:$0xf]
    %v839 = vld [vmem:[%s1 + $0xb2c] sm:$0xf]
    %v840 = vld [vmem:[%s1 + $0xb30] sm:$0xf]
    %v841 = vld [vmem:[%s1 + $0xb34] sm:$0xf]
    %v842 = vld [vmem:[%s1 + $0xb38] sm:$0xf]
    %v843 = vld [vmem:[%s1 + $0xb3c] sm:$0xf]
    %v844 = vld [vmem:[%s1 + $0xb40] sm:$0xf]
    %v845 = vld [vmem:[%s1 + $0xb44] sm:$0xf]
    %v846 = vld [vmem:[%s1 + $0xb48] sm:$0xf]
    %v847 = vld [vmem:[%s1 + $0xb4c] sm:$0xf]
    %v848 = vld [vmem:[%s1 + $0xb50] sm:$0xf]
    %v849 = vld [vmem:[%s1 + $0xb54] sm:$0xf]
    %v850 = vld [vmem:[%s1 + $0xb58] sm:$0xf]
    %v851 = vld [vmem:[%s1 + $0xb5c] sm:$0xf]
    %v852 = vld [vmem:[%s1 + $0xb60] sm:$0xf]
    %v853 = vld [vmem:[%s1 + $0xb64] sm:$0xf]
    %v854 = vld [vmem:[%s1 + $0xb68] sm:$0xf]
    %v855 = vld [vmem:[%s1 + $0xb6c] sm:$0xf]
    %v856 = vld [vmem:[%s1 + $0xb70] sm:$0xf]
    %v857 = vld [vmem:[%s1 + $0xb74] sm:$0xf]
    %v858 = vld [vmem:[%s1 + $0xb78] sm:$0xf]
    %v859 = vld [vmem:[%s1 + $0xb7c] sm:$0xf]
    %v860 = vld [vmem:[%s1 + $0xb80] sm:$0xf]
    %v861 = vld [vmem:[%s1 + $0xb84] sm:$0xf]
    %v862 = vld [vmem:[%s1 + $0xb88] sm:$0xf]
    %v863 = vld [vmem:[%s1 + $0xb8c] sm:$0xf]
    %v864 = vld [vmem:[%s1 + $0xb90] sm:$0xf]
    %v865 = vld [vmem:[%s1 + $0xb94] sm:$0xf]
    %v866 = vld [vmem:[%s1 + $0xb98] sm:$0xf]
    %v867 = vld [vmem:[%s1 + $0xb9c] sm:$0xf]
    %v868 = vld [vmem:[%s1 + $0xba0] sm:$0xf]
    %v869 = vld [vmem:[%s1 + $0xba4] sm:$0xf]
    %v870 = vld [vmem:[%s1 + $0xba8] sm:$0xf]
    %v871 = vld [vmem:[%s1 + $0xbac] sm:$0xf]
    %v872 = vld [vmem:[%s1 + $0xbb0] sm:$0xf]
    %v873 = vld [vmem:[%s1 + $0xbb4] sm:$0xf]
    %v874 = vld [vmem:[%s1 + $0xbb8] sm:$0xf]
    %v875 = vld [vmem:[%s1 + $0xbbc] sm:$0xf]
    %v876 = vld [vmem:[%s1 + $0xbc0] sm:$0xf]
    %v877 = vld [vmem:[%s1 + $0xbc4] sm:$0xf]
    %v878 = vld [vmem:[%s1 + $0xbc8] sm:$0xf]
    %v879 = vld [vmem:[%s1 + $0xbcc] sm:$0xf]
    %v880 = vld [vmem:[%s1 + $0xbd0] sm:$0xf]
    %v881 = vld [vmem:[%s1 + $0xbd4] sm:$0xf]
    %v882 = vld [vmem:[%s1 + $0xbd8] sm:$0xf]
    %v883 = vld [vmem:[%s1 + $0xbdc] sm:$0xf]
    %v884 = vld [vmem:[%s1 + $0xbe0] sm:$0xf]
    %v885 = vld [vmem:[%s1 + $0xbe4] sm:$0xf]
    %v886 = vld [vmem:[%s1 + $0xbe8] sm:$0xf]
    %v887 = vld [vmem:[%s1 + $0xbec] sm:$0xf]
    %v888 = vld [vmem:[%s1 + $0xbf0] sm:$0xf]
    %v889 = vld [vmem:[%s1 + $0xbf4] sm:$0xf]
    %v890 = vld [vmem:[%s1 + $0xbf8] sm:$0xf]
    %v891 = vld [vmem:[%s1 + $0xbfc] sm:$0xf]
    %v892 = vld [vmem:[%s2] sm:$0x1]
    %v894 = vlaneseq
    %v895 = vshrl.u32 %v894, 7
    %v896 = vsub.s32 0, %v895
    %v897 = vrot.slane %v892, %v896
    %v1667 = vunpack.c.l.b16 %v124
    %v1668 = vunpack.c.l.b16 %v125
    %v1669 = vunpack.c.l.b16 %v126
    %v1670 = vunpack.c.l.b16 %v127
    %v1671 = vunpack.c.l.b16 %v128
    %v1672 = vunpack.c.l.b16 %v129
    %v1673 = vunpack.c.l.b16 %v130
    %v1674 = vunpack.c.l.b16 %v131
    %v1675 = vunpack.c.l.b16 %v132
    %v1676 = vunpack.c.l.b16 %v133
    %v1677 = vunpack.c.l.b16 %v134
    %v1678 = vunpack.c.l.b16 %v135
    %v1679 = vunpack.c.l.b16 %v136
    %v1680 = vunpack.c.l.b16 %v137
    %v1681 = vunpack.c.l.b16 %v138
    %v1682 = vunpack.c.l.b16 %v139
    %v1683 = vunpack.c.l.b16 %v140
    %v1684 = vunpack.c.l.b16 %v141
    %v1685 = vunpack.c.l.b16 %v142
    %v1686 = vunpack.c.l.b16 %v143
    %v1687 = vunpack.c.l.b16 %v144
    %v1688 = vunpack.c.l.b16 %v145
    %v1689 = vunpack.c.l.b16 %v146
    %v1690 = vunpack.c.l.b16 %v147
    %v1691 = vunpack.c.l.b16 %v148
    %v1692 = vunpack.c.l.b16 %v149
    %v1693 = vunpack.c.l.b16 %v150
    %v1694 = vunpack.c.l.b16 %v151
    %v1695 = vunpack.c.l.b16 %v152
    %v1696 = vunpack.c.l.b16 %v153
    %v1697 = vunpack.c.l.b16 %v154
    %v1698 = vunpack.c.l.b16 %v155
    %v1699 = vunpack.c.l.b16 %v156
    %v1700 = vunpack.c.l.b16 %v157
    %v1701 = vunpack.c.l.b16 %v158
    %v1702 = vunpack.c.l.b16 %v159
    %v1703 = vunpack.c.l.b16 %v160
    %v1704 = vunpack.c.l.b16 %v161
    %v1705 = vunpack.c.l.b16 %v162
    %v1706 = vunpack.c.l.b16 %v163
    %v1707 = vunpack.c.l.b16 %v164
    %v1708 = vunpack.c.l.b16 %v165
    %v1709 = vunpack.c.l.b16 %v166
    %v1710 = vunpack.c.l.b16 %v167
    %v1711 = vunpack.c.l.b16 %v168
    %v1712 = vunpack.c.l.b16 %v169
    %v1713 = vunpack.c.l.b16 %v170
    %v1714 = vunpack.c.l.b16 %v171
    %v1715 = vunpack.c.l.b16 %v172
    %v1716 = vunpack.c.l.b16 %v173
    %v1717 = vunpack.c.l.b16 %v174
    %v1718 = vunpack.c.l.b16 %v175
    %v1719 = vunpack.c.l.b16 %v176
    %v1720 = vunpack.c.l.b16 %v177
    %v1721 = vunpack.c.l.b16 %v178
    %v1722 = vunpack.c.l.b16 %v179
    %v1723 = vunpack.c.l.b16 %v180
    %v1724 = vunpack.c.l.b16 %v181
    %v1725 = vunpack.c.l.b16 %v182
    %v1726 = vunpack.c.l.b16 %v183
    %v1727 = vunpack.c.l.b16 %v184
    %v1728 = vunpack.c.l.b16 %v185
    %v1729 = vunpack.c.l.b16 %v186
    %v1730 = vunpack.c.l.b16 %v187
    %v1731 = vunpack.c.l.b16 %v188
    %v1732 = vunpack.c.l.b16 %v189
    %v1733 = vunpack.c.l.b16 %v190
    %v1734 = vunpack.c.l.b16 %v191
    %v1735 = vunpack.c.l.b16 %v192
    %v1736 = vunpack.c.l.b16 %v193
    %v1737 = vunpack.c.l.b16 %v194
    %v1738 = vunpack.c.l.b16 %v195
    %v1739 = vunpack.c.l.b16 %v196
    %v1740 = vunpack.c.l.b16 %v197
    %v1741 = vunpack.c.l.b16 %v198
    %v1742 = vunpack.c.l.b16 %v199
    %v1743 = vunpack.c.l.b16 %v200
    %v1744 = vunpack.c.l.b16 %v201
    %v1745 = vunpack.c.l.b16 %v202
    %v1746 = vunpack.c.l.b16 %v203
    %v1747 = vunpack.c.l.b16 %v204
    %v1748 = vunpack.c.l.b16 %v205
    %v1749 = vunpack.c.l.b16 %v206
    %v1750 = vunpack.c.l.b16 %v207
    %v1751 = vunpack.c.l.b16 %v208
    %v1752 = vunpack.c.l.b16 %v209
    %v1753 = vunpack.c.l.b16 %v210
    %v1754 = vunpack.c.l.b16 %v211
    %v1755 = vunpack.c.l.b16 %v212
    %v1756 = vunpack.c.l.b16 %v213
    %v1757 = vunpack.c.l.b16 %v214
    %v1758 = vunpack.c.l.b16 %v215
    %v1759 = vunpack.c.l.b16 %v216
    %v1760 = vunpack.c.l.b16 %v217
    %v1761 = vunpack.c.l.b16 %v218
    %v1762 = vunpack.c.l.b16 %v219
    %v1763 = vunpack.c.l.b16 %v220
    %v1764 = vunpack.c.l.b16 %v221
    %v1765 = vunpack.c.l.b16 %v222
    %v1766 = vunpack.c.l.b16 %v223
    %v1767 = vunpack.c.l.b16 %v224
    %v1768 = vunpack.c.l.b16 %v225
    %v1769 = vunpack.c.l.b16 %v226
    %v1770 = vunpack.c.l.b16 %v227
    %v1771 = vunpack.c.l.b16 %v228
    %v1772 = vunpack.c.l.b16 %v229
    %v1773 = vunpack.c.l.b16 %v230
    %v1774 = vunpack.c.l.b16 %v231
    %v1775 = vunpack.c.l.b16 %v232
    %v1776 = vunpack.c.l.b16 %v233
    %v1777 = vunpack.c.l.b16 %v234
    %v1778 = vunpack.c.l.b16 %v235
    %v1779 = vunpack.c.l.b16 %v236
    %v1780 = vunpack.c.l.b16 %v237
    %v1781 = vunpack.c.l.b16 %v238
    %v1782 = vunpack.c.l.b16 %v239
    %v1783 = vunpack.c.l.b16 %v240
    %v1784 = vunpack.c.l.b16 %v241
    %v1785 = vunpack.c.l.b16 %v242
    %v1786 = vunpack.c.l.b16 %v243
    %v1787 = vunpack.c.l.b16 %v244
    %v1788 = vunpack.c.l.b16 %v245
    %v1789 = vunpack.c.l.b16 %v246
    %v1790 = vunpack.c.l.b16 %v247
    %v1791 = vunpack.c.l.b16 %v248
    %v1792 = vunpack.c.l.b16 %v249
    %v1793 = vunpack.c.l.b16 %v250
    %v1794 = vunpack.c.l.b16 %v251
    %v1795 = vunpack.c.l.b16 %v252
    %v1796 = vunpack.c.l.b16 %v253
    %v1797 = vunpack.c.l.b16 %v254
    %v1798 = vunpack.c.l.b16 %v255
    %v1799 = vunpack.c.l.b16 %v256
    %v1800 = vunpack.c.l.b16 %v257
    %v1801 = vunpack.c.l.b16 %v258
    %v1802 = vunpack.c.l.b16 %v259
    %v1803 = vunpack.c.l.b16 %v260
    %v1804 = vunpack.c.l.b16 %v261
    %v1805 = vunpack.c.l.b16 %v262
    %v1806 = vunpack.c.l.b16 %v263
    %v1807 = vunpack.c.l.b16 %v264
    %v1808 = vunpack.c.l.b16 %v265
    %v1809 = vunpack.c.l.b16 %v266
    %v1810 = vunpack.c.l.b16 %v267
    %v1811 = vunpack.c.l.b16 %v268
    %v1812 = vunpack.c.l.b16 %v269
    %v1813 = vunpack.c.l.b16 %v270
    %v1814 = vunpack.c.l.b16 %v271
    %v1815 = vunpack.c.l.b16 %v272
    %v1816 = vunpack.c.l.b16 %v273
    %v1817 = vunpack.c.l.b16 %v274
    %v1818 = vunpack.c.l.b16 %v275
    %v1819 = vunpack.c.l.b16 %v276
    %v1820 = vunpack.c.l.b16 %v277
    %v1821 = vunpack.c.l.b16 %v278
    %v1822 = vunpack.c.l.b16 %v279
    %v1823 = vunpack.c.l.b16 %v280
    %v1824 = vunpack.c.l.b16 %v281
    %v1825 = vunpack.c.l.b16 %v282
    %v1826 = vunpack.c.l.b16 %v283
    %v1827 = vunpack.c.l.b16 %v284
    %v1828 = vunpack.c.l.b16 %v285
    %v1829 = vunpack.c.l.b16 %v286
    %v1830 = vunpack.c.l.b16 %v287
    %v1831 = vunpack.c.l.b16 %v288
    %v1832 = vunpack.c.l.b16 %v289
    %v1833 = vunpack.c.l.b16 %v290
    %v1834 = vunpack.c.l.b16 %v291
    %v1835 = vunpack.c.l.b16 %v292
    %v1836 = vunpack.c.l.b16 %v293
    %v1837 = vunpack.c.l.b16 %v294
    %v1838 = vunpack.c.l.b16 %v295
    %v1839 = vunpack.c.l.b16 %v296
    %v1840 = vunpack.c.l.b16 %v297
    %v1841 = vunpack.c.l.b16 %v298
    %v1842 = vunpack.c.l.b16 %v299
    %v1843 = vunpack.c.l.b16 %v300
    %v1844 = vunpack.c.l.b16 %v301
    %v1845 = vunpack.c.l.b16 %v302
    %v1846 = vunpack.c.l.b16 %v303
    %v1847 = vunpack.c.l.b16 %v304
    %v1848 = vunpack.c.l.b16 %v305
    %v1849 = vunpack.c.l.b16 %v306
    %v1850 = vunpack.c.l.b16 %v307
    %v1851 = vunpack.c.l.b16 %v308
    %v1852 = vunpack.c.l.b16 %v309
    %v1853 = vunpack.c.l.b16 %v310
    %v1854 = vunpack.c.l.b16 %v311
    %v1855 = vunpack.c.l.b16 %v312
    %v1856 = vunpack.c.l.b16 %v313
    %v1857 = vunpack.c.l.b16 %v314
    %v1858 = vunpack.c.l.b16 %v315
    %v1859 = vunpack.c.l.b16 %v316
    %v1860 = vunpack.c.l.b16 %v317
    %v1861 = vunpack.c.l.b16 %v318
    %v1862 = vunpack.c.l.b16 %v319
    %v1863 = vunpack.c.l.b16 %v320
    %v1864 = vunpack.c.l.b16 %v321
    %v1865 = vunpack.c.l.b16 %v322
    %v1866 = vunpack.c.l.b16 %v323
    %v1867 = vunpack.c.l.b16 %v324
    %v1868 = vunpack.c.l.b16 %v325
    %v1869 = vunpack.c.l.b16 %v326
    %v1870 = vunpack.c.l.b16 %v327
    %v1871 = vunpack.c.l.b16 %v328
    %v1872 = vunpack.c.l.b16 %v329
    %v1873 = vunpack.c.l.b16 %v330
    %v1874 = vunpack.c.l.b16 %v331
    %v1875 = vunpack.c.l.b16 %v332
    %v1876 = vunpack.c.l.b16 %v333
    %v1877 = vunpack.c.l.b16 %v334
    %v1878 = vunpack.c.l.b16 %v335
    %v1879 = vunpack.c.l.b16 %v336
    %v1880 = vunpack.c.l.b16 %v337
    %v1881 = vunpack.c.l.b16 %v338
    %v1882 = vunpack.c.l.b16 %v339
    %v1883 = vunpack.c.l.b16 %v340
    %v1884 = vunpack.c.l.b16 %v341
    %v1885 = vunpack.c.l.b16 %v342
    %v1886 = vunpack.c.l.b16 %v343
    %v1887 = vunpack.c.l.b16 %v344
    %v1888 = vunpack.c.l.b16 %v345
    %v1889 = vunpack.c.l.b16 %v346
    %v1890 = vunpack.c.l.b16 %v347
    %v1891 = vunpack.c.l.b16 %v348
    %v1892 = vunpack.c.l.b16 %v349
    %v1893 = vunpack.c.l.b16 %v350
    %v1894 = vunpack.c.l.b16 %v351
    %v1895 = vunpack.c.l.b16 %v352
    %v1896 = vunpack.c.l.b16 %v353
    %v1897 = vunpack.c.l.b16 %v354
    %v1898 = vunpack.c.l.b16 %v355
    %v1899 = vunpack.c.l.b16 %v356
    %v1900 = vunpack.c.l.b16 %v357
    %v1901 = vunpack.c.l.b16 %v358
    %v1902 = vunpack.c.l.b16 %v359
    %v1903 = vunpack.c.l.b16 %v360
    %v1904 = vunpack.c.l.b16 %v361
    %v1905 = vunpack.c.l.b16 %v362
    %v1906 = vunpack.c.l.b16 %v363
    %v1907 = vunpack.c.l.b16 %v364
    %v1908 = vunpack.c.l.b16 %v365
    %v1909 = vunpack.c.l.b16 %v366
    %v1910 = vunpack.c.l.b16 %v367
    %v1911 = vunpack.c.l.b16 %v368
    %v1912 = vunpack.c.l.b16 %v369
    %v1913 = vunpack.c.l.b16 %v370
    %v1914 = vunpack.c.l.b16 %v371
    %v1915 = vunpack.c.l.b16 %v372
    %v1916 = vunpack.c.l.b16 %v373
    %v1917 = vunpack.c.l.b16 %v374
    %v1918 = vunpack.c.l.b16 %v375
    %v1919 = vunpack.c.l.b16 %v376
    %v1920 = vunpack.c.l.b16 %v377
    %v1921 = vunpack.c.l.b16 %v378
    %v1922 = vunpack.c.l.b16 %v379
    %v1923 = vunpack.c.l.b16 %v380
    %v1924 = vunpack.c.l.b16 %v381
    %v1925 = vunpack.c.l.b16 %v382
    %v1926 = vunpack.c.l.b16 %v383
    %v1927 = vunpack.c.l.b16 %v384
    %v1928 = vunpack.c.l.b16 %v385
    %v1929 = vunpack.c.l.b16 %v386
    %v1930 = vunpack.c.l.b16 %v387
    %v1931 = vunpack.c.l.b16 %v388
    %v1932 = vunpack.c.l.b16 %v389
    %v1933 = vunpack.c.l.b16 %v390
    %v1934 = vunpack.c.l.b16 %v391
    %v1935 = vunpack.c.l.b16 %v392
    %v1936 = vunpack.c.l.b16 %v393
    %v1937 = vunpack.c.l.b16 %v394
    %v1938 = vunpack.c.l.b16 %v395
    %v1939 = vunpack.c.l.b16 %v396
    %v1940 = vunpack.c.l.b16 %v397
    %v1941 = vunpack.c.l.b16 %v398
    %v1942 = vunpack.c.l.b16 %v399
    %v1943 = vunpack.c.l.b16 %v400
    %v1944 = vunpack.c.l.b16 %v401
    %v1945 = vunpack.c.l.b16 %v402
    %v1946 = vunpack.c.l.b16 %v403
    %v1947 = vunpack.c.l.b16 %v404
    %v1948 = vunpack.c.l.b16 %v405
    %v1949 = vunpack.c.l.b16 %v406
    %v1950 = vunpack.c.l.b16 %v407
    %v1951 = vunpack.c.l.b16 %v408
    %v1952 = vunpack.c.l.b16 %v409
    %v1953 = vunpack.c.l.b16 %v410
    %v1954 = vunpack.c.l.b16 %v411
    %v1955 = vunpack.c.l.b16 %v412
    %v1956 = vunpack.c.l.b16 %v413
    %v1957 = vunpack.c.l.b16 %v414
    %v1958 = vunpack.c.l.b16 %v415
    %v1959 = vunpack.c.l.b16 %v416
    %v1960 = vunpack.c.l.b16 %v417
    %v1961 = vunpack.c.l.b16 %v418
    %v1962 = vunpack.c.l.b16 %v419
    %v1963 = vunpack.c.l.b16 %v420
    %v1964 = vunpack.c.l.b16 %v421
    %v1965 = vunpack.c.l.b16 %v422
    %v1966 = vunpack.c.l.b16 %v423
    %v1967 = vunpack.c.l.b16 %v424
    %v1968 = vunpack.c.l.b16 %v425
    %v1969 = vunpack.c.l.b16 %v426
    %v1970 = vunpack.c.l.b16 %v427
    %v1971 = vunpack.c.l.b16 %v428
    %v1972 = vunpack.c.l.b16 %v429
    %v1973 = vunpack.c.l.b16 %v430
    %v1974 = vunpack.c.l.b16 %v431
    %v1975 = vunpack.c.l.b16 %v432
    %v1976 = vunpack.c.l.b16 %v433
    %v1977 = vunpack.c.l.b16 %v434
    %v1978 = vunpack.c.l.b16 %v435
    %v1979 = vunpack.c.l.b16 %v436
    %v1980 = vunpack.c.l.b16 %v437
    %v1981 = vunpack.c.l.b16 %v438
    %v1982 = vunpack.c.l.b16 %v439
    %v1983 = vunpack.c.l.b16 %v440
    %v1984 = vunpack.c.l.b16 %v441
    %v1985 = vunpack.c.l.b16 %v442
    %v1986 = vunpack.c.l.b16 %v443
    %v1987 = vunpack.c.l.b16 %v444
    %v1988 = vunpack.c.l.b16 %v445
    %v1989 = vunpack.c.l.b16 %v446
    %v1990 = vunpack.c.l.b16 %v447
    %v1991 = vunpack.c.l.b16 %v448
    %v1992 = vunpack.c.l.b16 %v449
    %v1993 = vunpack.c.l.b16 %v450
    %v1994 = vunpack.c.l.b16 %v451
    %v1995 = vunpack.c.l.b16 %v452
    %v1996 = vunpack.c.l.b16 %v453
    %v1997 = vunpack.c.l.b16 %v454
    %v1998 = vunpack.c.l.b16 %v455
    %v1999 = vunpack.c.l.b16 %v456
    %v2000 = vunpack.c.l.b16 %v457
    %v2001 = vunpack.c.l.b16 %v458
    %v2002 = vunpack.c.l.b16 %v459
    %v2003 = vunpack.c.l.b16 %v460
    %v2004 = vunpack.c.l.b16 %v461
    %v2005 = vunpack.c.l.b16 %v462
    %v2006 = vunpack.c.l.b16 %v463
    %v2007 = vunpack.c.l.b16 %v464
    %v2008 = vunpack.c.l.b16 %v465
    %v2009 = vunpack.c.l.b16 %v466
    %v2010 = vunpack.c.l.b16 %v467
    %v2011 = vunpack.c.l.b16 %v468
    %v2012 = vunpack.c.l.b16 %v469
    %v2013 = vunpack.c.l.b16 %v470
    %v2014 = vunpack.c.l.b16 %v471
    %v2015 = vunpack.c.l.b16 %v472
    %v2016 = vunpack.c.l.b16 %v473
    %v2017 = vunpack.c.l.b16 %v474
    %v2018 = vunpack.c.l.b16 %v475
    %v2019 = vunpack.c.l.b16 %v476
    %v2020 = vunpack.c.l.b16 %v477
    %v2021 = vunpack.c.l.b16 %v478
    %v2022 = vunpack.c.l.b16 %v479
    %v2023 = vunpack.c.l.b16 %v480
    %v2024 = vunpack.c.l.b16 %v481
    %v2025 = vunpack.c.l.b16 %v482
    %v2026 = vunpack.c.l.b16 %v483
    %v2027 = vunpack.c.l.b16 %v484
    %v2028 = vunpack.c.l.b16 %v485
    %v2029 = vunpack.c.l.b16 %v486
    %v2030 = vunpack.c.l.b16 %v487
    %v2031 = vunpack.c.l.b16 %v488
    %v2032 = vunpack.c.l.b16 %v489
    %v2033 = vunpack.c.l.b16 %v490
    %v2034 = vunpack.c.l.b16 %v491
    %v2035 = vunpack.c.l.b16 %v492
    %v2036 = vunpack.c.l.b16 %v493
    %v2037 = vunpack.c.l.b16 %v494
    %v2038 = vunpack.c.l.b16 %v495
    %v2039 = vunpack.c.l.b16 %v496
    %v2040 = vunpack.c.l.b16 %v497
    %v2041 = vunpack.c.l.b16 %v498
    %v2042 = vunpack.c.l.b16 %v499
    %v2043 = vunpack.c.l.b16 %v500
    %v2044 = vunpack.c.l.b16 %v501
    %v2045 = vunpack.c.l.b16 %v502
    %v2046 = vunpack.c.l.b16 %v503
    %v2047 = vunpack.c.l.b16 %v504
    %v2048 = vunpack.c.l.b16 %v505
    %v2049 = vunpack.c.l.b16 %v506
    %v2050 = vunpack.c.l.b16 %v507
    %v2051 = vunpack.c.l.b16 %v508
    %v2052 = vunpack.c.l.b16 %v509
    %v2053 = vunpack.c.l.b16 %v510
    %v2054 = vunpack.c.l.b16 %v511
    %v2055 = vunpack.c.l.b16 %v512
    %v2056 = vunpack.c.l.b16 %v513
    %v2057 = vunpack.c.l.b16 %v514
    %v2058 = vunpack.c.l.b16 %v515
    %v2059 = vunpack.c.l.b16 %v516
    %v2060 = vunpack.c.l.b16 %v517
    %v2061 = vunpack.c.l.b16 %v518
    %v2062 = vunpack.c.l.b16 %v519
    %v2063 = vunpack.c.l.b16 %v520
    %v2064 = vunpack.c.l.b16 %v521
    %v2065 = vunpack.c.l.b16 %v522
    %v2066 = vunpack.c.l.b16 %v523
    %v2067 = vunpack.c.l.b16 %v524
    %v2068 = vunpack.c.l.b16 %v525
    %v2069 = vunpack.c.l.b16 %v526
    %v2070 = vunpack.c.l.b16 %v527
    %v2071 = vunpack.c.l.b16 %v528
    %v2072 = vunpack.c.l.b16 %v529
    %v2073 = vunpack.c.l.b16 %v530
    %v2074 = vunpack.c.l.b16 %v531
    %v2075 = vunpack.c.l.b16 %v532
    %v2076 = vunpack.c.l.b16 %v533
    %v2077 = vunpack.c.l.b16 %v534
    %v2078 = vunpack.c.l.b16 %v535
    %v2079 = vunpack.c.l.b16 %v536
    %v2080 = vunpack.c.l.b16 %v537
    %v2081 = vunpack.c.l.b16 %v538
    %v2082 = vunpack.c.l.b16 %v539
    %v2083 = vunpack.c.l.b16 %v540
    %v2084 = vunpack.c.l.b16 %v541
    %v2085 = vunpack.c.l.b16 %v542
    %v2086 = vunpack.c.l.b16 %v543
    %v2087 = vunpack.c.l.b16 %v544
    %v2088 = vunpack.c.l.b16 %v545
    %v2089 = vunpack.c.l.b16 %v546
    %v2090 = vunpack.c.l.b16 %v547
    %v2091 = vunpack.c.l.b16 %v548
    %v2092 = vunpack.c.l.b16 %v549
    %v2093 = vunpack.c.l.b16 %v550
    %v2094 = vunpack.c.l.b16 %v551
    %v2095 = vunpack.c.l.b16 %v552
    %v2096 = vunpack.c.l.b16 %v553
    %v2097 = vunpack.c.l.b16 %v554
    %v2098 = vunpack.c.l.b16 %v555
    %v2099 = vunpack.c.l.b16 %v556
    %v2100 = vunpack.c.l.b16 %v557
    %v2101 = vunpack.c.l.b16 %v558
    %v2102 = vunpack.c.l.b16 %v559
    %v2103 = vunpack.c.l.b16 %v560
    %v2104 = vunpack.c.l.b16 %v561
    %v2105 = vunpack.c.l.b16 %v562
    %v2106 = vunpack.c.l.b16 %v563
    %v2107 = vunpack.c.l.b16 %v564
    %v2108 = vunpack.c.l.b16 %v565
    %v2109 = vunpack.c.l.b16 %v566
    %v2110 = vunpack.c.l.b16 %v567
    %v2111 = vunpack.c.l.b16 %v568
    %v2112 = vunpack.c.l.b16 %v569
    %v2113 = vunpack.c.l.b16 %v570
    %v2114 = vunpack.c.l.b16 %v571
    %v2115 = vunpack.c.l.b16 %v572
    %v2116 = vunpack.c.l.b16 %v573
    %v2117 = vunpack.c.l.b16 %v574
    %v2118 = vunpack.c.l.b16 %v575
    %v2119 = vunpack.c.l.b16 %v576
    %v2120 = vunpack.c.l.b16 %v577
    %v2121 = vunpack.c.l.b16 %v578
    %v2122 = vunpack.c.l.b16 %v579
    %v2123 = vunpack.c.l.b16 %v580
    %v2124 = vunpack.c.l.b16 %v581
    %v2125 = vunpack.c.l.b16 %v582
    %v2126 = vunpack.c.l.b16 %v583
    %v2127 = vunpack.c.l.b16 %v584
    %v2128 = vunpack.c.l.b16 %v585
    %v2129 = vunpack.c.l.b16 %v586
    %v2130 = vunpack.c.l.b16 %v587
    %v2131 = vunpack.c.l.b16 %v588
    %v2132 = vunpack.c.l.b16 %v589
    %v2133 = vunpack.c.l.b16 %v590
    %v2134 = vunpack.c.l.b16 %v591
    %v2135 = vunpack.c.l.b16 %v592
    %v2136 = vunpack.c.l.b16 %v593
    %v2137 = vunpack.c.l.b16 %v594
    %v2138 = vunpack.c.l.b16 %v595
    %v2139 = vunpack.c.l.b16 %v596
    %v2140 = vunpack.c.l.b16 %v597
    %v2141 = vunpack.c.l.b16 %v598
    %v2142 = vunpack.c.l.b16 %v599
    %v2143 = vunpack.c.l.b16 %v600
    %v2144 = vunpack.c.l.b16 %v601
    %v2145 = vunpack.c.l.b16 %v602
    %v2146 = vunpack.c.l.b16 %v603
    %v2147 = vunpack.c.l.b16 %v604
    %v2148 = vunpack.c.l.b16 %v605
    %v2149 = vunpack.c.l.b16 %v606
    %v2150 = vunpack.c.l.b16 %v607
    %v2151 = vunpack.c.l.b16 %v608
    %v2152 = vunpack.c.l.b16 %v609
    %v2153 = vunpack.c.l.b16 %v610
    %v2154 = vunpack.c.l.b16 %v611
    %v2155 = vunpack.c.l.b16 %v612
    %v2156 = vunpack.c.l.b16 %v613
    %v2157 = vunpack.c.l.b16 %v614
    %v2158 = vunpack.c.l.b16 %v615
    %v2159 = vunpack.c.l.b16 %v616
    %v2160 = vunpack.c.l.b16 %v617
    %v2161 = vunpack.c.l.b16 %v618
    %v2162 = vunpack.c.l.b16 %v619
    %v2163 = vunpack.c.l.b16 %v620
    %v2164 = vunpack.c.l.b16 %v621
    %v2165 = vunpack.c.l.b16 %v622
    %v2166 = vunpack.c.l.b16 %v623
    %v2167 = vunpack.c.l.b16 %v624
    %v2168 = vunpack.c.l.b16 %v625
    %v2169 = vunpack.c.l.b16 %v626
    %v2170 = vunpack.c.l.b16 %v627
    %v2171 = vunpack.c.l.b16 %v628
    %v2172 = vunpack.c.l.b16 %v629
    %v2173 = vunpack.c.l.b16 %v630
    %v2174 = vunpack.c.l.b16 %v631
    %v2175 = vunpack.c.l.b16 %v632
    %v2176 = vunpack.c.l.b16 %v633
    %v2177 = vunpack.c.l.b16 %v634
    %v2178 = vunpack.c.l.b16 %v635
    %v2179 = vunpack.c.l.b16 %v636
    %v2180 = vunpack.c.l.b16 %v637
    %v2181 = vunpack.c.l.b16 %v638
    %v2182 = vunpack.c.l.b16 %v639
    %v2183 = vunpack.c.l.b16 %v640
    %v2184 = vunpack.c.l.b16 %v641
    %v2185 = vunpack.c.l.b16 %v642
    %v2186 = vunpack.c.l.b16 %v643
    %v2187 = vunpack.c.l.b16 %v644
    %v2188 = vunpack.c.l.b16 %v645
    %v2189 = vunpack.c.l.b16 %v646
    %v2190 = vunpack.c.l.b16 %v647
    %v2191 = vunpack.c.l.b16 %v648
    %v2192 = vunpack.c.l.b16 %v649
    %v2193 = vunpack.c.l.b16 %v650
    %v2194 = vunpack.c.l.b16 %v651
    %v2195 = vunpack.c.l.b16 %v652
    %v2196 = vunpack.c.l.b16 %v653
    %v2197 = vunpack.c.l.b16 %v654
    %v2198 = vunpack.c.l.b16 %v655
    %v2199 = vunpack.c.l.b16 %v656
    %v2200 = vunpack.c.l.b16 %v657
    %v2201 = vunpack.c.l.b16 %v658
    %v2202 = vunpack.c.l.b16 %v659
    %v2203 = vunpack.c.l.b16 %v660
    %v2204 = vunpack.c.l.b16 %v661
    %v2205 = vunpack.c.l.b16 %v662
    %v2206 = vunpack.c.l.b16 %v663
    %v2207 = vunpack.c.l.b16 %v664
    %v2208 = vunpack.c.l.b16 %v665
    %v2209 = vunpack.c.l.b16 %v666
    %v2210 = vunpack.c.l.b16 %v667
    %v2211 = vunpack.c.l.b16 %v668
    %v2212 = vunpack.c.l.b16 %v669
    %v2213 = vunpack.c.l.b16 %v670
    %v2214 = vunpack.c.l.b16 %v671
    %v2215 = vunpack.c.l.b16 %v672
    %v2216 = vunpack.c.l.b16 %v673
    %v2217 = vunpack.c.l.b16 %v674
    %v2218 = vunpack.c.l.b16 %v675
    %v2219 = vunpack.c.l.b16 %v676
    %v2220 = vunpack.c.l.b16 %v677
    %v2221 = vunpack.c.l.b16 %v678
    %v2222 = vunpack.c.l.b16 %v679
    %v2223 = vunpack.c.l.b16 %v680
    %v2224 = vunpack.c.l.b16 %v681
    %v2225 = vunpack.c.l.b16 %v682
    %v2226 = vunpack.c.l.b16 %v683
    %v2227 = vunpack.c.l.b16 %v684
    %v2228 = vunpack.c.l.b16 %v685
    %v2229 = vunpack.c.l.b16 %v686
    %v2230 = vunpack.c.l.b16 %v687
    %v2231 = vunpack.c.l.b16 %v688
    %v2232 = vunpack.c.l.b16 %v689
    %v2233 = vunpack.c.l.b16 %v690
    %v2234 = vunpack.c.l.b16 %v691
    %v2235 = vunpack.c.l.b16 %v692
    %v2236 = vunpack.c.l.b16 %v693
    %v2237 = vunpack.c.l.b16 %v694
    %v2238 = vunpack.c.l.b16 %v695
    %v2239 = vunpack.c.l.b16 %v696
    %v2240 = vunpack.c.l.b16 %v697
    %v2241 = vunpack.c.l.b16 %v698
    %v2242 = vunpack.c.l.b16 %v699
    %v2243 = vunpack.c.l.b16 %v700
    %v2244 = vunpack.c.l.b16 %v701
    %v2245 = vunpack.c.l.b16 %v702
    %v2246 = vunpack.c.l.b16 %v703
    %v2247 = vunpack.c.l.b16 %v704
    %v2248 = vunpack.c.l.b16 %v705
    %v2249 = vunpack.c.l.b16 %v706
    %v2250 = vunpack.c.l.b16 %v707
    %v2251 = vunpack.c.l.b16 %v708
    %v2252 = vunpack.c.l.b16 %v709
    %v2253 = vunpack.c.l.b16 %v710
    %v2254 = vunpack.c.l.b16 %v711
    %v2255 = vunpack.c.l.b16 %v712
    %v2256 = vunpack.c.l.b16 %v713
    %v2257 = vunpack.c.l.b16 %v714
    %v2258 = vunpack.c.l.b16 %v715
    %v2259 = vunpack.c.l.b16 %v716
    %v2260 = vunpack.c.l.b16 %v717
    %v2261 = vunpack.c.l.b16 %v718
    %v2262 = vunpack.c.l.b16 %v719
    %v2263 = vunpack.c.l.b16 %v720
    %v2264 = vunpack.c.l.b16 %v721
    %v2265 = vunpack.c.l.b16 %v722
    %v2266 = vunpack.c.l.b16 %v723
    %v2267 = vunpack.c.l.b16 %v724
    %v2268 = vunpack.c.l.b16 %v725
    %v2269 = vunpack.c.l.b16 %v726
    %v2270 = vunpack.c.l.b16 %v727
    %v2271 = vunpack.c.l.b16 %v728
    %v2272 = vunpack.c.l.b16 %v729
    %v2273 = vunpack.c.l.b16 %v730
    %v2274 = vunpack.c.l.b16 %v731
    %v2275 = vunpack.c.l.b16 %v732
    %v2276 = vunpack.c.l.b16 %v733
    %v2277 = vunpack.c.l.b16 %v734
    %v2278 = vunpack.c.l.b16 %v735
    %v2279 = vunpack.c.l.b16 %v736
    %v2280 = vunpack.c.l.b16 %v737
    %v2281 = vunpack.c.l.b16 %v738
    %v2282 = vunpack.c.l.b16 %v739
    %v2283 = vunpack.c.l.b16 %v740
    %v2284 = vunpack.c.l.b16 %v741
    %v2285 = vunpack.c.l.b16 %v742
    %v2286 = vunpack.c.l.b16 %v743
    %v2287 = vunpack.c.l.b16 %v744
    %v2288 = vunpack.c.l.b16 %v745
    %v2289 = vunpack.c.l.b16 %v746
    %v2290 = vunpack.c.l.b16 %v747
    %v2291 = vunpack.c.l.b16 %v748
    %v2292 = vunpack.c.l.b16 %v749
    %v2293 = vunpack.c.l.b16 %v750
    %v2294 = vunpack.c.l.b16 %v751
    %v2295 = vunpack.c.l.b16 %v752
    %v2296 = vunpack.c.l.b16 %v753
    %v2297 = vunpack.c.l.b16 %v754
    %v2298 = vunpack.c.l.b16 %v755
    %v2299 = vunpack.c.l.b16 %v756
    %v2300 = vunpack.c.l.b16 %v757
    %v2301 = vunpack.c.l.b16 %v758
    %v2302 = vunpack.c.l.b16 %v759
    %v2303 = vunpack.c.l.b16 %v760
    %v2304 = vunpack.c.l.b16 %v761
    %v2305 = vunpack.c.l.b16 %v762
    %v2306 = vunpack.c.l.b16 %v763
    %v2307 = vunpack.c.l.b16 %v764
    %v2308 = vunpack.c.l.b16 %v765
    %v2309 = vunpack.c.l.b16 %v766
    %v2310 = vunpack.c.l.b16 %v767
    %v2311 = vunpack.c.l.b16 %v768
    %v2312 = vunpack.c.l.b16 %v769
    %v2313 = vunpack.c.l.b16 %v770
    %v2314 = vunpack.c.l.b16 %v771
    %v2315 = vunpack.c.l.b16 %v772
    %v2316 = vunpack.c.l.b16 %v773
    %v2317 = vunpack.c.l.b16 %v774
    %v2318 = vunpack.c.l.b16 %v775
    %v2319 = vunpack.c.l.b16 %v776
    %v2320 = vunpack.c.l.b16 %v777
    %v2321 = vunpack.c.l.b16 %v778
    %v2322 = vunpack.c.l.b16 %v779
    %v2323 = vunpack.c.l.b16 %v780
    %v2324 = vunpack.c.l.b16 %v781
    %v2325 = vunpack.c.l.b16 %v782
    %v2326 = vunpack.c.l.b16 %v783
    %v2327 = vunpack.c.l.b16 %v784
    %v2328 = vunpack.c.l.b16 %v785
    %v2329 = vunpack.c.l.b16 %v786
    %v2330 = vunpack.c.l.b16 %v787
    %v2331 = vunpack.c.l.b16 %v788
    %v2332 = vunpack.c.l.b16 %v789
    %v2333 = vunpack.c.l.b16 %v790
    %v2334 = vunpack.c.l.b16 %v791
    %v2335 = vunpack.c.l.b16 %v792
    %v2336 = vunpack.c.l.b16 %v793
    %v2337 = vunpack.c.l.b16 %v794
    %v2338 = vunpack.c.l.b16 %v795
    %v2339 = vunpack.c.l.b16 %v796
    %v2340 = vunpack.c.l.b16 %v797
    %v2341 = vunpack.c.l.b16 %v798
    %v2342 = vunpack.c.l.b16 %v799
    %v2343 = vunpack.c.l.b16 %v800
    %v2344 = vunpack.c.l.b16 %v801
    %v2345 = vunpack.c.l.b16 %v802
    %v2346 = vunpack.c.l.b16 %v803
    %v2347 = vunpack.c.l.b16 %v804
    %v2348 = vunpack.c.l.b16 %v805
    %v2349 = vunpack.c.l.b16 %v806
    %v2350 = vunpack.c.l.b16 %v807
    %v2351 = vunpack.c.l.b16 %v808
    %v2352 = vunpack.c.l.b16 %v809
    %v2353 = vunpack.c.l.b16 %v810
    %v2354 = vunpack.c.l.b16 %v811
    %v2355 = vunpack.c.l.b16 %v812
    %v2356 = vunpack.c.l.b16 %v813
    %v2357 = vunpack.c.l.b16 %v814
    %v2358 = vunpack.c.l.b16 %v815
    %v2359 = vunpack.c.l.b16 %v816
    %v2360 = vunpack.c.l.b16 %v817
    %v2361 = vunpack.c.l.b16 %v818
    %v2362 = vunpack.c.l.b16 %v819
    %v2363 = vunpack.c.l.b16 %v820
    %v2364 = vunpack.c.l.b16 %v821
    %v2365 = vunpack.c.l.b16 %v822
    %v2366 = vunpack.c.l.b16 %v823
    %v2367 = vunpack.c.l.b16 %v824
    %v2368 = vunpack.c.l.b16 %v825
    %v2369 = vunpack.c.l.b16 %v826
    %v2370 = vunpack.c.l.b16 %v827
    %v2371 = vunpack.c.l.b16 %v828
    %v2372 = vunpack.c.l.b16 %v829
    %v2373 = vunpack.c.l.b16 %v830
    %v2374 = vunpack.c.l.b16 %v831
    %v2375 = vunpack.c.l.b16 %v832
    %v2376 = vunpack.c.l.b16 %v833
    %v2377 = vunpack.c.l.b16 %v834
    %v2378 = vunpack.c.l.b16 %v835
    %v2379 = vunpack.c.l.b16 %v836
    %v2380 = vunpack.c.l.b16 %v837
    %v2381 = vunpack.c.l.b16 %v838
    %v2382 = vunpack.c.l.b16 %v839
    %v2383 = vunpack.c.l.b16 %v840
    %v2384 = vunpack.c.l.b16 %v841
    %v2385 = vunpack.c.l.b16 %v842
    %v2386 = vunpack.c.l.b16 %v843
    %v2387 = vunpack.c.l.b16 %v844
    %v2388 = vunpack.c.l.b16 %v845
    %v2389 = vunpack.c.l.b16 %v846
    %v2390 = vunpack.c.l.b16 %v847
    %v2391 = vunpack.c.l.b16 %v848
    %v2392 = vunpack.c.l.b16 %v849
    %v2393 = vunpack.c.l.b16 %v850
    %v2394 = vunpack.c.l.b16 %v851
    %v2395 = vunpack.c.l.b16 %v852
    %v2396 = vunpack.c.l.b16 %v853
    %v2397 = vunpack.c.l.b16 %v854
    %v2398 = vunpack.c.l.b16 %v855
    %v2399 = vunpack.c.l.b16 %v856
    %v2400 = vunpack.c.l.b16 %v857
    %v2401 = vunpack.c.l.b16 %v858
    %v2402 = vunpack.c.l.b16 %v859
    %v2403 = vunpack.c.l.b16 %v860
    %v2404 = vunpack.c.l.b16 %v861
    %v2405 = vunpack.c.l.b16 %v862
    %v2406 = vunpack.c.l.b16 %v863
    %v2407 = vunpack.c.l.b16 %v864
    %v2408 = vunpack.c.l.b16 %v865
    %v2409 = vunpack.c.l.b16 %v866
    %v2410 = vunpack.c.l.b16 %v867
    %v2411 = vunpack.c.l.b16 %v868
    %v2412 = vunpack.c.l.b16 %v869
    %v2413 = vunpack.c.l.b16 %v870
    %v2414 = vunpack.c.l.b16 %v871
    %v2415 = vunpack.c.l.b16 %v872
    %v2416 = vunpack.c.l.b16 %v873
    %v2417 = vunpack.c.l.b16 %v874
    %v2418 = vunpack.c.l.b16 %v875
    %v2419 = vunpack.c.l.b16 %v876
    %v2420 = vunpack.c.l.b16 %v877
    %v2421 = vunpack.c.l.b16 %v878
    %v2422 = vunpack.c.l.b16 %v879
    %v2423 = vunpack.c.l.b16 %v880
    %v2424 = vunpack.c.l.b16 %v881
    %v2425 = vunpack.c.l.b16 %v882
    %v2426 = vunpack.c.l.b16 %v883
    %v2427 = vunpack.c.l.b16 %v884
    %v2428 = vunpack.c.l.b16 %v885
    %v2429 = vunpack.c.l.b16 %v886
    %v2430 = vunpack.c.l.b16 %v887
    %v2431 = vunpack.c.l.b16 %v888
    %v2432 = vunpack.c.l.b16 %v889
    %v2433 = vunpack.c.l.b16 %v890
    %v2434 = vunpack.c.l.b16 %v891
    %v2435 = vpack.c.b16 %v1668, %v1667
    %v2436 = vpack.c.b16 %v1670, %v1669
    %v2437 = vpack.c.b16 %v1672, %v1671
    %v2438 = vpack.c.b16 %v1674, %v1673
    %v2439 = vpack.c.b16 %v1676, %v1675
    %v2440 = vpack.c.b16 %v1678, %v1677
    %v2441 = vpack.c.b16 %v1680, %v1679
    %v2442 = vpack.c.b16 %v1682, %v1681
    %v2443 = vpack.c.b16 %v1684, %v1683
    %v2444 = vpack.c.b16 %v1686, %v1685
    %v2445 = vpack.c.b16 %v1688, %v1687
    %v2446 = vpack.c.b16 %v1690, %v1689
    %v2447 = vpack.c.b16 %v1692, %v1691
    %v2448 = vpack.c.b16 %v1694, %v1693
    %v2449 = vpack.c.b16 %v1696, %v1695
    %v2450 = vpack.c.b16 %v1698, %v1697
    %v2451 = vpack.c.b16 %v1700, %v1699
    %v2452 = vpack.c.b16 %v1702, %v1701
    %v2453 = vpack.c.b16 %v1704, %v1703
    %v2454 = vpack.c.b16 %v1706, %v1705
    %v2455 = vpack.c.b16 %v1708, %v1707
    %v2456 = vpack.c.b16 %v1710, %v1709
    %v2457 = vpack.c.b16 %v1712, %v1711
    %v2458 = vpack.c.b16 %v1714, %v1713
    %v2459 = vpack.c.b16 %v1716, %v1715
    %v2460 = vpack.c.b16 %v1718, %v1717
    %v2461 = vpack.c.b16 %v1720, %v1719
    %v2462 = vpack.c.b16 %v1722, %v1721
    %v2463 = vpack.c.b16 %v1724, %v1723
    %v2464 = vpack.c.b16 %v1726, %v1725
    %v2465 = vpack.c.b16 %v1728, %v1727
    %v2466 = vpack.c.b16 %v1730, %v1729
    %v2467 = vpack.c.b16 %v1732, %v1731
    %v2468 = vpack.c.b16 %v1734, %v1733
    %v2469 = vpack.c.b16 %v1736, %v1735
    %v2470 = vpack.c.b16 %v1738, %v1737
    %v2471 = vpack.c.b16 %v1740, %v1739
    %v2472 = vpack.c.b16 %v1742, %v1741
    %v2473 = vpack.c.b16 %v1744, %v1743
    %v2474 = vpack.c.b16 %v1746, %v1745
    %v2475 = vpack.c.b16 %v1748, %v1747
    %v2476 = vpack.c.b16 %v1750, %v1749
    %v2477 = vpack.c.b16 %v1752, %v1751
    %v2478 = vpack.c.b16 %v1754, %v1753
    %v2479 = vpack.c.b16 %v1756, %v1755
    %v2480 = vpack.c.b16 %v1758, %v1757
    %v2481 = vpack.c.b16 %v1760, %v1759
    %v2482 = vpack.c.b16 %v1762, %v1761
    %v2483 = vpack.c.b16 %v1764, %v1763
    %v2484 = vpack.c.b16 %v1766, %v1765
    %v2485 = vpack.c.b16 %v1768, %v1767
    %v2486 = vpack.c.b16 %v1770, %v1769
    %v2487 = vpack.c.b16 %v1772, %v1771
    %v2488 = vpack.c.b16 %v1774, %v1773
    %v2489 = vpack.c.b16 %v1776, %v1775
    %v2490 = vpack.c.b16 %v1778, %v1777
    %v2491 = vpack.c.b16 %v1780, %v1779
    %v2492 = vpack.c.b16 %v1782, %v1781
    %v2493 = vpack.c.b16 %v1784, %v1783
    %v2494 = vpack.c.b16 %v1786, %v1785
    %v2495 = vpack.c.b16 %v1788, %v1787
    %v2496 = vpack.c.b16 %v1790, %v1789
    %v2497 = vpack.c.b16 %v1792, %v1791
    %v2498 = vpack.c.b16 %v1794, %v1793
    %v2499 = vpack.c.b16 %v1796, %v1795
    %v2500 = vpack.c.b16 %v1798, %v1797
    %v2501 = vpack.c.b16 %v1800, %v1799
    %v2502 = vpack.c.b16 %v1802, %v1801
    %v2503 = vpack.c.b16 %v1804, %v1803
    %v2504 = vpack.c.b16 %v1806, %v1805
    %v2505 = vpack.c.b16 %v1808, %v1807
    %v2506 = vpack.c.b16 %v1810, %v1809
    %v2507 = vpack.c.b16 %v1812, %v1811
    %v2508 = vpack.c.b16 %v1814, %v1813
    %v2509 = vpack.c.b16 %v1816, %v1815
    %v2510 = vpack.c.b16 %v1818, %v1817
    %v2511 = vpack.c.b16 %v1820, %v1819
    %v2512 = vpack.c.b16 %v1822, %v1821
    %v2513 = vpack.c.b16 %v1824, %v1823
    %v2514 = vpack.c.b16 %v1826, %v1825
    %v2515 = vpack.c.b16 %v1828, %v1827
    %v2516 = vpack.c.b16 %v1830, %v1829
    %v2517 = vpack.c.b16 %v1832, %v1831
    %v2518 = vpack.c.b16 %v1834, %v1833
    %v2519 = vpack.c.b16 %v1836, %v1835
    %v2520 = vpack.c.b16 %v1838, %v1837
    %v2521 = vpack.c.b16 %v1840, %v1839
    %v2522 = vpack.c.b16 %v1842, %v1841
    %v2523 = vpack.c.b16 %v1844, %v1843
    %v2524 = vpack.c.b16 %v1846, %v1845
    %v2525 = vpack.c.b16 %v1848, %v1847
    %v2526 = vpack.c.b16 %v1850, %v1849
    %v2527 = vpack.c.b16 %v1852, %v1851
    %v2528 = vpack.c.b16 %v1854, %v1853
    %v2529 = vpack.c.b16 %v1856, %v1855
    %v2530 = vpack.c.b16 %v1858, %v1857
    %v2531 = vpack.c.b16 %v1860, %v1859
    %v2532 = vpack.c.b16 %v1862, %v1861
    %v2533 = vpack.c.b16 %v1864, %v1863
    %v2534 = vpack.c.b16 %v1866, %v1865
    %v2535 = vpack.c.b16 %v1868, %v1867
    %v2536 = vpack.c.b16 %v1870, %v1869
    %v2537 = vpack.c.b16 %v1872, %v1871
    %v2538 = vpack.c.b16 %v1874, %v1873
    %v2539 = vpack.c.b16 %v1876, %v1875
    %v2540 = vpack.c.b16 %v1878, %v1877
    %v2541 = vpack.c.b16 %v1880, %v1879
    %v2542 = vpack.c.b16 %v1882, %v1881
    %v2543 = vpack.c.b16 %v1884, %v1883
    %v2544 = vpack.c.b16 %v1886, %v1885
    %v2545 = vpack.c.b16 %v1888, %v1887
    %v2546 = vpack.c.b16 %v1890, %v1889
    %v2547 = vpack.c.b16 %v1892, %v1891
    %v2548 = vpack.c.b16 %v1894, %v1893
    %v2549 = vpack.c.b16 %v1896, %v1895
    %v2550 = vpack.c.b16 %v1898, %v1897
    %v2551 = vpack.c.b16 %v1900, %v1899
    %v2552 = vpack.c.b16 %v1902, %v1901
    %v2553 = vpack.c.b16 %v1904, %v1903
    %v2554 = vpack.c.b16 %v1906, %v1905
    %v2555 = vpack.c.b16 %v1908, %v1907
    %v2556 = vpack.c.b16 %v1910, %v1909
    %v2557 = vpack.c.b16 %v1912, %v1911
    %v2558 = vpack.c.b16 %v1914, %v1913
    %v2559 = vpack.c.b16 %v1916, %v1915
    %v2560 = vpack.c.b16 %v1918, %v1917
    %v2561 = vpack.c.b16 %v1920, %v1919
    %v2562 = vpack.c.b16 %v1922, %v1921
    %v2563 = vpack.c.b16 %v1924, %v1923
    %v2564 = vpack.c.b16 %v1926, %v1925
    %v2565 = vpack.c.b16 %v1928, %v1927
    %v2566 = vpack.c.b16 %v1930, %v1929
    %v2567 = vpack.c.b16 %v1932, %v1931
    %v2568 = vpack.c.b16 %v1934, %v1933
    %v2569 = vpack.c.b16 %v1936, %v1935
    %v2570 = vpack.c.b16 %v1938, %v1937
    %v2571 = vpack.c.b16 %v1940, %v1939
    %v2572 = vpack.c.b16 %v1942, %v1941
    %v2573 = vpack.c.b16 %v1944, %v1943
    %v2574 = vpack.c.b16 %v1946, %v1945
    %v2575 = vpack.c.b16 %v1948, %v1947
    %v2576 = vpack.c.b16 %v1950, %v1949
    %v2577 = vpack.c.b16 %v1952, %v1951
    %v2578 = vpack.c.b16 %v1954, %v1953
    %v2579 = vpack.c.b16 %v1956, %v1955
    %v2580 = vpack.c.b16 %v1958, %v1957
    %v2581 = vpack.c.b16 %v1960, %v1959
    %v2582 = vpack.c.b16 %v1962, %v1961
    %v2583 = vpack.c.b16 %v1964, %v1963
    %v2584 = vpack.c.b16 %v1966, %v1965
    %v2585 = vpack.c.b16 %v1968, %v1967
    %v2586 = vpack.c.b16 %v1970, %v1969
    %v2587 = vpack.c.b16 %v1972, %v1971
    %v2588 = vpack.c.b16 %v1974, %v1973
    %v2589 = vpack.c.b16 %v1976, %v1975
    %v2590 = vpack.c.b16 %v1978, %v1977
    %v2591 = vpack.c.b16 %v1980, %v1979
    %v2592 = vpack.c.b16 %v1982, %v1981
    %v2593 = vpack.c.b16 %v1984, %v1983
    %v2594 = vpack.c.b16 %v1986, %v1985
    %v2595 = vpack.c.b16 %v1988, %v1987
    %v2596 = vpack.c.b16 %v1990, %v1989
    %v2597 = vpack.c.b16 %v1992, %v1991
    %v2598 = vpack.c.b16 %v1994, %v1993
    %v2599 = vpack.c.b16 %v1996, %v1995
    %v2600 = vpack.c.b16 %v1998, %v1997
    %v2601 = vpack.c.b16 %v2000, %v1999
    %v2602 = vpack.c.b16 %v2002, %v2001
    %v2603 = vpack.c.b16 %v2004, %v2003
    %v2604 = vpack.c.b16 %v2006, %v2005
    %v2605 = vpack.c.b16 %v2008, %v2007
    %v2606 = vpack.c.b16 %v2010, %v2009
    %v2607 = vpack.c.b16 %v2012, %v2011
    %v2608 = vpack.c.b16 %v2014, %v2013
    %v2609 = vpack.c.b16 %v2016, %v2015
    %v2610 = vpack.c.b16 %v2018, %v2017
    %v2611 = vpack.c.b16 %v2020, %v2019
    %v2612 = vpack.c.b16 %v2022, %v2021
    %v2613 = vpack.c.b16 %v2024, %v2023
    %v2614 = vpack.c.b16 %v2026, %v2025
    %v2615 = vpack.c.b16 %v2028, %v2027
    %v2616 = vpack.c.b16 %v2030, %v2029
    %v2617 = vpack.c.b16 %v2032, %v2031
    %v2618 = vpack.c.b16 %v2034, %v2033
    %v2619 = vpack.c.b16 %v2036, %v2035
    %v2620 = vpack.c.b16 %v2038, %v2037
    %v2621 = vpack.c.b16 %v2040, %v2039
    %v2622 = vpack.c.b16 %v2042, %v2041
    %v2623 = vpack.c.b16 %v2044, %v2043
    %v2624 = vpack.c.b16 %v2046, %v2045
    %v2625 = vpack.c.b16 %v2048, %v2047
    %v2626 = vpack.c.b16 %v2050, %v2049
    %v2627 = vpack.c.b16 %v2052, %v2051
    %v2628 = vpack.c.b16 %v2054, %v2053
    %v2629 = vpack.c.b16 %v2056, %v2055
    %v2630 = vpack.c.b16 %v2058, %v2057
    %v2631 = vpack.c.b16 %v2060, %v2059
    %v2632 = vpack.c.b16 %v2062, %v2061
    %v2633 = vpack.c.b16 %v2064, %v2063
    %v2634 = vpack.c.b16 %v2066, %v2065
    %v2635 = vpack.c.b16 %v2068, %v2067
    %v2636 = vpack.c.b16 %v2070, %v2069
    %v2637 = vpack.c.b16 %v2072, %v2071
    %v2638 = vpack.c.b16 %v2074, %v2073
    %v2639 = vpack.c.b16 %v2076, %v2075
    %v2640 = vpack.c.b16 %v2078, %v2077
    %v2641 = vpack.c.b16 %v2080, %v2079
    %v2642 = vpack.c.b16 %v2082, %v2081
    %v2643 = vpack.c.b16 %v2084, %v2083
    %v2644 = vpack.c.b16 %v2086, %v2085
    %v2645 = vpack.c.b16 %v2088, %v2087
    %v2646 = vpack.c.b16 %v2090, %v2089
    %v2647 = vpack.c.b16 %v2092, %v2091
    %v2648 = vpack.c.b16 %v2094, %v2093
    %v2649 = vpack.c.b16 %v2096, %v2095
    %v2650 = vpack.c.b16 %v2098, %v2097
    %v2651 = vpack.c.b16 %v2100, %v2099
    %v2652 = vpack.c.b16 %v2102, %v2101
    %v2653 = vpack.c.b16 %v2104, %v2103
    %v2654 = vpack.c.b16 %v2106, %v2105
    %v2655 = vpack.c.b16 %v2108, %v2107
    %v2656 = vpack.c.b16 %v2110, %v2109
    %v2657 = vpack.c.b16 %v2112, %v2111
    %v2658 = vpack.c.b16 %v2114, %v2113
    %v2659 = vpack.c.b16 %v2116, %v2115
    %v2660 = vpack.c.b16 %v2118, %v2117
    %v2661 = vpack.c.b16 %v2120, %v2119
    %v2662 = vpack.c.b16 %v2122, %v2121
    %v2663 = vpack.c.b16 %v2124, %v2123
    %v2664 = vpack.c.b16 %v2126, %v2125
    %v2665 = vpack.c.b16 %v2128, %v2127
    %v2666 = vpack.c.b16 %v2130, %v2129
    %v2667 = vpack.c.b16 %v2132, %v2131
    %v2668 = vpack.c.b16 %v2134, %v2133
    %v2669 = vpack.c.b16 %v2136, %v2135
    %v2670 = vpack.c.b16 %v2138, %v2137
    %v2671 = vpack.c.b16 %v2140, %v2139
    %v2672 = vpack.c.b16 %v2142, %v2141
    %v2673 = vpack.c.b16 %v2144, %v2143
    %v2674 = vpack.c.b16 %v2146, %v2145
    %v2675 = vpack.c.b16 %v2148, %v2147
    %v2676 = vpack.c.b16 %v2150, %v2149
    %v2677 = vpack.c.b16 %v2152, %v2151
    %v2678 = vpack.c.b16 %v2154, %v2153
    %v2679 = vpack.c.b16 %v2156, %v2155
    %v2680 = vpack.c.b16 %v2158, %v2157
    %v2681 = vpack.c.b16 %v2160, %v2159
    %v2682 = vpack.c.b16 %v2162, %v2161
    %v2683 = vpack.c.b16 %v2164, %v2163
    %v2684 = vpack.c.b16 %v2166, %v2165
    %v2685 = vpack.c.b16 %v2168, %v2167
    %v2686 = vpack.c.b16 %v2170, %v2169
    %v2687 = vpack.c.b16 %v2172, %v2171
    %v2688 = vpack.c.b16 %v2174, %v2173
    %v2689 = vpack.c.b16 %v2176, %v2175
    %v2690 = vpack.c.b16 %v2178, %v2177
    %v2691 = vpack.c.b16 %v2180, %v2179
    %v2692 = vpack.c.b16 %v2182, %v2181
    %v2693 = vpack.c.b16 %v2184, %v2183
    %v2694 = vpack.c.b16 %v2186, %v2185
    %v2695 = vpack.c.b16 %v2188, %v2187
    %v2696 = vpack.c.b16 %v2190, %v2189
    %v2697 = vpack.c.b16 %v2192, %v2191
    %v2698 = vpack.c.b16 %v2194, %v2193
    %v2699 = vpack.c.b16 %v2196, %v2195
    %v2700 = vpack.c.b16 %v2198, %v2197
    %v2701 = vpack.c.b16 %v2200, %v2199
    %v2702 = vpack.c.b16 %v2202, %v2201
    %v2703 = vpack.c.b16 %v2204, %v2203
    %v2704 = vpack.c.b16 %v2206, %v2205
    %v2705 = vpack.c.b16 %v2208, %v2207
    %v2706 = vpack.c.b16 %v2210, %v2209
    %v2707 = vpack.c.b16 %v2212, %v2211
    %v2708 = vpack.c.b16 %v2214, %v2213
    %v2709 = vpack.c.b16 %v2216, %v2215
    %v2710 = vpack.c.b16 %v2218, %v2217
    %v2711 = vpack.c.b16 %v2220, %v2219
    %v2712 = vpack.c.b16 %v2222, %v2221
    %v2713 = vpack.c.b16 %v2224, %v2223
    %v2714 = vpack.c.b16 %v2226, %v2225
    %v2715 = vpack.c.b16 %v2228, %v2227
    %v2716 = vpack.c.b16 %v2230, %v2229
    %v2717 = vpack.c.b16 %v2232, %v2231
    %v2718 = vpack.c.b16 %v2234, %v2233
    %v2719 = vpack.c.b16 %v2236, %v2235
    %v2720 = vpack.c.b16 %v2238, %v2237
    %v2721 = vpack.c.b16 %v2240, %v2239
    %v2722 = vpack.c.b16 %v2242, %v2241
    %v2723 = vpack.c.b16 %v2244, %v2243
    %v2724 = vpack.c.b16 %v2246, %v2245
    %v2725 = vpack.c.b16 %v2248, %v2247
    %v2726 = vpack.c.b16 %v2250, %v2249
    %v2727 = vpack.c.b16 %v2252, %v2251
    %v2728 = vpack.c.b16 %v2254, %v2253
    %v2729 = vpack.c.b16 %v2256, %v2255
    %v2730 = vpack.c.b16 %v2258, %v2257
    %v2731 = vpack.c.b16 %v2260, %v2259
    %v2732 = vpack.c.b16 %v2262, %v2261
    %v2733 = vpack.c.b16 %v2264, %v2263
    %v2734 = vpack.c.b16 %v2266, %v2265
    %v2735 = vpack.c.b16 %v2268, %v2267
    %v2736 = vpack.c.b16 %v2270, %v2269
    %v2737 = vpack.c.b16 %v2272, %v2271
    %v2738 = vpack.c.b16 %v2274, %v2273
    %v2739 = vpack.c.b16 %v2276, %v2275
    %v2740 = vpack.c.b16 %v2278, %v2277
    %v2741 = vpack.c.b16 %v2280, %v2279
    %v2742 = vpack.c.b16 %v2282, %v2281
    %v2743 = vpack.c.b16 %v2284, %v2283
    %v2744 = vpack.c.b16 %v2286, %v2285
    %v2745 = vpack.c.b16 %v2288, %v2287
    %v2746 = vpack.c.b16 %v2290, %v2289
    %v2747 = vpack.c.b16 %v2292, %v2291
    %v2748 = vpack.c.b16 %v2294, %v2293
    %v2749 = vpack.c.b16 %v2296, %v2295
    %v2750 = vpack.c.b16 %v2298, %v2297
    %v2751 = vpack.c.b16 %v2300, %v2299
    %v2752 = vpack.c.b16 %v2302, %v2301
    %v2753 = vpack.c.b16 %v2304, %v2303
    %v2754 = vpack.c.b16 %v2306, %v2305
    %v2755 = vpack.c.b16 %v2308, %v2307
    %v2756 = vpack.c.b16 %v2310, %v2309
    %v2757 = vpack.c.b16 %v2312, %v2311
    %v2758 = vpack.c.b16 %v2314, %v2313
    %v2759 = vpack.c.b16 %v2316, %v2315
    %v2760 = vpack.c.b16 %v2318, %v2317
    %v2761 = vpack.c.b16 %v2320, %v2319
    %v2762 = vpack.c.b16 %v2322, %v2321
    %v2763 = vpack.c.b16 %v2324, %v2323
    %v2764 = vpack.c.b16 %v2326, %v2325
    %v2765 = vpack.c.b16 %v2328, %v2327
    %v2766 = vpack.c.b16 %v2330, %v2329
    %v2767 = vpack.c.b16 %v2332, %v2331
    %v2768 = vpack.c.b16 %v2334, %v2333
    %v2769 = vpack.c.b16 %v2336, %v2335
    %v2770 = vpack.c.b16 %v2338, %v2337
    %v2771 = vpack.c.b16 %v2340, %v2339
    %v2772 = vpack.c.b16 %v2342, %v2341
    %v2773 = vpack.c.b16 %v2344, %v2343
    %v2774 = vpack.c.b16 %v2346, %v2345
    %v2775 = vpack.c.b16 %v2348, %v2347
    %v2776 = vpack.c.b16 %v2350, %v2349
    %v2777 = vpack.c.b16 %v2352, %v2351
    %v2778 = vpack.c.b16 %v2354, %v2353
    %v2779 = vpack.c.b16 %v2356, %v2355
    %v2780 = vpack.c.b16 %v2358, %v2357
    %v2781 = vpack.c.b16 %v2360, %v2359
    %v2782 = vpack.c.b16 %v2362, %v2361
    %v2783 = vpack.c.b16 %v2364, %v2363
    %v2784 = vpack.c.b16 %v2366, %v2365
    %v2785 = vpack.c.b16 %v2368, %v2367
    %v2786 = vpack.c.b16 %v2370, %v2369
    %v2787 = vpack.c.b16 %v2372, %v2371
    %v2788 = vpack.c.b16 %v2374, %v2373
    %v2789 = vpack.c.b16 %v2376, %v2375
    %v2790 = vpack.c.b16 %v2378, %v2377
    %v2791 = vpack.c.b16 %v2380, %v2379
    %v2792 = vpack.c.b16 %v2382, %v2381
    %v2793 = vpack.c.b16 %v2384, %v2383
    %v2794 = vpack.c.b16 %v2386, %v2385
    %v2795 = vpack.c.b16 %v2388, %v2387
    %v2796 = vpack.c.b16 %v2390, %v2389
    %v2797 = vpack.c.b16 %v2392, %v2391
    %v2798 = vpack.c.b16 %v2394, %v2393
    %v2799 = vpack.c.b16 %v2396, %v2395
    %v2800 = vpack.c.b16 %v2398, %v2397
    %v2801 = vpack.c.b16 %v2400, %v2399
    %v2802 = vpack.c.b16 %v2402, %v2401
    %v2803 = vpack.c.b16 %v2404, %v2403
    %v2804 = vpack.c.b16 %v2406, %v2405
    %v2805 = vpack.c.b16 %v2408, %v2407
    %v2806 = vpack.c.b16 %v2410, %v2409
    %v2807 = vpack.c.b16 %v2412, %v2411
    %v2808 = vpack.c.b16 %v2414, %v2413
    %v2809 = vpack.c.b16 %v2416, %v2415
    %v2810 = vpack.c.b16 %v2418, %v2417
    %v2811 = vpack.c.b16 %v2420, %v2419
    %v2812 = vpack.c.b16 %v2422, %v2421
    %v2813 = vpack.c.b16 %v2424, %v2423
    %v2814 = vpack.c.b16 %v2426, %v2425
    %v2815 = vpack.c.b16 %v2428, %v2427
    %v2816 = vpack.c.b16 %v2430, %v2429
    %v2817 = vpack.c.b16 %v2432, %v2431
    %v2818 = vpack.c.b16 %v2434, %v2433
    %3203 = vmatprep.subr.bf16.mxu0 0
    %3204 = vmatpush1.bf16.msra.mxu0 %v2442
    %3205 = vmatprep.subr.bf16.mxu0 0
    %3206 = vmatpush1.bf16.msra.mxu0 %v2441
    %3207 = vmatprep.subr.bf16.mxu0 0
    %3208 = vmatpush1.bf16.msra.mxu0 %v2440
    %3209 = vmatprep.subr.bf16.mxu0 0
    %3210 = vmatpush1.bf16.msra.mxu0 %v2439
    %3211 = vmatprep.subr.bf16.mxu0 0
    %3212 = vmatpush1.bf16.msra.mxu0 %v2438
    %3213 = vmatprep.subr.bf16.mxu0 0
    %3214 = vmatpush1.bf16.msra.mxu0 %v2437
    %3215 = vmatprep.subr.bf16.mxu0 0
    %3216 = vmatpush1.bf16.msra.mxu0 %v2436
    %3217 = vmatprep.subr.bf16.mxu0 0
    %3218 = vmatpush1.bf16.msra.mxu0 %v2435
    %3219 = vmatprep.subr.bf16.mxu0 0
    %3220 = vmatpush2.bf16.msra.mxu0 %v2450
    %3221 = vmatprep.subr.bf16.mxu0 0
    %3222 = vmatpush2.bf16.msra.mxu0 %v2449
    %3223 = vmatprep.subr.bf16.mxu0 0
    %3224 = vmatpush2.bf16.msra.mxu0 %v2448
    %3225 = vmatprep.subr.bf16.mxu0 0
    %3226 = vmatpush2.bf16.msra.mxu0 %v2447
    %3227 = vmatprep.subr.bf16.mxu0 0
    %3228 = vmatpush2.bf16.msra.mxu0 %v2446
    %3229 = vmatprep.subr.bf16.mxu0 0
    %3230 = vmatpush2.bf16.msra.mxu0 %v2445
    %3231 = vmatprep.subr.bf16.mxu0 0
    %3232 = vmatpush2.bf16.msra.mxu0 %v2444
    %3233 = vmatprep.subr.bf16.mxu0 0
    %3234 = vmatpush2.bf16.msra.mxu0 %v2443
    %3235 = vmatprep.mubr.bf16.mxu0 %v77
    %3236 = vmatmul.mubr.bf16.gmra.mxu0 %v76
    %v3237 = vpop.f32.mrf.mxu0
    %v3238 = vadd.f32 %v897, %v3237
    %v3239 = vpop.f32.mrf.mxu0
    %v3240 = vpop.f32.mrf.mxu0
    %v3241 = vpop.f32.mrf.mxu0
    %3242 = vdwg.mxu0
    %3243 = vmatprep.subr.bf16.mxu0 0
    %3244 = vmatpush1.bf16.msra.mxu0 %v2458
    %3245 = vmatprep.subr.bf16.mxu0 0
    %3246 = vmatpush1.bf16.msra.mxu0 %v2457
    %3247 = vmatprep.subr.bf16.mxu0 0
    %3248 = vmatpush1.bf16.msra.mxu0 %v2456
    %3249 = vmatprep.subr.bf16.mxu0 0
    %3250 = vmatpush1.bf16.msra.mxu0 %v2455
    %3251 = vmatprep.subr.bf16.mxu0 0
    %3252 = vmatpush1.bf16.msra.mxu0 %v2454
    %3253 = vmatprep.subr.bf16.mxu0 0
    %3254 = vmatpush1.bf16.msra.mxu0 %v2453
    %3255 = vmatprep.subr.bf16.mxu0 0
    %3256 = vmatpush1.bf16.msra.mxu0 %v2452
    %3257 = vmatprep.subr.bf16.mxu0 0
    %3258 = vmatpush1.bf16.msra.mxu0 %v2451
    %3259 = vmatprep.subr.bf16.mxu0 0
    %3260 = vmatpush2.bf16.msra.mxu0 %v2466
    %3261 = vmatprep.subr.bf16.mxu0 0
    %3262 = vmatpush2.bf16.msra.mxu0 %v2465
    %3263 = vmatprep.subr.bf16.mxu0 0
    %3264 = vmatpush2.bf16.msra.mxu0 %v2464
    %3265 = vmatprep.subr.bf16.mxu0 0
    %3266 = vmatpush2.bf16.msra.mxu0 %v2463
    %3267 = vmatprep.subr.bf16.mxu0 0
    %3268 = vmatpush2.bf16.msra.mxu0 %v2462
    %3269 = vmatprep.subr.bf16.mxu0 0
    %3270 = vmatpush2.bf16.msra.mxu0 %v2461
    %3271 = vmatprep.subr.bf16.mxu0 0
    %3272 = vmatpush2.bf16.msra.mxu0 %v2460
    %3273 = vmatprep.subr.bf16.mxu0 0
    %3274 = vmatpush2.bf16.msra.mxu0 %v2459
    %3275 = vmatprep.mubr.bf16.mxu0 %v79
    %3276 = vmatmul.mubr.bf16.gmra.mxu0 %v78
    %v3277 = vpop.f32.mrf.mxu0
    %v3278 = vadd.f32 %v3238, %v3277
    %v3279 = vpop.f32.mrf.mxu0
    %v3280 = vpop.f32.mrf.mxu0
    %v3281 = vpop.f32.mrf.mxu0
    %3282 = vdwg.mxu0
    %3283 = vmatprep.subr.bf16.mxu0 0
    %3284 = vmatpush1.bf16.msra.mxu0 %v2474
    %3285 = vmatprep.subr.bf16.mxu0 0
    %3286 = vmatpush1.bf16.msra.mxu0 %v2473
    %3287 = vmatprep.subr.bf16.mxu0 0
    %3288 = vmatpush1.bf16.msra.mxu0 %v2472
    %3289 = vmatprep.subr.bf16.mxu0 0
    %3290 = vmatpush1.bf16.msra.mxu0 %v2471
    %3291 = vmatprep.subr.bf16.mxu0 0
    %3292 = vmatpush1.bf16.msra.mxu0 %v2470
    %3293 = vmatprep.subr.bf16.mxu0 0
    %3294 = vmatpush1.bf16.msra.mxu0 %v2469
    %3295 = vmatprep.subr.bf16.mxu0 0
    %3296 = vmatpush1.bf16.msra.mxu0 %v2468
    %3297 = vmatprep.subr.bf16.mxu0 0
    %3298 = vmatpush1.bf16.msra.mxu0 %v2467
    %3299 = vmatprep.subr.bf16.mxu0 0
    %3300 = vmatpush2.bf16.msra.mxu0 %v2482
    %3301 = vmatprep.subr.bf16.mxu0 0
    %3302 = vmatpush2.bf16.msra.mxu0 %v2481
    %3303 = vmatprep.subr.bf16.mxu0 0
    %3304 = vmatpush2.bf16.msra.mxu0 %v2480
    %3305 = vmatprep.subr.bf16.mxu0 0
    %3306 = vmatpush2.bf16.msra.mxu0 %v2479
    %3307 = vmatprep.subr.bf16.mxu0 0
    %3308 = vmatpush2.bf16.msra.mxu0 %v2478
    %3309 = vmatprep.subr.bf16.mxu0 0
    %3310 = vmatpush2.bf16.msra.mxu0 %v2477
    %3311 = vmatprep.subr.bf16.mxu0 0
    %3312 = vmatpush2.bf16.msra.mxu0 %v2476
    %3313 = vmatprep.subr.bf16.mxu0 0
    %3314 = vmatpush2.bf16.msra.mxu0 %v2475
    %3315 = vmatprep.mubr.bf16.mxu0 %v81
    %3316 = vmatmul.mubr.bf16.gmra.mxu0 %v80
    %v3317 = vpop.f32.mrf.mxu0
    %v3318 = vadd.f32 %v3278, %v3317
    %v3319 = vpop.f32.mrf.mxu0
    %v3320 = vpop.f32.mrf.mxu0
    %v3321 = vpop.f32.mrf.mxu0
    %3322 = vdwg.mxu0
    %3323 = vmatprep.subr.bf16.mxu0 0
    %3324 = vmatpush1.bf16.msra.mxu0 %v2490
    %3325 = vmatprep.subr.bf16.mxu0 0
    %3326 = vmatpush1.bf16.msra.mxu0 %v2489
    %3327 = vmatprep.subr.bf16.mxu0 0
    %3328 = vmatpush1.bf16.msra.mxu0 %v2488
    %3329 = vmatprep.subr.bf16.mxu0 0
    %3330 = vmatpush1.bf16.msra.mxu0 %v2487
    %3331 = vmatprep.subr.bf16.mxu0 0
    %3332 = vmatpush1.bf16.msra.mxu0 %v2486
    %3333 = vmatprep.subr.bf16.mxu0 0
    %3334 = vmatpush1.bf16.msra.mxu0 %v2485
    %3335 = vmatprep.subr.bf16.mxu0 0
    %3336 = vmatpush1.bf16.msra.mxu0 %v2484
    %3337 = vmatprep.subr.bf16.mxu0 0
    %3338 = vmatpush1.bf16.msra.mxu0 %v2483
    %3339 = vmatprep.subr.bf16.mxu0 0
    %3340 = vmatpush2.bf16.msra.mxu0 %v2498
    %3341 = vmatprep.subr.bf16.mxu0 0
    %3342 = vmatpush2.bf16.msra.mxu0 %v2497
    %3343 = vmatprep.subr.bf16.mxu0 0
    %3344 = vmatpush2.bf16.msra.mxu0 %v2496
    %3345 = vmatprep.subr.bf16.mxu0 0
    %3346 = vmatpush2.bf16.msra.mxu0 %v2495
    %3347 = vmatprep.subr.bf16.mxu0 0
    %3348 = vmatpush2.bf16.msra.mxu0 %v2494
    %3349 = vmatprep.subr.bf16.mxu0 0
    %3350 = vmatpush2.bf16.msra.mxu0 %v2493
    %3351 = vmatprep.subr.bf16.mxu0 0
    %3352 = vmatpush2.bf16.msra.mxu0 %v2492
    %3353 = vmatprep.subr.bf16.mxu0 0
    %3354 = vmatpush2.bf16.msra.mxu0 %v2491
    %3355 = vmatprep.mubr.bf16.mxu0 %v83
    %3356 = vmatmul.mubr.bf16.gmra.mxu0 %v82
    %v3357 = vpop.f32.mrf.mxu0
    %v3358 = vadd.f32 %v3318, %v3357
    %v3359 = vpop.f32.mrf.mxu0
    %v3360 = vpop.f32.mrf.mxu0
    %v3361 = vpop.f32.mrf.mxu0
    %3362 = vdwg.mxu0
    %3363 = vmatprep.subr.bf16.mxu0 0
    %3364 = vmatpush1.bf16.msra.mxu0 %v2506
    %3365 = vmatprep.subr.bf16.mxu0 0
    %3366 = vmatpush1.bf16.msra.mxu0 %v2505
    %3367 = vmatprep.subr.bf16.mxu0 0
    %3368 = vmatpush1.bf16.msra.mxu0 %v2504
    %3369 = vmatprep.subr.bf16.mxu0 0
    %3370 = vmatpush1.bf16.msra.mxu0 %v2503
    %3371 = vmatprep.subr.bf16.mxu0 0
    %3372 = vmatpush1.bf16.msra.mxu0 %v2502
    %3373 = vmatprep.subr.bf16.mxu0 0
    %3374 = vmatpush1.bf16.msra.mxu0 %v2501
    %3375 = vmatprep.subr.bf16.mxu0 0
    %3376 = vmatpush1.bf16.msra.mxu0 %v2500
    %3377 = vmatprep.subr.bf16.mxu0 0
    %3378 = vmatpush1.bf16.msra.mxu0 %v2499
    %3379 = vmatprep.subr.bf16.mxu0 0
    %3380 = vmatpush2.bf16.msra.mxu0 %v2514
    %3381 = vmatprep.subr.bf16.mxu0 0
    %3382 = vmatpush2.bf16.msra.mxu0 %v2513
    %3383 = vmatprep.subr.bf16.mxu0 0
    %3384 = vmatpush2.bf16.msra.mxu0 %v2512
    %3385 = vmatprep.subr.bf16.mxu0 0
    %3386 = vmatpush2.bf16.msra.mxu0 %v2511
    %3387 = vmatprep.subr.bf16.mxu0 0
    %3388 = vmatpush2.bf16.msra.mxu0 %v2510
    %3389 = vmatprep.subr.bf16.mxu0 0
    %3390 = vmatpush2.bf16.msra.mxu0 %v2509
    %3391 = vmatprep.subr.bf16.mxu0 0
    %3392 = vmatpush2.bf16.msra.mxu0 %v2508
    %3393 = vmatprep.subr.bf16.mxu0 0
    %3394 = vmatpush2.bf16.msra.mxu0 %v2507
    %3395 = vmatprep.mubr.bf16.mxu0 %v85
    %3396 = vmatmul.mubr.bf16.gmra.mxu0 %v84
    %v3397 = vpop.f32.mrf.mxu0
    %v3398 = vadd.f32 %v3358, %v3397
    %v3399 = vpop.f32.mrf.mxu0
    %v3400 = vpop.f32.mrf.mxu0
    %v3401 = vpop.f32.mrf.mxu0
    %3402 = vdwg.mxu0
    %3403 = vmatprep.subr.bf16.mxu0 0
    %3404 = vmatpush1.bf16.msra.mxu0 %v2522
    %3405 = vmatprep.subr.bf16.mxu0 0
    %3406 = vmatpush1.bf16.msra.mxu0 %v2521
    %3407 = vmatprep.subr.bf16.mxu0 0
    %3408 = vmatpush1.bf16.msra.mxu0 %v2520
    %3409 = vmatprep.subr.bf16.mxu0 0
    %3410 = vmatpush1.bf16.msra.mxu0 %v2519
    %3411 = vmatprep.subr.bf16.mxu0 0
    %3412 = vmatpush1.bf16.msra.mxu0 %v2518
    %3413 = vmatprep.subr.bf16.mxu0 0
    %3414 = vmatpush1.bf16.msra.mxu0 %v2517
    %3415 = vmatprep.subr.bf16.mxu0 0
    %3416 = vmatpush1.bf16.msra.mxu0 %v2516
    %3417 = vmatprep.subr.bf16.mxu0 0
    %3418 = vmatpush1.bf16.msra.mxu0 %v2515
    %3419 = vmatprep.subr.bf16.mxu0 0
    %3420 = vmatpush2.bf16.msra.mxu0 %v2530
    %3421 = vmatprep.subr.bf16.mxu0 0
    %3422 = vmatpush2.bf16.msra.mxu0 %v2529
    %3423 = vmatprep.subr.bf16.mxu0 0
    %3424 = vmatpush2.bf16.msra.mxu0 %v2528
    %3425 = vmatprep.subr.bf16.mxu0 0
    %3426 = vmatpush2.bf16.msra.mxu0 %v2527
    %3427 = vmatprep.subr.bf16.mxu0 0
    %3428 = vmatpush2.bf16.msra.mxu0 %v2526
    %3429 = vmatprep.subr.bf16.mxu0 0
    %3430 = vmatpush2.bf16.msra.mxu0 %v2525
    %3431 = vmatprep.subr.bf16.mxu0 0
    %3432 = vmatpush2.bf16.msra.mxu0 %v2524
    %3433 = vmatprep.subr.bf16.mxu0 0
    %3434 = vmatpush2.bf16.msra.mxu0 %v2523
    %3435 = vmatprep.mubr.bf16.mxu0 %v87
    %3436 = vmatmul.mubr.bf16.gmra.mxu0 %v86
    %v3437 = vpop.f32.mrf.mxu0
    %v3438 = vadd.f32 %v3398, %v3437
    %v3439 = vpop.f32.mrf.mxu0
    %v3440 = vpop.f32.mrf.mxu0
    %v3441 = vpop.f32.mrf.mxu0
    %3442 = vdwg.mxu0
    %3443 = vmatprep.subr.bf16.mxu0 0
    %3444 = vmatpush1.bf16.msra.mxu0 %v2538
    %3445 = vmatprep.subr.bf16.mxu0 0
    %3446 = vmatpush1.bf16.msra.mxu0 %v2537
    %3447 = vmatprep.subr.bf16.mxu0 0
    %3448 = vmatpush1.bf16.msra.mxu0 %v2536
    %3449 = vmatprep.subr.bf16.mxu0 0
    %3450 = vmatpush1.bf16.msra.mxu0 %v2535
    %3451 = vmatprep.subr.bf16.mxu0 0
    %3452 = vmatpush1.bf16.msra.mxu0 %v2534
    %3453 = vmatprep.subr.bf16.mxu0 0
    %3454 = vmatpush1.bf16.msra.mxu0 %v2533
    %3455 = vmatprep.subr.bf16.mxu0 0
    %3456 = vmatpush1.bf16.msra.mxu0 %v2532
    %3457 = vmatprep.subr.bf16.mxu0 0
    %3458 = vmatpush1.bf16.msra.mxu0 %v2531
    %3459 = vmatprep.subr.bf16.mxu0 0
    %3460 = vmatpush2.bf16.msra.mxu0 %v2546
    %3461 = vmatprep.subr.bf16.mxu0 0
    %3462 = vmatpush2.bf16.msra.mxu0 %v2545
    %3463 = vmatprep.subr.bf16.mxu0 0
    %3464 = vmatpush2.bf16.msra.mxu0 %v2544
    %3465 = vmatprep.subr.bf16.mxu0 0
    %3466 = vmatpush2.bf16.msra.mxu0 %v2543
    %3467 = vmatprep.subr.bf16.mxu0 0
    %3468 = vmatpush2.bf16.msra.mxu0 %v2542
    %3469 = vmatprep.subr.bf16.mxu0 0
    %3470 = vmatpush2.bf16.msra.mxu0 %v2541
    %3471 = vmatprep.subr.bf16.mxu0 0
    %3472 = vmatpush2.bf16.msra.mxu0 %v2540
    %3473 = vmatprep.subr.bf16.mxu0 0
    %3474 = vmatpush2.bf16.msra.mxu0 %v2539
    %3475 = vmatprep.mubr.bf16.mxu0 %v89
    %3476 = vmatmul.mubr.bf16.gmra.mxu0 %v88
    %v3477 = vpop.f32.mrf.mxu0
    %v3478 = vadd.f32 %v3438, %v3477
    %v3479 = vpop.f32.mrf.mxu0
    %v3480 = vpop.f32.mrf.mxu0
    %v3481 = vpop.f32.mrf.mxu0
    %3482 = vdwg.mxu0
    %3483 = vmatprep.subr.bf16.mxu0 0
    %3484 = vmatpush1.bf16.msra.mxu0 %v2554
    %3485 = vmatprep.subr.bf16.mxu0 0
    %3486 = vmatpush1.bf16.msra.mxu0 %v2553
    %3487 = vmatprep.subr.bf16.mxu0 0
    %3488 = vmatpush1.bf16.msra.mxu0 %v2552
    %3489 = vmatprep.subr.bf16.mxu0 0
    %3490 = vmatpush1.bf16.msra.mxu0 %v2551
    %3491 = vmatprep.subr.bf16.mxu0 0
    %3492 = vmatpush1.bf16.msra.mxu0 %v2550
    %3493 = vmatprep.subr.bf16.mxu0 0
    %3494 = vmatpush1.bf16.msra.mxu0 %v2549
    %3495 = vmatprep.subr.bf16.mxu0 0
    %3496 = vmatpush1.bf16.msra.mxu0 %v2548
    %3497 = vmatprep.subr.bf16.mxu0 0
    %3498 = vmatpush1.bf16.msra.mxu0 %v2547
    %3499 = vmatprep.subr.bf16.mxu0 0
    %3500 = vmatpush2.bf16.msra.mxu0 %v2562
    %3501 = vmatprep.subr.bf16.mxu0 0
    %3502 = vmatpush2.bf16.msra.mxu0 %v2561
    %3503 = vmatprep.subr.bf16.mxu0 0
    %3504 = vmatpush2.bf16.msra.mxu0 %v2560
    %3505 = vmatprep.subr.bf16.mxu0 0
    %3506 = vmatpush2.bf16.msra.mxu0 %v2559
    %3507 = vmatprep.subr.bf16.mxu0 0
    %3508 = vmatpush2.bf16.msra.mxu0 %v2558
    %3509 = vmatprep.subr.bf16.mxu0 0
    %3510 = vmatpush2.bf16.msra.mxu0 %v2557
    %3511 = vmatprep.subr.bf16.mxu0 0
    %3512 = vmatpush2.bf16.msra.mxu0 %v2556
    %3513 = vmatprep.subr.bf16.mxu0 0
    %3514 = vmatpush2.bf16.msra.mxu0 %v2555
    %3515 = vmatprep.mubr.bf16.mxu0 %v91
    %3516 = vmatmul.mubr.bf16.gmra.mxu0 %v90
    %v3517 = vpop.f32.mrf.mxu0
    %v3518 = vadd.f32 %v3478, %v3517
    %v3519 = vpop.f32.mrf.mxu0
    %v3520 = vpop.f32.mrf.mxu0
    %v3521 = vpop.f32.mrf.mxu0
    %3522 = vdwg.mxu0
    %3523 = vmatprep.subr.bf16.mxu0 0
    %3524 = vmatpush1.bf16.msra.mxu0 %v2570
    %3525 = vmatprep.subr.bf16.mxu0 0
    %3526 = vmatpush1.bf16.msra.mxu0 %v2569
    %3527 = vmatprep.subr.bf16.mxu0 0
    %3528 = vmatpush1.bf16.msra.mxu0 %v2568
    %3529 = vmatprep.subr.bf16.mxu0 0
    %3530 = vmatpush1.bf16.msra.mxu0 %v2567
    %3531 = vmatprep.subr.bf16.mxu0 0
    %3532 = vmatpush1.bf16.msra.mxu0 %v2566
    %3533 = vmatprep.subr.bf16.mxu0 0
    %3534 = vmatpush1.bf16.msra.mxu0 %v2565
    %3535 = vmatprep.subr.bf16.mxu0 0
    %3536 = vmatpush1.bf16.msra.mxu0 %v2564
    %3537 = vmatprep.subr.bf16.mxu0 0
    %3538 = vmatpush1.bf16.msra.mxu0 %v2563
    %3539 = vmatprep.subr.bf16.mxu0 0
    %3540 = vmatpush2.bf16.msra.mxu0 %v2578
    %3541 = vmatprep.subr.bf16.mxu0 0
    %3542 = vmatpush2.bf16.msra.mxu0 %v2577
    %3543 = vmatprep.subr.bf16.mxu0 0
    %3544 = vmatpush2.bf16.msra.mxu0 %v2576
    %3545 = vmatprep.subr.bf16.mxu0 0
    %3546 = vmatpush2.bf16.msra.mxu0 %v2575
    %3547 = vmatprep.subr.bf16.mxu0 0
    %3548 = vmatpush2.bf16.msra.mxu0 %v2574
    %3549 = vmatprep.subr.bf16.mxu0 0
    %3550 = vmatpush2.bf16.msra.mxu0 %v2573
    %3551 = vmatprep.subr.bf16.mxu0 0
    %3552 = vmatpush2.bf16.msra.mxu0 %v2572
    %3553 = vmatprep.subr.bf16.mxu0 0
    %3554 = vmatpush2.bf16.msra.mxu0 %v2571
    %3555 = vmatprep.mubr.bf16.mxu0 %v93
    %3556 = vmatmul.mubr.bf16.gmra.mxu0 %v92
    %v3557 = vpop.f32.mrf.mxu0
    %v3558 = vadd.f32 %v3518, %v3557
    %v3559 = vpop.f32.mrf.mxu0
    %v3560 = vpop.f32.mrf.mxu0
    %v3561 = vpop.f32.mrf.mxu0
    %3562 = vdwg.mxu0
    %3563 = vmatprep.subr.bf16.mxu0 0
    %3564 = vmatpush1.bf16.msra.mxu0 %v2586
    %3565 = vmatprep.subr.bf16.mxu0 0
    %3566 = vmatpush1.bf16.msra.mxu0 %v2585
    %3567 = vmatprep.subr.bf16.mxu0 0
    %3568 = vmatpush1.bf16.msra.mxu0 %v2584
    %3569 = vmatprep.subr.bf16.mxu0 0
    %3570 = vmatpush1.bf16.msra.mxu0 %v2583
    %3571 = vmatprep.subr.bf16.mxu0 0
    %3572 = vmatpush1.bf16.msra.mxu0 %v2582
    %3573 = vmatprep.subr.bf16.mxu0 0
    %3574 = vmatpush1.bf16.msra.mxu0 %v2581
    %3575 = vmatprep.subr.bf16.mxu0 0
    %3576 = vmatpush1.bf16.msra.mxu0 %v2580
    %3577 = vmatprep.subr.bf16.mxu0 0
    %3578 = vmatpush1.bf16.msra.mxu0 %v2579
    %3579 = vmatprep.subr.bf16.mxu0 0
    %3580 = vmatpush2.bf16.msra.mxu0 %v2594
    %3581 = vmatprep.subr.bf16.mxu0 0
    %3582 = vmatpush2.bf16.msra.mxu0 %v2593
    %3583 = vmatprep.subr.bf16.mxu0 0
    %3584 = vmatpush2.bf16.msra.mxu0 %v2592
    %3585 = vmatprep.subr.bf16.mxu0 0
    %3586 = vmatpush2.bf16.msra.mxu0 %v2591
    %3587 = vmatprep.subr.bf16.mxu0 0
    %3588 = vmatpush2.bf16.msra.mxu0 %v2590
    %3589 = vmatprep.subr.bf16.mxu0 0
    %3590 = vmatpush2.bf16.msra.mxu0 %v2589
    %3591 = vmatprep.subr.bf16.mxu0 0
    %3592 = vmatpush2.bf16.msra.mxu0 %v2588
    %3593 = vmatprep.subr.bf16.mxu0 0
    %3594 = vmatpush2.bf16.msra.mxu0 %v2587
    %3595 = vmatprep.mubr.bf16.mxu0 %v95
    %3596 = vmatmul.mubr.bf16.gmra.mxu0 %v94
    %v3597 = vpop.f32.mrf.mxu0
    %v3598 = vadd.f32 %v3558, %v3597
    %v3599 = vpop.f32.mrf.mxu0
    %v3600 = vpop.f32.mrf.mxu0
    %v3601 = vpop.f32.mrf.mxu0
    %3602 = vdwg.mxu0
    %3603 = vmatprep.subr.bf16.mxu0 0
    %3604 = vmatpush1.bf16.msra.mxu0 %v2602
    %3605 = vmatprep.subr.bf16.mxu0 0
    %3606 = vmatpush1.bf16.msra.mxu0 %v2601
    %3607 = vmatprep.subr.bf16.mxu0 0
    %3608 = vmatpush1.bf16.msra.mxu0 %v2600
    %3609 = vmatprep.subr.bf16.mxu0 0
    %3610 = vmatpush1.bf16.msra.mxu0 %v2599
    %3611 = vmatprep.subr.bf16.mxu0 0
    %3612 = vmatpush1.bf16.msra.mxu0 %v2598
    %3613 = vmatprep.subr.bf16.mxu0 0
    %3614 = vmatpush1.bf16.msra.mxu0 %v2597
    %3615 = vmatprep.subr.bf16.mxu0 0
    %3616 = vmatpush1.bf16.msra.mxu0 %v2596
    %3617 = vmatprep.subr.bf16.mxu0 0
    %3618 = vmatpush1.bf16.msra.mxu0 %v2595
    %3619 = vmatprep.subr.bf16.mxu0 0
    %3620 = vmatpush2.bf16.msra.mxu0 %v2610
    %3621 = vmatprep.subr.bf16.mxu0 0
    %3622 = vmatpush2.bf16.msra.mxu0 %v2609
    %3623 = vmatprep.subr.bf16.mxu0 0
    %3624 = vmatpush2.bf16.msra.mxu0 %v2608
    %3625 = vmatprep.subr.bf16.mxu0 0
    %3626 = vmatpush2.bf16.msra.mxu0 %v2607
    %3627 = vmatprep.subr.bf16.mxu0 0
    %3628 = vmatpush2.bf16.msra.mxu0 %v2606
    %3629 = vmatprep.subr.bf16.mxu0 0
    %3630 = vmatpush2.bf16.msra.mxu0 %v2605
    %3631 = vmatprep.subr.bf16.mxu0 0
    %3632 = vmatpush2.bf16.msra.mxu0 %v2604
    %3633 = vmatprep.subr.bf16.mxu0 0
    %3634 = vmatpush2.bf16.msra.mxu0 %v2603
    %3635 = vmatprep.mubr.bf16.mxu0 %v97
    %3636 = vmatmul.mubr.bf16.gmra.mxu0 %v96
    %v3637 = vpop.f32.mrf.mxu0
    %v3638 = vadd.f32 %v3598, %v3637
    %v3639 = vpop.f32.mrf.mxu0
    %v3640 = vpop.f32.mrf.mxu0
    %v3641 = vpop.f32.mrf.mxu0
    %3642 = vdwg.mxu0
    %3643 = vmatprep.subr.bf16.mxu0 0
    %3644 = vmatpush1.bf16.msra.mxu0 %v2618
    %3645 = vmatprep.subr.bf16.mxu0 0
    %3646 = vmatpush1.bf16.msra.mxu0 %v2617
    %3647 = vmatprep.subr.bf16.mxu0 0
    %3648 = vmatpush1.bf16.msra.mxu0 %v2616
    %3649 = vmatprep.subr.bf16.mxu0 0
    %3650 = vmatpush1.bf16.msra.mxu0 %v2615
    %3651 = vmatprep.subr.bf16.mxu0 0
    %3652 = vmatpush1.bf16.msra.mxu0 %v2614
    %3653 = vmatprep.subr.bf16.mxu0 0
    %3654 = vmatpush1.bf16.msra.mxu0 %v2613
    %3655 = vmatprep.subr.bf16.mxu0 0
    %3656 = vmatpush1.bf16.msra.mxu0 %v2612
    %3657 = vmatprep.subr.bf16.mxu0 0
    %3658 = vmatpush1.bf16.msra.mxu0 %v2611
    %3659 = vmatprep.subr.bf16.mxu0 0
    %3660 = vmatpush2.bf16.msra.mxu0 %v2626
    %3661 = vmatprep.subr.bf16.mxu0 0
    %3662 = vmatpush2.bf16.msra.mxu0 %v2625
    %3663 = vmatprep.subr.bf16.mxu0 0
    %3664 = vmatpush2.bf16.msra.mxu0 %v2624
    %3665 = vmatprep.subr.bf16.mxu0 0
    %3666 = vmatpush2.bf16.msra.mxu0 %v2623
    %3667 = vmatprep.subr.bf16.mxu0 0
    %3668 = vmatpush2.bf16.msra.mxu0 %v2622
    %3669 = vmatprep.subr.bf16.mxu0 0
    %3670 = vmatpush2.bf16.msra.mxu0 %v2621
    %3671 = vmatprep.subr.bf16.mxu0 0
    %3672 = vmatpush2.bf16.msra.mxu0 %v2620
    %3673 = vmatprep.subr.bf16.mxu0 0
    %3674 = vmatpush2.bf16.msra.mxu0 %v2619
    %3675 = vmatprep.mubr.bf16.mxu0 %v99
    %3676 = vmatmul.mubr.bf16.gmra.mxu0 %v98
    %v3677 = vpop.f32.mrf.mxu0
    %v3678 = vadd.f32 %v3638, %v3677
    %v3679 = vpop.f32.mrf.mxu0
    %v3680 = vpop.f32.mrf.mxu0
    %v3681 = vpop.f32.mrf.mxu0
    %3682 = vdwg.mxu0
    %3683 = vmatprep.subr.bf16.mxu0 0
    %3684 = vmatpush1.bf16.msra.mxu0 %v2634
    %3685 = vmatprep.subr.bf16.mxu0 0
    %3686 = vmatpush1.bf16.msra.mxu0 %v2633
    %3687 = vmatprep.subr.bf16.mxu0 0
    %3688 = vmatpush1.bf16.msra.mxu0 %v2632
    %3689 = vmatprep.subr.bf16.mxu0 0
    %3690 = vmatpush1.bf16.msra.mxu0 %v2631
    %3691 = vmatprep.subr.bf16.mxu0 0
    %3692 = vmatpush1.bf16.msra.mxu0 %v2630
    %3693 = vmatprep.subr.bf16.mxu0 0
    %3694 = vmatpush1.bf16.msra.mxu0 %v2629
    %3695 = vmatprep.subr.bf16.mxu0 0
    %3696 = vmatpush1.bf16.msra.mxu0 %v2628
    %3697 = vmatprep.subr.bf16.mxu0 0
    %3698 = vmatpush1.bf16.msra.mxu0 %v2627
    %3699 = vmatprep.subr.bf16.mxu0 0
    %3700 = vmatpush2.bf16.msra.mxu0 %v2642
    %3701 = vmatprep.subr.bf16.mxu0 0
    %3702 = vmatpush2.bf16.msra.mxu0 %v2641
    %3703 = vmatprep.subr.bf16.mxu0 0
    %3704 = vmatpush2.bf16.msra.mxu0 %v2640
    %3705 = vmatprep.subr.bf16.mxu0 0
    %3706 = vmatpush2.bf16.msra.mxu0 %v2639
    %3707 = vmatprep.subr.bf16.mxu0 0
    %3708 = vmatpush2.bf16.msra.mxu0 %v2638
    %3709 = vmatprep.subr.bf16.mxu0 0
    %3710 = vmatpush2.bf16.msra.mxu0 %v2637
    %3711 = vmatprep.subr.bf16.mxu0 0
    %3712 = vmatpush2.bf16.msra.mxu0 %v2636
    %3713 = vmatprep.subr.bf16.mxu0 0
    %3714 = vmatpush2.bf16.msra.mxu0 %v2635
    %3715 = vmatprep.mubr.bf16.mxu0 %v101
    %3716 = vmatmul.mubr.bf16.gmra.mxu0 %v100
    %v3717 = vpop.f32.mrf.mxu0
    %v3718 = vadd.f32 %v3678, %v3717
    %v3719 = vpop.f32.mrf.mxu0
    %v3720 = vpop.f32.mrf.mxu0
    %v3721 = vpop.f32.mrf.mxu0
    %3722 = vdwg.mxu0
    %3723 = vmatprep.subr.bf16.mxu0 0
    %3724 = vmatpush1.bf16.msra.mxu0 %v2650
    %3725 = vmatprep.subr.bf16.mxu0 0
    %3726 = vmatpush1.bf16.msra.mxu0 %v2649
    %3727 = vmatprep.subr.bf16.mxu0 0
    %3728 = vmatpush1.bf16.msra.mxu0 %v2648
    %3729 = vmatprep.subr.bf16.mxu0 0
    %3730 = vmatpush1.bf16.msra.mxu0 %v2647
    %3731 = vmatprep.subr.bf16.mxu0 0
    %3732 = vmatpush1.bf16.msra.mxu0 %v2646
    %3733 = vmatprep.subr.bf16.mxu0 0
    %3734 = vmatpush1.bf16.msra.mxu0 %v2645
    %3735 = vmatprep.subr.bf16.mxu0 0
    %3736 = vmatpush1.bf16.msra.mxu0 %v2644
    %3737 = vmatprep.subr.bf16.mxu0 0
    %3738 = vmatpush1.bf16.msra.mxu0 %v2643
    %3739 = vmatprep.subr.bf16.mxu0 0
    %3740 = vmatpush2.bf16.msra.mxu0 %v2658
    %3741 = vmatprep.subr.bf16.mxu0 0
    %3742 = vmatpush2.bf16.msra.mxu0 %v2657
    %3743 = vmatprep.subr.bf16.mxu0 0
    %3744 = vmatpush2.bf16.msra.mxu0 %v2656
    %3745 = vmatprep.subr.bf16.mxu0 0
    %3746 = vmatpush2.bf16.msra.mxu0 %v2655
    %3747 = vmatprep.subr.bf16.mxu0 0
    %3748 = vmatpush2.bf16.msra.mxu0 %v2654
    %3749 = vmatprep.subr.bf16.mxu0 0
    %3750 = vmatpush2.bf16.msra.mxu0 %v2653
    %3751 = vmatprep.subr.bf16.mxu0 0
    %3752 = vmatpush2.bf16.msra.mxu0 %v2652
    %3753 = vmatprep.subr.bf16.mxu0 0
    %3754 = vmatpush2.bf16.msra.mxu0 %v2651
    %3755 = vmatprep.mubr.bf16.mxu0 %v103
    %3756 = vmatmul.mubr.bf16.gmra.mxu0 %v102
    %v3757 = vpop.f32.mrf.mxu0
    %v3758 = vadd.f32 %v3718, %v3757
    %v3759 = vpop.f32.mrf.mxu0
    %v3760 = vpop.f32.mrf.mxu0
    %v3761 = vpop.f32.mrf.mxu0
    %3762 = vdwg.mxu0
    %3763 = vmatprep.subr.bf16.mxu0 0
    %3764 = vmatpush1.bf16.msra.mxu0 %v2666
    %3765 = vmatprep.subr.bf16.mxu0 0
    %3766 = vmatpush1.bf16.msra.mxu0 %v2665
    %3767 = vmatprep.subr.bf16.mxu0 0
    %3768 = vmatpush1.bf16.msra.mxu0 %v2664
    %3769 = vmatprep.subr.bf16.mxu0 0
    %3770 = vmatpush1.bf16.msra.mxu0 %v2663
    %3771 = vmatprep.subr.bf16.mxu0 0
    %3772 = vmatpush1.bf16.msra.mxu0 %v2662
    %3773 = vmatprep.subr.bf16.mxu0 0
    %3774 = vmatpush1.bf16.msra.mxu0 %v2661
    %3775 = vmatprep.subr.bf16.mxu0 0
    %3776 = vmatpush1.bf16.msra.mxu0 %v2660
    %3777 = vmatprep.subr.bf16.mxu0 0
    %3778 = vmatpush1.bf16.msra.mxu0 %v2659
    %3779 = vmatprep.subr.bf16.mxu0 0
    %3780 = vmatpush2.bf16.msra.mxu0 %v2674
    %3781 = vmatprep.subr.bf16.mxu0 0
    %3782 = vmatpush2.bf16.msra.mxu0 %v2673
    %3783 = vmatprep.subr.bf16.mxu0 0
    %3784 = vmatpush2.bf16.msra.mxu0 %v2672
    %3785 = vmatprep.subr.bf16.mxu0 0
    %3786 = vmatpush2.bf16.msra.mxu0 %v2671
    %3787 = vmatprep.subr.bf16.mxu0 0
    %3788 = vmatpush2.bf16.msra.mxu0 %v2670
    %3789 = vmatprep.subr.bf16.mxu0 0
    %3790 = vmatpush2.bf16.msra.mxu0 %v2669
    %3791 = vmatprep.subr.bf16.mxu0 0
    %3792 = vmatpush2.bf16.msra.mxu0 %v2668
    %3793 = vmatprep.subr.bf16.mxu0 0
    %3794 = vmatpush2.bf16.msra.mxu0 %v2667
    %3795 = vmatprep.mubr.bf16.mxu0 %v105
    %3796 = vmatmul.mubr.bf16.gmra.mxu0 %v104
    %v3797 = vpop.f32.mrf.mxu0
    %v3798 = vadd.f32 %v3758, %v3797
    %v3799 = vpop.f32.mrf.mxu0
    %v3800 = vpop.f32.mrf.mxu0
    %v3801 = vpop.f32.mrf.mxu0
    %3802 = vdwg.mxu0
    %3803 = vmatprep.subr.bf16.mxu0 0
    %3804 = vmatpush1.bf16.msra.mxu0 %v2682
    %3805 = vmatprep.subr.bf16.mxu0 0
    %3806 = vmatpush1.bf16.msra.mxu0 %v2681
    %3807 = vmatprep.subr.bf16.mxu0 0
    %3808 = vmatpush1.bf16.msra.mxu0 %v2680
    %3809 = vmatprep.subr.bf16.mxu0 0
    %3810 = vmatpush1.bf16.msra.mxu0 %v2679
    %3811 = vmatprep.subr.bf16.mxu0 0
    %3812 = vmatpush1.bf16.msra.mxu0 %v2678
    %3813 = vmatprep.subr.bf16.mxu0 0
    %3814 = vmatpush1.bf16.msra.mxu0 %v2677
    %3815 = vmatprep.subr.bf16.mxu0 0
    %3816 = vmatpush1.bf16.msra.mxu0 %v2676
    %3817 = vmatprep.subr.bf16.mxu0 0
    %3818 = vmatpush1.bf16.msra.mxu0 %v2675
    %3819 = vmatprep.subr.bf16.mxu0 0
    %3820 = vmatpush2.bf16.msra.mxu0 %v2690
    %3821 = vmatprep.subr.bf16.mxu0 0
    %3822 = vmatpush2.bf16.msra.mxu0 %v2689
    %3823 = vmatprep.subr.bf16.mxu0 0
    %3824 = vmatpush2.bf16.msra.mxu0 %v2688
    %3825 = vmatprep.subr.bf16.mxu0 0
    %3826 = vmatpush2.bf16.msra.mxu0 %v2687
    %3827 = vmatprep.subr.bf16.mxu0 0
    %3828 = vmatpush2.bf16.msra.mxu0 %v2686
    %3829 = vmatprep.subr.bf16.mxu0 0
    %3830 = vmatpush2.bf16.msra.mxu0 %v2685
    %3831 = vmatprep.subr.bf16.mxu0 0
    %3832 = vmatpush2.bf16.msra.mxu0 %v2684
    %3833 = vmatprep.subr.bf16.mxu0 0
    %3834 = vmatpush2.bf16.msra.mxu0 %v2683
    %3835 = vmatprep.mubr.bf16.mxu0 %v107
    %3836 = vmatmul.mubr.bf16.gmra.mxu0 %v106
    %v3837 = vpop.f32.mrf.mxu0
    %v3838 = vadd.f32 %v3798, %v3837
    %v3839 = vpop.f32.mrf.mxu0
    %v3840 = vpop.f32.mrf.mxu0
    %v3841 = vpop.f32.mrf.mxu0
    %3842 = vdwg.mxu0
    %3843 = vmatprep.subr.bf16.mxu0 0
    %3844 = vmatpush1.bf16.msra.mxu0 %v2698
    %3845 = vmatprep.subr.bf16.mxu0 0
    %3846 = vmatpush1.bf16.msra.mxu0 %v2697
    %3847 = vmatprep.subr.bf16.mxu0 0
    %3848 = vmatpush1.bf16.msra.mxu0 %v2696
    %3849 = vmatprep.subr.bf16.mxu0 0
    %3850 = vmatpush1.bf16.msra.mxu0 %v2695
    %3851 = vmatprep.subr.bf16.mxu0 0
    %3852 = vmatpush1.bf16.msra.mxu0 %v2694
    %3853 = vmatprep.subr.bf16.mxu0 0
    %3854 = vmatpush1.bf16.msra.mxu0 %v2693
    %3855 = vmatprep.subr.bf16.mxu0 0
    %3856 = vmatpush1.bf16.msra.mxu0 %v2692
    %3857 = vmatprep.subr.bf16.mxu0 0
    %3858 = vmatpush1.bf16.msra.mxu0 %v2691
    %3859 = vmatprep.subr.bf16.mxu0 0
    %3860 = vmatpush2.bf16.msra.mxu0 %v2706
    %3861 = vmatprep.subr.bf16.mxu0 0
    %3862 = vmatpush2.bf16.msra.mxu0 %v2705
    %3863 = vmatprep.subr.bf16.mxu0 0
    %3864 = vmatpush2.bf16.msra.mxu0 %v2704
    %3865 = vmatprep.subr.bf16.mxu0 0
    %3866 = vmatpush2.bf16.msra.mxu0 %v2703
    %3867 = vmatprep.subr.bf16.mxu0 0
    %3868 = vmatpush2.bf16.msra.mxu0 %v2702
    %3869 = vmatprep.subr.bf16.mxu0 0
    %3870 = vmatpush2.bf16.msra.mxu0 %v2701
    %3871 = vmatprep.subr.bf16.mxu0 0
    %3872 = vmatpush2.bf16.msra.mxu0 %v2700
    %3873 = vmatprep.subr.bf16.mxu0 0
    %3874 = vmatpush2.bf16.msra.mxu0 %v2699
    %3875 = vmatprep.mubr.bf16.mxu0 %v109
    %3876 = vmatmul.mubr.bf16.gmra.mxu0 %v108
    %v3877 = vpop.f32.mrf.mxu0
    %v3878 = vadd.f32 %v3838, %v3877
    %v3879 = vpop.f32.mrf.mxu0
    %v3880 = vpop.f32.mrf.mxu0
    %v3881 = vpop.f32.mrf.mxu0
    %3882 = vdwg.mxu0
    %3883 = vmatprep.subr.bf16.mxu0 0
    %3884 = vmatpush1.bf16.msra.mxu0 %v2714
    %3885 = vmatprep.subr.bf16.mxu0 0
    %3886 = vmatpush1.bf16.msra.mxu0 %v2713
    %3887 = vmatprep.subr.bf16.mxu0 0
    %3888 = vmatpush1.bf16.msra.mxu0 %v2712
    %3889 = vmatprep.subr.bf16.mxu0 0
    %3890 = vmatpush1.bf16.msra.mxu0 %v2711
    %3891 = vmatprep.subr.bf16.mxu0 0
    %3892 = vmatpush1.bf16.msra.mxu0 %v2710
    %3893 = vmatprep.subr.bf16.mxu0 0
    %3894 = vmatpush1.bf16.msra.mxu0 %v2709
    %3895 = vmatprep.subr.bf16.mxu0 0
    %3896 = vmatpush1.bf16.msra.mxu0 %v2708
    %3897 = vmatprep.subr.bf16.mxu0 0
    %3898 = vmatpush1.bf16.msra.mxu0 %v2707
    %3899 = vmatprep.subr.bf16.mxu0 0
    %3900 = vmatpush2.bf16.msra.mxu0 %v2722
    %3901 = vmatprep.subr.bf16.mxu0 0
    %3902 = vmatpush2.bf16.msra.mxu0 %v2721
    %3903 = vmatprep.subr.bf16.mxu0 0
    %3904 = vmatpush2.bf16.msra.mxu0 %v2720
    %3905 = vmatprep.subr.bf16.mxu0 0
    %3906 = vmatpush2.bf16.msra.mxu0 %v2719
    %3907 = vmatprep.subr.bf16.mxu0 0
    %3908 = vmatpush2.bf16.msra.mxu0 %v2718
    %3909 = vmatprep.subr.bf16.mxu0 0
    %3910 = vmatpush2.bf16.msra.mxu0 %v2717
    %3911 = vmatprep.subr.bf16.mxu0 0
    %3912 = vmatpush2.bf16.msra.mxu0 %v2716
    %3913 = vmatprep.subr.bf16.mxu0 0
    %3914 = vmatpush2.bf16.msra.mxu0 %v2715
    %3915 = vmatprep.mubr.bf16.mxu0 %v111
    %3916 = vmatmul.mubr.bf16.gmra.mxu0 %v110
    %v3917 = vpop.f32.mrf.mxu0
    %v3918 = vadd.f32 %v3878, %v3917
    %v3919 = vpop.f32.mrf.mxu0
    %v3920 = vpop.f32.mrf.mxu0
    %v3921 = vpop.f32.mrf.mxu0
    %3922 = vdwg.mxu0
    %3923 = vmatprep.subr.bf16.mxu0 0
    %3924 = vmatpush1.bf16.msra.mxu0 %v2730
    %3925 = vmatprep.subr.bf16.mxu0 0
    %3926 = vmatpush1.bf16.msra.mxu0 %v2729
    %3927 = vmatprep.subr.bf16.mxu0 0
    %3928 = vmatpush1.bf16.msra.mxu0 %v2728
    %3929 = vmatprep.subr.bf16.mxu0 0
    %3930 = vmatpush1.bf16.msra.mxu0 %v2727
    %3931 = vmatprep.subr.bf16.mxu0 0
    %3932 = vmatpush1.bf16.msra.mxu0 %v2726
    %3933 = vmatprep.subr.bf16.mxu0 0
    %3934 = vmatpush1.bf16.msra.mxu0 %v2725
    %3935 = vmatprep.subr.bf16.mxu0 0
    %3936 = vmatpush1.bf16.msra.mxu0 %v2724
    %3937 = vmatprep.subr.bf16.mxu0 0
    %3938 = vmatpush1.bf16.msra.mxu0 %v2723
    %3939 = vmatprep.subr.bf16.mxu0 0
    %3940 = vmatpush2.bf16.msra.mxu0 %v2738
    %3941 = vmatprep.subr.bf16.mxu0 0
    %3942 = vmatpush2.bf16.msra.mxu0 %v2737
    %3943 = vmatprep.subr.bf16.mxu0 0
    %3944 = vmatpush2.bf16.msra.mxu0 %v2736
    %3945 = vmatprep.subr.bf16.mxu0 0
    %3946 = vmatpush2.bf16.msra.mxu0 %v2735
    %3947 = vmatprep.subr.bf16.mxu0 0
    %3948 = vmatpush2.bf16.msra.mxu0 %v2734
    %3949 = vmatprep.subr.bf16.mxu0 0
    %3950 = vmatpush2.bf16.msra.mxu0 %v2733
    %3951 = vmatprep.subr.bf16.mxu0 0
    %3952 = vmatpush2.bf16.msra.mxu0 %v2732
    %3953 = vmatprep.subr.bf16.mxu0 0
    %3954 = vmatpush2.bf16.msra.mxu0 %v2731
    %3955 = vmatprep.mubr.bf16.mxu0 %v113
    %3956 = vmatmul.mubr.bf16.gmra.mxu0 %v112
    %v3957 = vpop.f32.mrf.mxu0
    %v3958 = vadd.f32 %v3918, %v3957
    %v3959 = vpop.f32.mrf.mxu0
    %v3960 = vpop.f32.mrf.mxu0
    %v3961 = vpop.f32.mrf.mxu0
    %3962 = vdwg.mxu0
    %3963 = vmatprep.subr.bf16.mxu0 0
    %3964 = vmatpush1.bf16.msra.mxu0 %v2746
    %3965 = vmatprep.subr.bf16.mxu0 0
    %3966 = vmatpush1.bf16.msra.mxu0 %v2745
    %3967 = vmatprep.subr.bf16.mxu0 0
    %3968 = vmatpush1.bf16.msra.mxu0 %v2744
    %3969 = vmatprep.subr.bf16.mxu0 0
    %3970 = vmatpush1.bf16.msra.mxu0 %v2743
    %3971 = vmatprep.subr.bf16.mxu0 0
    %3972 = vmatpush1.bf16.msra.mxu0 %v2742
    %3973 = vmatprep.subr.bf16.mxu0 0
    %3974 = vmatpush1.bf16.msra.mxu0 %v2741
    %3975 = vmatprep.subr.bf16.mxu0 0
    %3976 = vmatpush1.bf16.msra.mxu0 %v2740
    %3977 = vmatprep.subr.bf16.mxu0 0
    %3978 = vmatpush1.bf16.msra.mxu0 %v2739
    %3979 = vmatprep.subr.bf16.mxu0 0
    %3980 = vmatpush2.bf16.msra.mxu0 %v2754
    %3981 = vmatprep.subr.bf16.mxu0 0
    %3982 = vmatpush2.bf16.msra.mxu0 %v2753
    %3983 = vmatprep.subr.bf16.mxu0 0
    %3984 = vmatpush2.bf16.msra.mxu0 %v2752
    %3985 = vmatprep.subr.bf16.mxu0 0
    %3986 = vmatpush2.bf16.msra.mxu0 %v2751
    %3987 = vmatprep.subr.bf16.mxu0 0
    %3988 = vmatpush2.bf16.msra.mxu0 %v2750
    %3989 = vmatprep.subr.bf16.mxu0 0
    %3990 = vmatpush2.bf16.msra.mxu0 %v2749
    %3991 = vmatprep.subr.bf16.mxu0 0
    %3992 = vmatpush2.bf16.msra.mxu0 %v2748
    %3993 = vmatprep.subr.bf16.mxu0 0
    %3994 = vmatpush2.bf16.msra.mxu0 %v2747
    %3995 = vmatprep.mubr.bf16.mxu0 %v115
    %3996 = vmatmul.mubr.bf16.gmra.mxu0 %v114
    %v3997 = vpop.f32.mrf.mxu0
    %v3998 = vadd.f32 %v3958, %v3997
    %v3999 = vpop.f32.mrf.mxu0
    %v4000 = vpop.f32.mrf.mxu0
    %v4001 = vpop.f32.mrf.mxu0
    %4002 = vdwg.mxu0
    %4003 = vmatprep.subr.bf16.mxu0 0
    %4004 = vmatpush1.bf16.msra.mxu0 %v2762
    %4005 = vmatprep.subr.bf16.mxu0 0
    %4006 = vmatpush1.bf16.msra.mxu0 %v2761
    %4007 = vmatprep.subr.bf16.mxu0 0
    %4008 = vmatpush1.bf16.msra.mxu0 %v2760
    %4009 = vmatprep.subr.bf16.mxu0 0
    %4010 = vmatpush1.bf16.msra.mxu0 %v2759
    %4011 = vmatprep.subr.bf16.mxu0 0
    %4012 = vmatpush1.bf16.msra.mxu0 %v2758
    %4013 = vmatprep.subr.bf16.mxu0 0
    %4014 = vmatpush1.bf16.msra.mxu0 %v2757
    %4015 = vmatprep.subr.bf16.mxu0 0
    %4016 = vmatpush1.bf16.msra.mxu0 %v2756
    %4017 = vmatprep.subr.bf16.mxu0 0
    %4018 = vmatpush1.bf16.msra.mxu0 %v2755
    %4019 = vmatprep.subr.bf16.mxu0 0
    %4020 = vmatpush2.bf16.msra.mxu0 %v2770
    %4021 = vmatprep.subr.bf16.mxu0 0
    %4022 = vmatpush2.bf16.msra.mxu0 %v2769
    %4023 = vmatprep.subr.bf16.mxu0 0
    %4024 = vmatpush2.bf16.msra.mxu0 %v2768
    %4025 = vmatprep.subr.bf16.mxu0 0
    %4026 = vmatpush2.bf16.msra.mxu0 %v2767
    %4027 = vmatprep.subr.bf16.mxu0 0
    %4028 = vmatpush2.bf16.msra.mxu0 %v2766
    %4029 = vmatprep.subr.bf16.mxu0 0
    %4030 = vmatpush2.bf16.msra.mxu0 %v2765
    %4031 = vmatprep.subr.bf16.mxu0 0
    %4032 = vmatpush2.bf16.msra.mxu0 %v2764
    %4033 = vmatprep.subr.bf16.mxu0 0
    %4034 = vmatpush2.bf16.msra.mxu0 %v2763
    %4035 = vmatprep.mubr.bf16.mxu0 %v117
    %4036 = vmatmul.mubr.bf16.gmra.mxu0 %v116
    %v4037 = vpop.f32.mrf.mxu0
    %v4038 = vadd.f32 %v3998, %v4037
    %v4039 = vpop.f32.mrf.mxu0
    %v4040 = vpop.f32.mrf.mxu0
    %v4041 = vpop.f32.mrf.mxu0
    %4042 = vdwg.mxu0
    %4043 = vmatprep.subr.bf16.mxu0 0
    %4044 = vmatpush1.bf16.msra.mxu0 %v2778
    %4045 = vmatprep.subr.bf16.mxu0 0
    %4046 = vmatpush1.bf16.msra.mxu0 %v2777
    %4047 = vmatprep.subr.bf16.mxu0 0
    %4048 = vmatpush1.bf16.msra.mxu0 %v2776
    %4049 = vmatprep.subr.bf16.mxu0 0
    %4050 = vmatpush1.bf16.msra.mxu0 %v2775
    %4051 = vmatprep.subr.bf16.mxu0 0
    %4052 = vmatpush1.bf16.msra.mxu0 %v2774
    %4053 = vmatprep.subr.bf16.mxu0 0
    %4054 = vmatpush1.bf16.msra.mxu0 %v2773
    %4055 = vmatprep.subr.bf16.mxu0 0
    %4056 = vmatpush1.bf16.msra.mxu0 %v2772
    %4057 = vmatprep.subr.bf16.mxu0 0
    %4058 = vmatpush1.bf16.msra.mxu0 %v2771
    %4059 = vmatprep.subr.bf16.mxu0 0
    %4060 = vmatpush2.bf16.msra.mxu0 %v2786
    %4061 = vmatprep.subr.bf16.mxu0 0
    %4062 = vmatpush2.bf16.msra.mxu0 %v2785
    %4063 = vmatprep.subr.bf16.mxu0 0
    %4064 = vmatpush2.bf16.msra.mxu0 %v2784
    %4065 = vmatprep.subr.bf16.mxu0 0
    %4066 = vmatpush2.bf16.msra.mxu0 %v2783
    %4067 = vmatprep.subr.bf16.mxu0 0
    %4068 = vmatpush2.bf16.msra.mxu0 %v2782
    %4069 = vmatprep.subr.bf16.mxu0 0
    %4070 = vmatpush2.bf16.msra.mxu0 %v2781
    %4071 = vmatprep.subr.bf16.mxu0 0
    %4072 = vmatpush2.bf16.msra.mxu0 %v2780
    %4073 = vmatprep.subr.bf16.mxu0 0
    %4074 = vmatpush2.bf16.msra.mxu0 %v2779
    %4075 = vmatprep.mubr.bf16.mxu0 %v119
    %4076 = vmatmul.mubr.bf16.gmra.mxu0 %v118
    %v4077 = vpop.f32.mrf.mxu0
    %v4078 = vadd.f32 %v4038, %v4077
    %v4079 = vpop.f32.mrf.mxu0
    %v4080 = vpop.f32.mrf.mxu0
    %v4081 = vpop.f32.mrf.mxu0
    %4082 = vdwg.mxu0
    %4083 = vmatprep.subr.bf16.mxu0 0
    %4084 = vmatpush1.bf16.msra.mxu0 %v2794
    %4085 = vmatprep.subr.bf16.mxu0 0
    %4086 = vmatpush1.bf16.msra.mxu0 %v2793
    %4087 = vmatprep.subr.bf16.mxu0 0
    %4088 = vmatpush1.bf16.msra.mxu0 %v2792
    %4089 = vmatprep.subr.bf16.mxu0 0
    %4090 = vmatpush1.bf16.msra.mxu0 %v2791
    %4091 = vmatprep.subr.bf16.mxu0 0
    %4092 = vmatpush1.bf16.msra.mxu0 %v2790
    %4093 = vmatprep.subr.bf16.mxu0 0
    %4094 = vmatpush1.bf16.msra.mxu0 %v2789
    %4095 = vmatprep.subr.bf16.mxu0 0
    %4096 = vmatpush1.bf16.msra.mxu0 %v2788
    %4097 = vmatprep.subr.bf16.mxu0 0
    %4098 = vmatpush1.bf16.msra.mxu0 %v2787
    %4099 = vmatprep.subr.bf16.mxu0 0
    %4100 = vmatpush2.bf16.msra.mxu0 %v2802
    %4101 = vmatprep.subr.bf16.mxu0 0
    %4102 = vmatpush2.bf16.msra.mxu0 %v2801
    %4103 = vmatprep.subr.bf16.mxu0 0
    %4104 = vmatpush2.bf16.msra.mxu0 %v2800
    %4105 = vmatprep.subr.bf16.mxu0 0
    %4106 = vmatpush2.bf16.msra.mxu0 %v2799
    %4107 = vmatprep.subr.bf16.mxu0 0
    %4108 = vmatpush2.bf16.msra.mxu0 %v2798
    %4109 = vmatprep.subr.bf16.mxu0 0
    %4110 = vmatpush2.bf16.msra.mxu0 %v2797
    %4111 = vmatprep.subr.bf16.mxu0 0
    %4112 = vmatpush2.bf16.msra.mxu0 %v2796
    %4113 = vmatprep.subr.bf16.mxu0 0
    %4114 = vmatpush2.bf16.msra.mxu0 %v2795
    %4115 = vmatprep.mubr.bf16.mxu0 %v121
    %4116 = vmatmul.mubr.bf16.gmra.mxu0 %v120
    %v4117 = vpop.f32.mrf.mxu0
    %v4118 = vadd.f32 %v4078, %v4117
    %v4119 = vpop.f32.mrf.mxu0
    %v4120 = vpop.f32.mrf.mxu0
    %v4121 = vpop.f32.mrf.mxu0
    %4122 = vdwg.mxu0
    %4123 = vmatprep.subr.bf16.mxu0 0
    %4124 = vmatpush1.bf16.msra.mxu0 %v2810
    %4125 = vmatprep.subr.bf16.mxu0 0
    %4126 = vmatpush1.bf16.msra.mxu0 %v2809
    %4127 = vmatprep.subr.bf16.mxu0 0
    %4128 = vmatpush1.bf16.msra.mxu0 %v2808
    %4129 = vmatprep.subr.bf16.mxu0 0
    %4130 = vmatpush1.bf16.msra.mxu0 %v2807
    %4131 = vmatprep.subr.bf16.mxu0 0
    %4132 = vmatpush1.bf16.msra.mxu0 %v2806
    %4133 = vmatprep.subr.bf16.mxu0 0
    %4134 = vmatpush1.bf16.msra.mxu0 %v2805
    %4135 = vmatprep.subr.bf16.mxu0 0
    %4136 = vmatpush1.bf16.msra.mxu0 %v2804
    %4137 = vmatprep.subr.bf16.mxu0 0
    %4138 = vmatpush1.bf16.msra.mxu0 %v2803
    %4139 = vmatprep.subr.bf16.mxu0 0
    %4140 = vmatpush2.bf16.msra.mxu0 %v2818
    %4141 = vmatprep.subr.bf16.mxu0 0
    %4142 = vmatpush2.bf16.msra.mxu0 %v2817
    %4143 = vmatprep.subr.bf16.mxu0 0
    %4144 = vmatpush2.bf16.msra.mxu0 %v2816
    %4145 = vmatprep.subr.bf16.mxu0 0
    %4146 = vmatpush2.bf16.msra.mxu0 %v2815
    %4147 = vmatprep.subr.bf16.mxu0 0
    %4148 = vmatpush2.bf16.msra.mxu0 %v2814
    %4149 = vmatprep.subr.bf16.mxu0 0
    %4150 = vmatpush2.bf16.msra.mxu0 %v2813
    %4151 = vmatprep.subr.bf16.mxu0 0
    %4152 = vmatpush2.bf16.msra.mxu0 %v2812
    %4153 = vmatprep.subr.bf16.mxu0 0
    %4154 = vmatpush2.bf16.msra.mxu0 %v2811
    %4155 = vmatprep.mubr.bf16.mxu0 %v123
    %4156 = vmatmul.mubr.bf16.gmra.mxu0 %v122
    %v4157 = vpop.f32.mrf.mxu0
    %v4158 = vadd.f32 %v4118, %v4157
    %v4159 = vpop.f32.mrf.mxu0
    %v4160 = vpop.f32.mrf.mxu0
    %v4161 = vpop.f32.mrf.mxu0
    %4162 = vdwg.mxu0
    %vm4163 = vcmask 64512
    %4164 = vst.msk [vmem:[#allocation2] sm:$0xff] %vm4163, 0.0
    %4165 = vst.msk [vmem:[#allocation2 + $0x8] sm:$0xff] %vm4163, 0.0
    %4166 = vst.msk [vmem:[#allocation2 + $0x10] sm:$0xff] %vm4163, 0.0
    %4167 = vst.msk [vmem:[#allocation2 + $0x8] sm:$0xff] %vm4163, %v4158
    %v4168 = vld [vmem:[#allocation2 + $0x7] sm:$0xff]
    %v4169 = vpack.c.bf16 %v4168, %v4168
    %v4170 = vld [vmem:[#allocation2 + $0x8] sm:$0xff]
    %v4171 = vpack.c.bf16 %v4170, %v4170
    %v4172 = vld [vmem:[#allocation2 + $0x9] sm:$0xff]
    %v4173 = vpack.c.bf16 %v4172, %v4172
    %v4174 = vld [vmem:[%s3] sm:$0xf]
    %s4175 = scalar_lea.vmem %s3, 4
    %v4176 = vld [vmem:[%s4175] sm:$0xf]
    %v4178 = vsel %vm4163, %v4171, 0
    %vm4180 = vcmask 1043456
    %v4182 = vsel %vm4180, %v4176, 0
    %4184 = vmatprep.subr.bf16.mxu0 0
    %4185 = vmatpush1.bf16.msra.mxu0 0
    %4186 = vmatprep.subr.bf16.mxu0 0
    %4187 = vmatpush1.bf16.msra.mxu0 0
    %4188 = vmatprep.subr.bf16.mxu0 0
    %4189 = vmatpush1.bf16.msra.mxu0 0
    %4190 = vmatprep.subr.bf16.mxu0 0
    %4191 = vmatpush1.bf16.msra.mxu0 0
    %4192 = vmatprep.subr.bf16.mxu0 0
    %4193 = vmatpush1.bf16.msra.mxu0 0
    %4194 = vmatprep.subr.bf16.mxu0 0
    %4195 = vmatpush1.bf16.msra.mxu0 0
    %4196 = vmatprep.subr.bf16.mxu0 0
    %4197 = vmatpush1.bf16.msra.mxu0 0
    %4198 = vmatprep.subr.bf16.mxu0 0
    %4199 = vmatpush1.bf16.msra.mxu0 %v4182
    %4200 = vmatprep.subr.bf16.mxu0 0
    %4201 = vmatpush2.bf16.msra.mxu0 0
    %4202 = vmatprep.subr.bf16.mxu0 0
    %4203 = vmatpush2.bf16.msra.mxu0 0
    %4204 = vmatprep.subr.bf16.mxu0 0
    %4205 = vmatpush2.bf16.msra.mxu0 0
    %4206 = vmatprep.subr.bf16.mxu0 0
    %4207 = vmatpush2.bf16.msra.mxu0 0
    %4208 = vmatprep.subr.bf16.mxu0 0
    %4209 = vmatpush2.bf16.msra.mxu0 0
    %4210 = vmatprep.subr.bf16.mxu0 0
    %4211 = vmatpush2.bf16.msra.mxu0 0
    %4212 = vmatprep.subr.bf16.mxu0 0
    %4213 = vmatpush2.bf16.msra.mxu0 0
    %4214 = vmatprep.subr.bf16.mxu0 0
    %4215 = vmatpush2.bf16.msra.mxu0 0
    %4216 = vmatprep.mubr.bf16.mxu0 0
    %4217 = vmatmul.mubr.bf16.gmra.mxu0 %v4178
    %v4218 = vpop.f32.mrf.mxu0
    %v4219 = vadd.f32 0.0, %v4218
    %v4220 = vpop.f32.mrf.mxu0
    %v4221 = vpop.f32.mrf.mxu0
    %v4222 = vpop.f32.mrf.mxu0
    %4223 = vdwg.mxu0
    %v4225 = vsel %vm4163, %v4169, 0
    %v4228 = vsel %vm4180, %v4174, 0
    %4230 = vmatprep.subr.bf16.mxu0 0
    %4231 = vmatpush1.bf16.msra.mxu0 0
    %4232 = vmatprep.subr.bf16.mxu0 0
    %4233 = vmatpush1.bf16.msra.mxu0 0
    %4234 = vmatprep.subr.bf16.mxu0 0
    %4235 = vmatpush1.bf16.msra.mxu0 0
    %4236 = vmatprep.subr.bf16.mxu0 0
    %4237 = vmatpush1.bf16.msra.mxu0 0
    %4238 = vmatprep.subr.bf16.mxu0 0
    %4239 = vmatpush1.bf16.msra.mxu0 0
    %4240 = vmatprep.subr.bf16.mxu0 0
    %4241 = vmatpush1.bf16.msra.mxu0 0
    %4242 = vmatprep.subr.bf16.mxu0 0
    %4243 = vmatpush1.bf16.msra.mxu0 0
    %4244 = vmatprep.subr.bf16.mxu0 0
    %4245 = vmatpush1.bf16.msra.mxu0 %v4228
    %4246 = vmatprep.subr.bf16.mxu0 0
    %4247 = vmatpush2.bf16.msra.mxu0 0
    %4248 = vmatprep.subr.bf16.mxu0 0
    %4249 = vmatpush2.bf16.msra.mxu0 0
    %4250 = vmatprep.subr.bf16.mxu0 0
    %4251 = vmatpush2.bf16.msra.mxu0 0
    %4252 = vmatprep.subr.bf16.mxu0 0
    %4253 = vmatpush2.bf16.msra.mxu0 0
    %4254 = vmatprep.subr.bf16.mxu0 0
    %4255 = vmatpush2.bf16.msra.mxu0 0
    %4256 = vmatprep.subr.bf16.mxu0 0
    %4257 = vmatpush2.bf16.msra.mxu0 0
    %4258 = vmatprep.subr.bf16.mxu0 0
    %4259 = vmatpush2.bf16.msra.mxu0 0
    %4260 = vmatprep.subr.bf16.mxu0 0
    %4261 = vmatpush2.bf16.msra.mxu0 0
    %4262 = vmatprep.mubr.bf16.mxu0 0
    %4263 = vmatmul.mubr.bf16.gmra.mxu0 %v4225
    %v4264 = vpop.f32.mrf.mxu0
    %v4265 = vadd.f32 %v4219, %v4264
    %v4266 = vpop.f32.mrf.mxu0
    %v4267 = vpop.f32.mrf.mxu0
    %v4268 = vpop.f32.mrf.mxu0
    %4269 = vdwg.mxu0
    %s4270 = scalar_lea.vmem %s3, 8
    %v4271 = vld [vmem:[%s4270] sm:$0xf]
    %v4273 = vsel %vm4163, %v4173, 0
    %v4276 = vsel %vm4180, %v4271, 0
    %4278 = vmatprep.subr.bf16.mxu0 0
    %4279 = vmatpush1.bf16.msra.mxu0 0
    %4280 = vmatprep.subr.bf16.mxu0 0
    %4281 = vmatpush1.bf16.msra.mxu0 0
    %4282 = vmatprep.subr.bf16.mxu0 0
    %4283 = vmatpush1.bf16.msra.mxu0 0
    %4284 = vmatprep.subr.bf16.mxu0 0
    %4285 = vmatpush1.bf16.msra.mxu0 0
    %4286 = vmatprep.subr.bf16.mxu0 0
    %4287 = vmatpush1.bf16.msra.mxu0 0
    %4288 = vmatprep.subr.bf16.mxu0 0
    %4289 = vmatpush1.bf16.msra.mxu0 0
    %4290 = vmatprep.subr.bf16.mxu0 0
    %4291 = vmatpush1.bf16.msra.mxu0 0
    %4292 = vmatprep.subr.bf16.mxu0 0
    %4293 = vmatpush1.bf16.msra.mxu0 %v4276
    %4294 = vmatprep.subr.bf16.mxu0 0
    %4295 = vmatpush2.bf16.msra.mxu0 0
    %4296 = vmatprep.subr.bf16.mxu0 0
    %4297 = vmatpush2.bf16.msra.mxu0 0
    %4298 = vmatprep.subr.bf16.mxu0 0
    %4299 = vmatpush2.bf16.msra.mxu0 0
    %4300 = vmatprep.subr.bf16.mxu0 0
    %4301 = vmatpush2.bf16.msra.mxu0 0
    %4302 = vmatprep.subr.bf16.mxu0 0
    %4303 = vmatpush2.bf16.msra.mxu0 0
    %4304 = vmatprep.subr.bf16.mxu0 0
    %4305 = vmatpush2.bf16.msra.mxu0 0
    %4306 = vmatprep.subr.bf16.mxu0 0
    %4307 = vmatpush2.bf16.msra.mxu0 0
    %4308 = vmatprep.subr.bf16.mxu0 0
    %4309 = vmatpush2.bf16.msra.mxu0 0
    %4310 = vmatprep.mubr.bf16.mxu0 0
    %4311 = vmatmul.mubr.bf16.gmra.mxu0 %v4273
    %v4312 = vpop.f32.mrf.mxu0
    %v4313 = vadd.f32 0.0, %v4312
    %v4314 = vpop.f32.mrf.mxu0
    %v4315 = vpop.f32.mrf.mxu0
    %v4316 = vpop.f32.mrf.mxu0
    %4317 = vdwg.mxu0
    %v4318 = vadd.f32 %v4265, %v4313
    %v4319 = vld [vmem:[%s4] sm:$0x1]
    %v4321 = vlaneseq
    %v4322 = vshrl.u32 %v4321, 7
    %v4323 = vsub.s32 0, %v4322
    %v4324 = vrot.slane %v4319, %v4323
    %v4326 = vadd.f32 %v4318, %v4324
    %v4327 = vmax.f32 %v4326, 0.0
    %v4328 = vpack.c.bf16 %v4327, %v4327
    %v4329 = vld [vmem:[%s5] sm:$0xf]
    %v4330 = vld [vmem:[%s6] sm:$0x1]
    %v4332 = vlaneseq
    %v4333 = vshrl.u32 %v4332, 7
    %v4334 = vsub.s32 0, %v4333
    %v4335 = vrot.slane %v4330, %v4334
    %v4338 = vsel %vm4163, %v4328, 0
    %v4341 = vsel %vm4180, %v4329, 0
    %4343 = vmatprep.subr.bf16.mxu0 0
    %4344 = vmatpush1.bf16.msra.mxu0 0
    %4345 = vmatprep.subr.bf16.mxu0 0
    %4346 = vmatpush1.bf16.msra.mxu0 0
    %4347 = vmatprep.subr.bf16.mxu0 0
    %4348 = vmatpush1.bf16.msra.mxu0 0
    %4349 = vmatprep.subr.bf16.mxu0 0
    %4350 = vmatpush1.bf16.msra.mxu0 0
    %4351 = vmatprep.subr.bf16.mxu0 0
    %4352 = vmatpush1.bf16.msra.mxu0 0
    %4353 = vmatprep.subr.bf16.mxu0 0
    %4354 = vmatpush1.bf16.msra.mxu0 0
    %4355 = vmatprep.subr.bf16.mxu0 0
    %4356 = vmatpush1.bf16.msra.mxu0 0
    %4357 = vmatprep.subr.bf16.mxu0 0
    %4358 = vmatpush1.bf16.msra.mxu0 %v4341
    %4359 = vmatprep.subr.bf16.mxu0 0
    %4360 = vmatpush2.bf16.msra.mxu0 0
    %4361 = vmatprep.subr.bf16.mxu0 0
    %4362 = vmatpush2.bf16.msra.mxu0 0
    %4363 = vmatprep.subr.bf16.mxu0 0
    %4364 = vmatpush2.bf16.msra.mxu0 0
    %4365 = vmatprep.subr.bf16.mxu0 0
    %4366 = vmatpush2.bf16.msra.mxu0 0
    %4367 = vmatprep.subr.bf16.mxu0 0
    %4368 = vmatpush2.bf16.msra.mxu0 0
    %4369 = vmatprep.subr.bf16.mxu0 0
    %4370 = vmatpush2.bf16.msra.mxu0 0
    %4371 = vmatprep.subr.bf16.mxu0 0
    %4372 = vmatpush2.bf16.msra.mxu0 0
    %4373 = vmatprep.subr.bf16.mxu0 0
    %4374 = vmatpush2.bf16.msra.mxu0 0
    %4375 = vmatprep.mubr.bf16.mxu0 0
    %4376 = vmatmul.mubr.bf16.gmra.mxu0 %v4338
    %v4377 = vpop.f32.mrf.mxu0
    %v4378 = vadd.f32 %v4335, %v4377
    %v4379 = vpop.f32.mrf.mxu0
    %v4380 = vpop.f32.mrf.mxu0
    %v4381 = vpop.f32.mrf.mxu0
    %4382 = vdwg.mxu0
    %vm4383 = vcmask 130048
    %4384 = vst.msk [vmem:[#allocation3] sm:$0xff] %vm4383, %v4378
    // Predicated region
    $region30: #{tpu_custom_call.1} parent=1 // pred_check
      _
    $region31: #{tpu_custom_call.1} parent=1 // pred_check_branch
      %4386 = sbr.rel (0) target = $region33
    $region32: #{tpu_custom_call.1} parent=1 // pred_region
      %s4388 = ssub.s32 128, 128
      %4389 = vsyncadd [#allocation4], %s4388
      %s4391 = sshll.u32 [#allocation3], 4
      %s4392 = int_to_ptr.vmem [resolvable:$true] %s4391
      %4394 = dma.vmem_to_hbm [thread:$0]  %s4392, 128, %s7, [#allocation4]
    $region33: #{tpu_custom_call.1} parent=1 // pred_fallthru
      _
    // Predicated region
    $region34: #{tpu_custom_call.1} parent=1 // pred_check
      _
    $region35: #{tpu_custom_call.1} parent=1 // pred_check_branch
      %4396 = sbr.rel (0) target = $region37
    $region36: #{tpu_custom_call.1} parent=1 // pred_region
      %4397 = dma.done [#allocation4], 128
    $region37: #{tpu_custom_call.1} parent=1 // pred_fallthru
      _
    %4398 = vsyncpa [#allocation4], 1

</llo_original>
